<compile_context>
chip_gen: v7x
topology: tpu7x:2x2x1
jax: 0.10.0
libtpu: 0.0.40
codegen_flags: <defaults>
</compile_context>

<pallas_src>
import functools
import math

import jax
import jax.numpy as jnp
from jax.experimental import pallas as pl
from jax.experimental.pallas import tpu as pltpu

_EPS = 1e-5
# Per-call VMEM budget sized for v7x (64 MiB physical / ~32 MiB scoped); valid on
# v5e/v6e too.  BlockSpec double-buffers each operand; the tiles below stay far under.
_VMEM_LIMIT = 32 * 1024 * 1024


def _pick_row_tile(m, max_tile=512):
    """Largest multiple-of-8 divisor of m that is <= max_tile (prefers >= 2 grid steps
    so the BlockSpec pipeline has something to double-buffer)."""
    if m < 16:
        return m
    cap = min(max_tile, m // 2)
    cap -= cap % 8
    for t in range(cap, 7, -8):
        if m % t == 0:
            return t
    return m


# ----------------------------- Pallas kernels -----------------------------

def _stats_kernel(x_ref, sum_ref, sq_ref):
    """Per-channel sum and sum-of-squares over all M rows, accumulated across M tiles.

    x: (tm, C) tile.  sum/sq: (1, C) outputs, resident across the 'arbitrary' grid axis.
    """
    @pl.when(pl.program_id(0) == 0)
    def _():
        sum_ref[...] = jnp.zeros_like(sum_ref)
        sq_ref[...] = jnp.zeros_like(sq_ref)

    x = x_ref[...].astype(jnp.float32)
    sum_ref[...] += jnp.sum(x, axis=0, keepdims=True)
    sq_ref[...] += jnp.sum(x * x, axis=0, keepdims=True)


def _bn_relu_matmul_kernel(x_ref, s_ref, ss_ref, g_ref, b_ref, w_ref, o_ref, *,
                           inv_m, eps):
    """Fused BatchNorm (from precomputed global sum/sumsq) + ReLU + 1x1 conv matmul.

    x: (tm, Cin)  s/ss/g/b: (1, Cin)  w: (Cin, Cout) bf16  o: (tm, Cout) f32.
    """
    mean = s_ref[...] * inv_m
    var = ss_ref[...] * inv_m - mean * mean          # E[x^2] - E[x]^2 (biased, BN train)
    scale = g_ref[...] * jax.lax.rsqrt(var + eps)
    shift = b_ref[...] - mean * scale
    a = jnp.maximum(x_ref[...] * scale + shift, 0.0)  # BN + ReLU in f32
    o_ref[...] = jnp.dot(a.astype(jnp.bfloat16), w_ref[...],
                         preferred_element_type=jnp.float32)


def _bn_relu_conv3x3_kernel(y_ref, s_ref, ss_ref, g_ref, b_ref, w_ref, o_ref,
                            pad_ref, *, inv_m, eps, H, W):
    """Fused BN2 + ReLU + zero-pad(1) + 3x3 conv for one image.

    y: (1, H, W, Cmid)  w: (9, Cmid, Cout) bf16 (tap t = di*3+dj)  o: (1, H, W, Cout).
    pad_ref: VMEM scratch (H+2, W+2, Cmid) f32 holding the padded activated image.
    The nine shifted-window matmuls are accumulated in f32 (no HBM im2col copy).
    """
    mean = s_ref[...] * inv_m
    var = ss_ref[...] * inv_m - mean * mean
    scale = g_ref[...] * jax.lax.rsqrt(var + eps)
    shift = b_ref[...] - mean * scale

    a = jnp.maximum(y_ref[0] * scale + shift, 0.0)    # (H, W, Cmid) f32

    pad_ref[...] = jnp.zeros_like(pad_ref)
    pad_ref[1:H + 1, 1:W + 1, :] = a                  # zero padding lives in VMEM only

    cmid = pad_ref.shape[-1]
    cout = o_ref.shape[-1]
    acc = jnp.zeros((H * W, cout), jnp.float32)
    for t in range(9):                                # static, fully unrolled tap loop
        di, dj = t // 3, t % 3
        win = pad_ref[di:di + H, dj:dj + W, :].reshape(H * W, cmid)
        acc = acc + jnp.dot(win.astype(jnp.bfloat16), w_ref[t],
                            preferred_element_type=jnp.float32)
    o_ref[0] = acc.reshape(H, W, cout)


# ------------------------------ wrappers -----------------------------------

def channel_stats(x2d):
    """(sum, sumsq) per channel over all rows of x2d: (M, C) -> 2 x (1, C)."""
    M, C = x2d.shape
    tm = _pick_row_tile(M)
    return pl.pallas_call(
        _stats_kernel,
        out_shape=(jax.ShapeDtypeStruct((1, C), jnp.float32),
                   jax.ShapeDtypeStruct((1, C), jnp.float32)),
        grid=(M // tm,),
        in_specs=[pl.BlockSpec((tm, C), lambda i: (i, 0))],
        out_specs=(pl.BlockSpec((1, C), lambda i: (0, 0)),
                   pl.BlockSpec((1, C), lambda i: (0, 0))),
        compiler_params=pltpu.CompilerParams(
            dimension_semantics=("arbitrary",),      # cross-tile accumulation
            vmem_limit_bytes=_VMEM_LIMIT),
    )(x2d)


def bn_relu_conv1x1(x2d, stats, gamma, beta, w, eps=_EPS):
    """relu(BN(x)) @ W  for a 1x1 convolution in NHWC-flattened form."""
    s, ss = stats
    M, Cin = x2d.shape
    Cout = w.shape[1]
    tm = _pick_row_tile(M)
    kernel = functools.partial(_bn_relu_matmul_kernel, inv_m=1.0 / M, eps=eps)
    return pl.pallas_call(
        kernel,
        out_shape=jax.ShapeDtypeStruct((M, Cout), jnp.float32),
        grid=(M // tm,),
        in_specs=[pl.BlockSpec((tm, Cin), lambda i: (i, 0)),
                  pl.BlockSpec((1, Cin), lambda i: (0, 0)),
                  pl.BlockSpec((1, Cin), lambda i: (0, 0)),
                  pl.BlockSpec((1, Cin), lambda i: (0, 0)),
                  pl.BlockSpec((1, Cin), lambda i: (0, 0)),
                  pl.BlockSpec((Cin, Cout), lambda i: (0, 0))],
        out_specs=pl.BlockSpec((tm, Cout), lambda i: (i, 0)),
        compiler_params=pltpu.CompilerParams(
            dimension_semantics=("parallel",),       # M tiles independent -> megacore
            vmem_limit_bytes=_VMEM_LIMIT),
    )(x2d,
      s, ss,
      gamma.reshape(1, Cin).astype(jnp.float32),
      beta.reshape(1, Cin).astype(jnp.float32),
      w.astype(jnp.bfloat16))


def bn_relu_conv3x3(y, stats, gamma, beta, w, eps=_EPS):
    """relu(BN(y)) convolved with a 3x3 kernel (stride 1, pad 1), per-image grid."""
    s, ss = stats
    N, H, W, Cmid = y.shape
    Cout = w.shape[-1]
    kernel = functools.partial(_bn_relu_conv3x3_kernel,
                               inv_m=1.0 / (N * H * W), eps=eps, H=H, W=W)
    return pl.pallas_call(
        kernel,
        out_shape=jax.ShapeDtypeStruct((N, H, W, Cout), jnp.float32),
        grid=(N,),
        in_specs=[pl.BlockSpec((1, H, W, Cmid), lambda n: (n, 0, 0, 0)),
                  pl.BlockSpec((1, Cmid), lambda n: (0, 0)),
                  pl.BlockSpec((1, Cmid), lambda n: (0, 0)),
                  pl.BlockSpec((1, Cmid), lambda n: (0, 0)),
                  pl.BlockSpec((1, Cmid), lambda n: (0, 0)),
                  pl.BlockSpec((9, Cmid, Cout), lambda n: (0, 0, 0))],
        out_specs=pl.BlockSpec((1, H, W, Cout), lambda n: (n, 0, 0, 0)),
        scratch_shapes=[pltpu.VMEM((H + 2, W + 2, Cmid), jnp.float32)],
        compiler_params=pltpu.CompilerParams(
            dimension_semantics=("parallel",),       # one image per step, independent
            vmem_limit_bytes=_VMEM_LIMIT),
    )(y,
      s, ss,
      gamma.reshape(1, Cmid).astype(jnp.float32),
      beta.reshape(1, Cmid).astype(jnp.float32),
      w.astype(jnp.bfloat16))
    # TODO(synk): for very large H (tile of H rows no longer VMEM-resident) this kernel
    # needs H-tiling with a 1-row halo; not required at these shapes.


# --------------------------- parameters & forward ---------------------------

def make_dense_layer_params(key, input_c, growth_rate, bn_size):
    """Weight layouts: w1[cin, cmid] = torch.conv1.weight[cmid, cin, 0, 0];
    w2[di*3+dj, cmid, cout] = torch.conv2.weight[cout, cmid, di, dj]."""
    cmid = bn_size * growth_rate
    k1, k2 = jax.random.split(key)
    w1 = jax.random.normal(k1, (input_c, cmid), jnp.float32) * math.sqrt(2.0 / input_c)
    w2 = (jax.random.normal(k2, (9, cmid, growth_rate), jnp.float32)
          * math.sqrt(2.0 / (9 * cmid)))
    return {'w1': w1,
            'g1': jnp.ones((input_c,), jnp.float32),
            'b1': jnp.zeros((input_c,), jnp.float32),
            'w2': w2,
            'g2': jnp.ones((cmid,), jnp.float32),
            'b2': jnp.zeros((cmid,), jnp.float32)}


def dense_layer_forward(inputs, params, *, drop_rate=0.0, training=True,
                        rng=None, eps=_EPS):
    """new_features = conv2(relu(bn2(conv1(relu(bn1(cat(inputs, C)))))))."""
    if not isinstance(inputs, (list, tuple)):
        inputs = [inputs]
    # torch.cat(inputs, 1) on NCHW == channel concat; done once in NHWC.
    x = jnp.concatenate(
        [jnp.transpose(t.astype(jnp.float32), (0, 2, 3, 1)) for t in inputs], axis=-1)
    N, H, W, Cin = x.shape
    x2d = x.reshape(N * H * W, Cin)

    st1 = channel_stats(x2d)                                            # BN1 batch stats
    y2d = bn_relu_conv1x1(x2d, st1, params['g1'], params['b1'], params['w1'], eps=eps)
    st2 = channel_stats(y2d)                                            # BN2 batch stats
    y = y2d.reshape(N, H, W, -1)
    out = bn_relu_conv3x3(y, st2, params['g2'], params['b2'], params['w2'], eps=eps)

    if drop_rate > 0.0 and training:
        # TODO(synk): dropout mask uses JAX RNG, not PyTorch RNG (draws won't match).
        keep = jax.random.bernoulli(rng, 1.0 - drop_rate, out.shape)
        out = jnp.where(keep, out / (1.0 - drop_rate), 0.0)
    # TODO(synk): BatchNorm running-mean/var (momentum buffers) and the
    # memory_efficient checkpointing path are training-side effects only; the forward
    # output is unaffected and they are not materialized here.
    return jnp.transpose(out, (0, 3, 1, 2))                             # NHWC -> NCHW


# ------------------------------ plain-JAX reference -------------------------

def _reference_dense_layer(x_nchw, params, eps=_EPS):
    x = x_nchw.astype(jnp.float32)

    def bn(v, g, b):
        mean = jnp.mean(v, axis=(0, 2, 3), keepdims=True)
        var = jnp.mean((v - mean) ** 2, axis=(0, 2, 3), keepdims=True)
        return ((v - mean) * jax.lax.rsqrt(var + eps) * g.reshape(1, -1, 1, 1)
                + b.reshape(1, -1, 1, 1))

    dn = ('NCHW', 'OIHW', 'NCHW')
    a1 = jax.nn.relu(bn(x, params['g1'], params['b1']))
    w1 = params['w1'].T[:, :, None, None]                 # (Cmid, Cin, 1, 1)
    y = jax.lax.conv_general_dilated(a1, w1, (1, 1), 'VALID', dimension_numbers=dn)
    a2 = jax.nn.relu(bn(y, params['g2'], params['b2']))
    cmid, cout = params['w2'].shape[1], params['w2'].shape[2]
    w2 = jnp.transpose(params['w2'].reshape(3, 3, cmid, cout), (3, 2, 0, 1))
    return jax.lax.conv_general_dilated(a2, w2, (1, 1), ((1, 1), (1, 1)),
                                        dimension_numbers=dn)


if __name__ == "__main__":
    key = jax.random.PRNGKey(0)
    kp, kx = jax.random.split(key)
    input_c, growth_rate, bn_size = 64, 32, 4            # conv1: 64->128, conv2: 128->32
    params = make_dense_layer_params(kp, input_c, growth_rate, bn_size)
    x = jax.random.normal(kx, (2, input_c, 16, 16), jnp.float32)   # NCHW

    fwd = jax.jit(dense_layer_forward)
    out = fwd(x, params)
    jax.block_until_ready(out)
    assert out.shape == (2, growth_rate, 16, 16) and out.dtype == jnp.float32

    ref = _reference_dense_layer(x, params)
    err = float(jnp.max(jnp.abs(out - ref)))
    assert err < 0.1, f"max abs error vs reference too large: {err}"
    print("KERNEL_OK")
</pallas_src>

<mosaic_0001>
module attributes {stable_mosaic.version = 11 : i64} {
  func.func @_stats_kernel(%arg0: i32, %arg1: memref<256x64xf32, #tpu.memory_space<vmem>>, %arg2: memref<1x64xf32, #tpu.memory_space<vmem>>, %arg3: memref<1x64xf32, #tpu.memory_space<vmem>>) attributes {dimension_semantics = [#tpu.dimension_semantics<arbitrary>], iteration_bounds = array<i64: 2>, scalar_prefetch = 0 : i64, scratch_operands = 0 : i64, tpu.core_type = #tpu.core_type<tc>, window_params = [{transform_indices = @transform_0, window_bounds = array<i64: 256, 64>}, {pipeline_mode = #tpu.pipeline_mode<synchronous>, transform_indices = @transform_1, window_bounds = array<i64: 1, 64>}, {pipeline_mode = #tpu.pipeline_mode<synchronous>, transform_indices = @transform_2, window_bounds = array<i64: 1, 64>}]} {
    %c0_i32 = arith.constant 0 : i32
    %0 = arith.cmpi eq, %arg0, %c0_i32 : i32
    %1 = arith.extui %0 : i1 to i32
    %c0_i32_0 = arith.constant 0 : i32
    %2 = arith.cmpi ne, %1, %c0_i32_0 : i32
    scf.if %2 {
      %cst_11 = arith.constant 0.000000e+00 : f32
      %15 = vector.broadcast %cst_11 : f32 to vector<1x64xf32>
      %c0_12 = arith.constant 0 : index
      %c0_13 = arith.constant 0 : index
      %16 = vector.load %arg2[%c0_12, %c0_13] : memref<1x64xf32, #tpu.memory_space<vmem>>, vector<1x64xf32>
      tpu.vector_store %arg2[%c0_12, %c0_13], %15 {strides = array<i32>} : memref<1x64xf32, #tpu.memory_space<vmem>>, vector<1x64xf32>,
      %cst_14 = arith.constant 0.000000e+00 : f32
      %17 = vector.broadcast %cst_14 : f32 to vector<1x64xf32>
      %c0_15 = arith.constant 0 : index
      %c0_16 = arith.constant 0 : index
      %18 = vector.load %arg3[%c0_15, %c0_16] : memref<1x64xf32, #tpu.memory_space<vmem>>, vector<1x64xf32>
      tpu.vector_store %arg3[%c0_15, %c0_16], %17 {strides = array<i32>} : memref<1x64xf32, #tpu.memory_space<vmem>>, vector<1x64xf32>,
    } else {
    }
    %c0 = arith.constant 0 : index
    %c0_1 = arith.constant 0 : index
    %3 = vector.load %arg1[%c0, %c0_1] : memref<256x64xf32, #tpu.memory_space<vmem>>, vector<256x64xf32>
    %c0_2 = arith.constant 0 : index
    %c0_3 = arith.constant 0 : index
    %4 = vector.load %arg2[%c0_2, %c0_3] : memref<1x64xf32, #tpu.memory_space<vmem>>, vector<1x64xf32>
    %cst = arith.constant dense<0.000000e+00> : vector<64xf32>
    %5 = vector.multi_reduction <add>, %3, %cst [0] : vector<256x64xf32> to vector<64xf32>
    %6 = vector.shape_cast %5 : vector<64xf32> to vector<1x64xf32>
    %7 = arith.addf %4, %6 : vector<1x64xf32>
    %c0_4 = arith.constant 0 : index
    %c0_5 = arith.constant 0 : index
    %8 = vector.load %arg2[%c0_4, %c0_5] : memref<1x64xf32, #tpu.memory_space<vmem>>, vector<1x64xf32>
    tpu.vector_store %arg2[%c0_4, %c0_5], %7 {strides = array<i32>} : memref<1x64xf32, #tpu.memory_space<vmem>>, vector<1x64xf32>,
    %c0_6 = arith.constant 0 : index
    %c0_7 = arith.constant 0 : index
    %9 = vector.load %arg3[%c0_6, %c0_7] : memref<1x64xf32, #tpu.memory_space<vmem>>, vector<1x64xf32>
    %10 = arith.mulf %3, %3 : vector<256x64xf32>
    %cst_8 = arith.constant dense<0.000000e+00> : vector<64xf32>
    %11 = vector.multi_reduction <add>, %10, %cst_8 [0] : vector<256x64xf32> to vector<64xf32>
    %12 = vector.shape_cast %11 : vector<64xf32> to vector<1x64xf32>
    %13 = arith.addf %9, %12 : vector<1x64xf32>
    %c0_9 = arith.constant 0 : index
    %c0_10 = arith.constant 0 : index
    %14 = vector.load %arg3[%c0_9, %c0_10] : memref<1x64xf32, #tpu.memory_space<vmem>>, vector<1x64xf32>
    tpu.vector_store %arg3[%c0_9, %c0_10], %13 {strides = array<i32>} : memref<1x64xf32, #tpu.memory_space<vmem>>, vector<1x64xf32>,
    return
  }
  func.func @transform_0(%arg0: i32) -> (i32, i32) {
    %c0_i32 = arith.constant 0 : i32
    %c0_i32_0 = arith.constant 0 : i32
    return %arg0, %c0_i32 : i32, i32
  }
  func.func @transform_1(%arg0: i32) -> (i32, i32) {
    %c0_i32 = arith.constant 0 : i32
    %c0_i32_0 = arith.constant 0 : i32
    %c0_i32_1 = arith.constant 0 : i32
    return %c0_i32, %c0_i32_0 : i32, i32
  }
  func.func @transform_2(%arg0: i32) -> (i32, i32) {
    %c0_i32 = arith.constant 0 : i32
    %c0_i32_0 = arith.constant 0 : i32
    %c0_i32_1 = arith.constant 0 : i32
    return %c0_i32, %c0_i32_0 : i32, i32
  }
}

module attributes {stable_mosaic.version = 11 : i64} {
  func.func @_stats_kernel(%arg0: i32, %arg1: memref<256x128xf32, #tpu.memory_space<vmem>>, %arg2: memref<1x128xf32, #tpu.memory_space<vmem>>, %arg3: memref<1x128xf32, #tpu.memory_space<vmem>>) attributes {dimension_semantics = [#tpu.dimension_semantics<arbitrary>], iteration_bounds = array<i64: 2>, scalar_prefetch = 0 : i64, scratch_operands = 0 : i64, tpu.core_type = #tpu.core_type<tc>, window_params = [{transform_indices = @transform_0, window_bounds = array<i64: 256, 128>}, {pipeline_mode = #tpu.pipeline_mode<synchronous>, transform_indices = @transform_1, window_bounds = array<i64: 1, 128>}, {pipeline_mode = #tpu.pipeline_mode<synchronous>, transform_indices = @transform_2, window_bounds = array<i64: 1, 128>}]} {
    %c0_i32 = arith.constant 0 : i32
    %0 = arith.cmpi eq, %arg0, %c0_i32 : i32
    %1 = arith.extui %0 : i1 to i32
    %c0_i32_0 = arith.constant 0 : i32
    %2 = arith.cmpi ne, %1, %c0_i32_0 : i32
    scf.if %2 {
      %cst_11 = arith.constant 0.000000e+00 : f32
      %15 = vector.broadcast %cst_11 : f32 to vector<1x128xf32>
      %c0_12 = arith.constant 0 : index
      %c0_13 = arith.constant 0 : index
      %16 = vector.load %arg2[%c0_12, %c0_13] : memref<1x128xf32, #tpu.memory_space<vmem>>, vector<1x128xf32>
      tpu.vector_store %arg2[%c0_12, %c0_13], %15 {strides = array<i32>} : memref<1x128xf32, #tpu.memory_space<vmem>>, vector<1x128xf32>,
      %cst_14 = arith.constant 0.000000e+00 : f32
      %17 = vector.broadcast %cst_14 : f32 to vector<1x128xf32>
      %c0_15 = arith.constant 0 : index
      %c0_16 = arith.constant 0 : index
      %18 = vector.load %arg3[%c0_15, %c0_16] : memref<1x128xf32, #tpu.memory_space<vmem>>, vector<1x128xf32>
      tpu.vector_store %arg3[%c0_15, %c0_16], %17 {strides = array<i32>} : memref<1x128xf32, #tpu.memory_space<vmem>>, vector<1x128xf32>,
    } else {
    }
    %c0 = arith.constant 0 : index
    %c0_1 = arith.constant 0 : index
    %3 = vector.load %arg1[%c0, %c0_1] : memref<256x128xf32, #tpu.memory_space<vmem>>, vector<256x128xf32>
    %c0_2 = arith.constant 0 : index
    %c0_3 = arith.constant 0 : index
    %4 = vector.load %arg2[%c0_2, %c0_3] : memref<1x128xf32, #tpu.memory_space<vmem>>, vector<1x128xf32>
    %cst = arith.constant dense<0.000000e+00> : vector<128xf32>
    %5 = vector.multi_reduction <add>, %3, %cst [0] : vector<256x128xf32> to vector<128xf32>
    %6 = vector.shape_cast %5 : vector<128xf32> to vector<1x128xf32>
    %7 = arith.addf %4, %6 : vector<1x128xf32>
    %c0_4 = arith.constant 0 : index
    %c0_5 = arith.constant 0 : index
    %8 = vector.load %arg2[%c0_4, %c0_5] : memref<1x128xf32, #tpu.memory_space<vmem>>, vector<1x128xf32>
    tpu.vector_store %arg2[%c0_4, %c0_5], %7 {strides = array<i32>} : memref<1x128xf32, #tpu.memory_space<vmem>>, vector<1x128xf32>,
    %c0_6 = arith.constant 0 : index
    %c0_7 = arith.constant 0 : index
    %9 = vector.load %arg3[%c0_6, %c0_7] : memref<1x128xf32, #tpu.memory_space<vmem>>, vector<1x128xf32>
    %10 = arith.mulf %3, %3 : vector<256x128xf32>
    %cst_8 = arith.constant dense<0.000000e+00> : vector<128xf32>
    %11 = vector.multi_reduction <add>, %10, %cst_8 [0] : vector<256x128xf32> to vector<128xf32>
    %12 = vector.shape_cast %11 : vector<128xf32> to vector<1x128xf32>
    %13 = arith.addf %9, %12 : vector<1x128xf32>
    %c0_9 = arith.constant 0 : index
    %c0_10 = arith.constant 0 : index
    %14 = vector.load %arg3[%c0_9, %c0_10] : memref<1x128xf32, #tpu.memory_space<vmem>>, vector<1x128xf32>
    tpu.vector_store %arg3[%c0_9, %c0_10], %13 {strides = array<i32>} : memref<1x128xf32, #tpu.memory_space<vmem>>, vector<1x128xf32>,
    return
  }
  func.func @transform_0(%arg0: i32) -> (i32, i32) {
    %c0_i32 = arith.constant 0 : i32
    %c0_i32_0 = arith.constant 0 : i32
    return %arg0, %c0_i32 : i32, i32
  }
  func.func @transform_1(%arg0: i32) -> (i32, i32) {
    %c0_i32 = arith.constant 0 : i32
    %c0_i32_0 = arith.constant 0 : i32
    %c0_i32_1 = arith.constant 0 : i32
    return %c0_i32, %c0_i32_0 : i32, i32
  }
  func.func @transform_2(%arg0: i32) -> (i32, i32) {
    %c0_i32 = arith.constant 0 : i32
    %c0_i32_0 = arith.constant 0 : i32
    %c0_i32_1 = arith.constant 0 : i32
    return %c0_i32, %c0_i32_0 : i32, i32
  }
}

module attributes {stable_mosaic.version = 11 : i64} {
  func.func @_bn_relu_conv3x3_kernel(%arg0: i32, %arg1: memref<1x16x16x128xf32, #tpu.memory_space<vmem>>, %arg2: memref<1x128xf32, #tpu.memory_space<vmem>>, %arg3: memref<1x128xf32, #tpu.memory_space<vmem>>, %arg4: memref<1x128xf32, #tpu.memory_space<vmem>>, %arg5: memref<1x128xf32, #tpu.memory_space<vmem>>, %arg6: memref<9x128x32xbf16, #tpu.memory_space<vmem>>, %arg7: memref<1x16x16x32xf32, #tpu.memory_space<vmem>>, %arg8: memref<18x18x128xf32, #tpu.memory_space<vmem>>) attributes {dimension_semantics = [#tpu.dimension_semantics<parallel>], iteration_bounds = array<i64: 2>, scalar_prefetch = 0 : i64, scratch_operands = 1 : i64, tpu.core_type = #tpu.core_type<tc>, window_params = [{transform_indices = @transform_0, window_bounds = array<i64: 1, 16, 16, 128>}, {pipeline_mode = #tpu.pipeline_mode<synchronous>, transform_indices = @transform_1, window_bounds = array<i64: 1, 128>}, {pipeline_mode = #tpu.pipeline_mode<synchronous>, transform_indices = @transform_2, window_bounds = array<i64: 1, 128>}, {pipeline_mode = #tpu.pipeline_mode<synchronous>, transform_indices = @transform_3, window_bounds = array<i64: 1, 128>}, {pipeline_mode = #tpu.pipeline_mode<synchronous>, transform_indices = @transform_4, window_bounds = array<i64: 1, 128>}, {pipeline_mode = #tpu.pipeline_mode<synchronous>, transform_indices = @transform_5, window_bounds = array<i64: 9, 128, 32>}, {transform_indices = @transform_6, window_bounds = array<i64: 1, 16, 16, 32>}]} {
    %c0 = arith.constant 0 : index
    %c0_0 = arith.constant 0 : index
    %0 = vector.load %arg2[%c0, %c0_0] : memref<1x128xf32, #tpu.memory_space<vmem>>, vector<1x128xf32>
    %cst = arith.constant 0.001953125 : f32
    %1 = vector.broadcast %cst : f32 to vector<1x128xf32>
    %2 = arith.mulf %0, %1 : vector<1x128xf32>
    %c0_1 = arith.constant 0 : index
    %c0_2 = arith.constant 0 : index
    %3 = vector.load %arg3[%c0_1, %c0_2] : memref<1x128xf32, #tpu.memory_space<vmem>>, vector<1x128xf32>
    %cst_3 = arith.constant 0.001953125 : f32
    %4 = vector.broadcast %cst_3 : f32 to vector<1x128xf32>
    %5 = arith.mulf %3, %4 : vector<1x128xf32>
    %6 = arith.mulf %2, %2 : vector<1x128xf32>
    %7 = arith.subf %5, %6 : vector<1x128xf32>
    %c0_4 = arith.constant 0 : index
    %c0_5 = arith.constant 0 : index
    %8 = vector.load %arg4[%c0_4, %c0_5] : memref<1x128xf32, #tpu.memory_space<vmem>>, vector<1x128xf32>
    %cst_6 = arith.constant 9.99999974E-6 : f32
    %9 = vector.broadcast %cst_6 : f32 to vector<1x128xf32>
    %10 = arith.addf %7, %9 : vector<1x128xf32>
    %11 = math.rsqrt %10 : vector<1x128xf32>
    %12 = arith.mulf %8, %11 : vector<1x128xf32>
    %c0_7 = arith.constant 0 : index
    %c0_8 = arith.constant 0 : index
    %13 = vector.load %arg5[%c0_7, %c0_8] : memref<1x128xf32, #tpu.memory_space<vmem>>, vector<1x128xf32>
    %14 = arith.mulf %2, %12 : vector<1x128xf32>
    %15 = arith.subf %13, %14 : vector<1x128xf32>
    %c0_9 = arith.constant 0 : index
    %c0_10 = arith.constant 0 : index
    %c0_11 = arith.constant 0 : index
    %c0_12 = arith.constant 0 : index
    %16 = vector.load %arg1[%c0_9, %c0_10, %c0_11, %c0_12] : memref<1x16x16x128xf32, #tpu.memory_space<vmem>>, vector<1x16x16x128xf32>
    %17 = vector.shape_cast %16 : vector<1x16x16x128xf32> to vector<16x16x128xf32>
    %18 = vector.shape_cast %12 : vector<1x128xf32> to vector<1x1x128xf32>
    %19 = vector.broadcast %18 : vector<1x1x128xf32> to vector<16x16x128xf32>
    %20 = arith.mulf %17, %19 : vector<16x16x128xf32>
    %21 = vector.shape_cast %15 : vector<1x128xf32> to vector<1x1x128xf32>
    %22 = vector.broadcast %21 : vector<1x1x128xf32> to vector<16x16x128xf32>
    %23 = arith.addf %20, %22 : vector<16x16x128xf32>
    %cst_13 = arith.constant 0.000000e+00 : f32
    %24 = vector.broadcast %cst_13 : f32 to vector<16x16x128xf32>
    %25 = arith.maximumf %23, %24 : vector<16x16x128xf32>
    %cst_14 = arith.constant 0.000000e+00 : f32
    %26 = vector.broadcast %cst_14 : f32 to vector<18x18x128xf32>
    %c0_15 = arith.constant 0 : index
    %c0_16 = arith.constant 0 : index
    %c0_17 = arith.constant 0 : index
    %27 = vector.load %arg8[%c0_15, %c0_16, %c0_17] : memref<18x18x128xf32, #tpu.memory_space<vmem>>, vector<18x18x128xf32>
    tpu.vector_store %arg8[%c0_15, %c0_16, %c0_17], %26 {strides = array<i32>} : memref<18x18x128xf32, #tpu.memory_space<vmem>>, vector<18x18x128xf32>,
    %c1 = arith.constant 1 : index
    %c1_18 = arith.constant 1 : index
    %c0_19 = arith.constant 0 : index
    %28 = vector.load %arg8[%c1, %c1_18, %c0_19] : memref<18x18x128xf32, #tpu.memory_space<vmem>>, vector<16x16x128xf32>
    tpu.vector_store %arg8[%c1, %c1_18, %c0_19], %25 {strides = array<i32>} : memref<18x18x128xf32, #tpu.memory_space<vmem>>, vector<16x16x128xf32>,
    %cst_20 = arith.constant 0.000000e+00 : f32
    %29 = vector.broadcast %cst_20 : f32 to vector<256x32xf32>
    %c0_21 = arith.constant 0 : index
    %c0_22 = arith.constant 0 : index
    %c0_23 = arith.constant 0 : index
    %30 = vector.load %arg8[%c0_21, %c0_22, %c0_23] : memref<18x18x128xf32, #tpu.memory_space<vmem>>, vector<16x16x128xf32>
    %31 = vector.shape_cast %30 : vector<16x16x128xf32> to vector<256x128xf32>
    %32 = arith.truncf %31 : vector<256x128xf32> to vector<256x128xbf16>
    %c0_24 = arith.constant 0 : index
    %c0_25 = arith.constant 0 : index
    %c0_26 = arith.constant 0 : index
    %33 = vector.load %arg6[%c0_24, %c0_25, %c0_26] : memref<9x128x32xbf16, #tpu.memory_space<vmem>>, vector<1x128x32xbf16>
    %34 = vector.shape_cast %33 : vector<1x128x32xbf16> to vector<128x32xbf16>
    %cst_27 = arith.constant dense<0.000000e+00> : vector<256x32xf32>
    %35 = tpu.matmul %32, %34, %cst_27 {dimension_numbers = #tpu.dot_dimension_numbers<[1], [0], [0], [1], [0, 0, 1, 1], [], []>} : vector<256x128xbf16>, vector<128x32xbf16>, vector<256x32xf32> -> vector<256x32xf32>
    %36 = arith.addf %29, %35 : vector<256x32xf32>
    %c0_28 = arith.constant 0 : index
    %c1_29 = arith.constant 1 : index
    %c0_30 = arith.constant 0 : index
    %37 = vector.load %arg8[%c0_28, %c1_29, %c0_30] : memref<18x18x128xf32, #tpu.memory_space<vmem>>, vector<16x16x128xf32>
    %38 = vector.shape_cast %37 : vector<16x16x128xf32> to vector<256x128xf32>
    %39 = arith.truncf %38 : vector<256x128xf32> to vector<256x128xbf16>
    %c1_31 = arith.constant 1 : index
    %c0_32 = arith.constant 0 : index
    %c0_33 = arith.constant 0 : index
    %40 = vector.load %arg6[%c1_31, %c0_32, %c0_33] : memref<9x128x32xbf16, #tpu.memory_space<vmem>>, vector<1x128x32xbf16>
    %41 = vector.shape_cast %40 : vector<1x128x32xbf16> to vector<128x32xbf16>
    %cst_34 = arith.constant dense<0.000000e+00> : vector<256x32xf32>
    %42 = tpu.matmul %39, %41, %cst_34 {dimension_numbers = #tpu.dot_dimension_numbers<[1], [0], [0], [1], [0, 0, 1, 1], [], []>} : vector<256x128xbf16>, vector<128x32xbf16>, vector<256x32xf32> -> vector<256x32xf32>
    %43 = arith.addf %36, %42 : vector<256x32xf32>
    %c0_35 = arith.constant 0 : index
    %c2 = arith.constant 2 : index
    %c0_36 = arith.constant 0 : index
    %44 = vector.load %arg8[%c0_35, %c2, %c0_36] : memref<18x18x128xf32, #tpu.memory_space<vmem>>, vector<16x16x128xf32>
    %45 = vector.shape_cast %44 : vector<16x16x128xf32> to vector<256x128xf32>
    %46 = arith.truncf %45 : vector<256x128xf32> to vector<256x128xbf16>
    %c2_37 = arith.constant 2 : index
    %c0_38 = arith.constant 0 : index
    %c0_39 = arith.constant 0 : index
    %47 = vector.load %arg6[%c2_37, %c0_38, %c0_39] : memref<9x128x32xbf16, #tpu.memory_space<vmem>>, vector<1x128x32xbf16>
    %48 = vector.shape_cast %47 : vector<1x128x32xbf16> to vector<128x32xbf16>
    %cst_40 = arith.constant dense<0.000000e+00> : vector<256x32xf32>
    %49 = tpu.matmul %46, %48, %cst_40 {dimension_numbers = #tpu.dot_dimension_numbers<[1], [0], [0], [1], [0, 0, 1, 1], [], []>} : vector<256x128xbf16>, vector<128x32xbf16>, vector<256x32xf32> -> vector<256x32xf32>
    %50 = arith.addf %43, %49 : vector<256x32xf32>
    %c1_41 = arith.constant 1 : index
    %c0_42 = arith.constant 0 : index
    %c0_43 = arith.constant 0 : index
    %51 = vector.load %arg8[%c1_41, %c0_42, %c0_43] : memref<18x18x128xf32, #tpu.memory_space<vmem>>, vector<16x16x128xf32>
    %52 = vector.shape_cast %51 : vector<16x16x128xf32> to vector<256x128xf32>
    %53 = arith.truncf %52 : vector<256x128xf32> to vector<256x128xbf16>
    %c3 = arith.constant 3 : index
    %c0_44 = arith.constant 0 : index
    %c0_45 = arith.constant 0 : index
    %54 = vector.load %arg6[%c3, %c0_44, %c0_45] : memref<9x128x32xbf16, #tpu.memory_space<vmem>>, vector<1x128x32xbf16>
    %55 = vector.shape_cast %54 : vector<1x128x32xbf16> to vector<128x32xbf16>
    %cst_46 = arith.constant dense<0.000000e+00> : vector<256x32xf32>
    %56 = tpu.matmul %53, %55, %cst_46 {dimension_numbers = #tpu.dot_dimension_numbers<[1], [0], [0], [1], [0, 0, 1, 1], [], []>} : vector<256x128xbf16>, vector<128x32xbf16>, vector<256x32xf32> -> vector<256x32xf32>
    %57 = arith.addf %50, %56 : vector<256x32xf32>
    %c1_47 = arith.constant 1 : index
    %c1_48 = arith.constant 1 : index
    %c0_49 = arith.constant 0 : index
    %58 = vector.load %arg8[%c1_47, %c1_48, %c0_49] : memref<18x18x128xf32, #tpu.memory_space<vmem>>, vector<16x16x128xf32>
    %59 = vector.shape_cast %58 : vector<16x16x128xf32> to vector<256x128xf32>
    %60 = arith.truncf %59 : vector<256x128xf32> to vector<256x128xbf16>
    %c4 = arith.constant 4 : index
    %c0_50 = arith.constant 0 : index
    %c0_51 = arith.constant 0 : index
    %61 = vector.load %arg6[%c4, %c0_50, %c0_51] : memref<9x128x32xbf16, #tpu.memory_space<vmem>>, vector<1x128x32xbf16>
    %62 = vector.shape_cast %61 : vector<1x128x32xbf16> to vector<128x32xbf16>
    %cst_52 = arith.constant dense<0.000000e+00> : vector<256x32xf32>
    %63 = tpu.matmul %60, %62, %cst_52 {dimension_numbers = #tpu.dot_dimension_numbers<[1], [0], [0], [1], [0, 0, 1, 1], [], []>} : vector<256x128xbf16>, vector<128x32xbf16>, vector<256x32xf32> -> vector<256x32xf32>
    %64 = arith.addf %57, %63 : vector<256x32xf32>
    %c1_53 = arith.constant 1 : index
    %c2_54 = arith.constant 2 : index
    %c0_55 = arith.constant 0 : index
    %65 = vector.load %arg8[%c1_53, %c2_54, %c0_55] : memref<18x18x128xf32, #tpu.memory_space<vmem>>, vector<16x16x128xf32>
    %66 = vector.shape_cast %65 : vector<16x16x128xf32> to vector<256x128xf32>
    %67 = arith.truncf %66 : vector<256x128xf32> to vector<256x128xbf16>
    %c5 = arith.constant 5 : index
    %c0_56 = arith.constant 0 : index
    %c0_57 = arith.constant 0 : index
    %68 = vector.load %arg6[%c5, %c0_56, %c0_57] : memref<9x128x32xbf16, #tpu.memory_space<vmem>>, vector<1x128x32xbf16>
    %69 = vector.shape_cast %68 : vector<1x128x32xbf16> to vector<128x32xbf16>
    %cst_58 = arith.constant dense<0.000000e+00> : vector<256x32xf32>
    %70 = tpu.matmul %67, %69, %cst_58 {dimension_numbers = #tpu.dot_dimension_numbers<[1], [0], [0], [1], [0, 0, 1, 1], [], []>} : vector<256x128xbf16>, vector<128x32xbf16>, vector<256x32xf32> -> vector<256x32xf32>
    %71 = arith.addf %64, %70 : vector<256x32xf32>
    %c2_59 = arith.constant 2 : index
    %c0_60 = arith.constant 0 : index
    %c0_61 = arith.constant 0 : index
    %72 = vector.load %arg8[%c2_59, %c0_60, %c0_61] : memref<18x18x128xf32, #tpu.memory_space<vmem>>, vector<16x16x128xf32>
    %73 = vector.shape_cast %72 : vector<16x16x128xf32> to vector<256x128xf32>
    %74 = arith.truncf %73 : vector<256x128xf32> to vector<256x128xbf16>
    %c6 = arith.constant 6 : index
    %c0_62 = arith.constant 0 : index
    %c0_63 = arith.constant 0 : index
    %75 = vector.load %arg6[%c6, %c0_62, %c0_63] : memref<9x128x32xbf16, #tpu.memory_space<vmem>>, vector<1x128x32xbf16>
    %76 = vector.shape_cast %75 : vector<1x128x32xbf16> to vector<128x32xbf16>
    %cst_64 = arith.constant dense<0.000000e+00> : vector<256x32xf32>
    %77 = tpu.matmul %74, %76, %cst_64 {dimension_numbers = #tpu.dot_dimension_numbers<[1], [0], [0], [1], [0, 0, 1, 1], [], []>} : vector<256x128xbf16>, vector<128x32xbf16>, vector<256x32xf32> -> vector<256x32xf32>
    %78 = arith.addf %71, %77 : vector<256x32xf32>
    %c2_65 = arith.constant 2 : index
    %c1_66 = arith.constant 1 : index
    %c0_67 = arith.constant 0 : index
    %79 = vector.load %arg8[%c2_65, %c1_66, %c0_67] : memref<18x18x128xf32, #tpu.memory_space<vmem>>, vector<16x16x128xf32>
    %80 = vector.shape_cast %79 : vector<16x16x128xf32> to vector<256x128xf32>
    %81 = arith.truncf %80 : vector<256x128xf32> to vector<256x128xbf16>
    %c7 = arith.constant 7 : index
    %c0_68 = arith.constant 0 : index
    %c0_69 = arith.constant 0 : index
    %82 = vector.load %arg6[%c7, %c0_68, %c0_69] : memref<9x128x32xbf16, #tpu.memory_space<vmem>>, vector<1x128x32xbf16>
    %83 = vector.shape_cast %82 : vector<1x128x32xbf16> to vector<128x32xbf16>
    %cst_70 = arith.constant dense<0.000000e+00> : vector<256x32xf32>
    %84 = tpu.matmul %81, %83, %cst_70 {dimension_numbers = #tpu.dot_dimension_numbers<[1], [0], [0], [1], [0, 0, 1, 1], [], []>} : vector<256x128xbf16>, vector<128x32xbf16>, vector<256x32xf32> -> vector<256x32xf32>
    %85 = arith.addf %78, %84 : vector<256x32xf32>
    %c2_71 = arith.constant 2 : index
    %c2_72 = arith.constant 2 : index
    %c0_73 = arith.constant 0 : index
    %86 = vector.load %arg8[%c2_71, %c2_72, %c0_73] : memref<18x18x128xf32, #tpu.memory_space<vmem>>, vector<16x16x128xf32>
    %87 = vector.shape_cast %86 : vector<16x16x128xf32> to vector<256x128xf32>
    %88 = arith.truncf %87 : vector<256x128xf32> to vector<256x128xbf16>
    %c8 = arith.constant 8 : index
    %c0_74 = arith.constant 0 : index
    %c0_75 = arith.constant 0 : index
    %89 = vector.load %arg6[%c8, %c0_74, %c0_75] : memref<9x128x32xbf16, #tpu.memory_space<vmem>>, vector<1x128x32xbf16>
    %90 = vector.shape_cast %89 : vector<1x128x32xbf16> to vector<128x32xbf16>
    %cst_76 = arith.constant dense<0.000000e+00> : vector<256x32xf32>
    %91 = tpu.matmul %88, %90, %cst_76 {dimension_numbers = #tpu.dot_dimension_numbers<[1], [0], [0], [1], [0, 0, 1, 1], [], []>} : vector<256x128xbf16>, vector<128x32xbf16>, vector<256x32xf32> -> vector<256x32xf32>
    %92 = arith.addf %85, %91 : vector<256x32xf32>
    %93 = vector.shape_cast %92 : vector<256x32xf32> to vector<16x16x32xf32>
    %c0_77 = arith.constant 0 : index
    %c0_78 = arith.constant 0 : index
    %c0_79 = arith.constant 0 : index
    %c0_80 = arith.constant 0 : index
    %94 = vector.load %arg7[%c0_77, %c0_78, %c0_79, %c0_80] : memref<1x16x16x32xf32, #tpu.memory_space<vmem>>, vector<1x16x16x32xf32>
    %95 = vector.shape_cast %94 : vector<1x16x16x32xf32> to vector<16x16x32xf32>
    %96 = vector.shape_cast %93 : vector<16x16x32xf32> to vector<1x16x16x32xf32>
    tpu.vector_store %arg7[%c0_77, %c0_78, %c0_79, %c0_80], %96 {strides = array<i32>} : memref<1x16x16x32xf32, #tpu.memory_space<vmem>>, vector<1x16x16x32xf32>,
    return
  }
  func.func @transform_0(%arg0: i32) -> (i32, i32, i32, i32) {
    %c0_i32 = arith.constant 0 : i32
    %c0_i32_0 = arith.constant 0 : i32
    %c0_i32_1 = arith.constant 0 : i32
    %c0_i32_2 = arith.constant 0 : i32
    return %arg0, %c0_i32, %c0_i32_0, %c0_i32_1 : i32, i32, i32, i32
  }
  func.func @transform_1(%arg0: i32) -> (i32, i32) {
    %c0_i32 = arith.constant 0 : i32
    %c0_i32_0 = arith.constant 0 : i32
    %c0_i32_1 = arith.constant 0 : i32
    return %c0_i32, %c0_i32_0 : i32, i32
  }
  func.func @transform_2(%arg0: i32) -> (i32, i32) {
    %c0_i32 = arith.constant 0 : i32
    %c0_i32_0 = arith.constant 0 : i32
    %c0_i32_1 = arith.constant 0 : i32
    return %c0_i32, %c0_i32_0 : i32, i32
  }
  func.func @transform_3(%arg0: i32) -> (i32, i32) {
    %c0_i32 = arith.constant 0 : i32
    %c0_i32_0 = arith.constant 0 : i32
    %c0_i32_1 = arith.constant 0 : i32
    return %c0_i32, %c0_i32_0 : i32, i32
  }
  func.func @transform_4(%arg0: i32) -> (i32, i32) {
    %c0_i32 = arith.constant 0 : i32
    %c0_i32_0 = arith.constant 0 : i32
    %c0_i32_1 = arith.constant 0 : i32
    return %c0_i32, %c0_i32_0 : i32, i32
  }
  func.func @transform_5(%arg0: i32) -> (i32, i32, i32) {
    %c0_i32 = arith.constant 0 : i32
    %c0_i32_0 = arith.constant 0 : i32
    %c0_i32_1 = arith.constant 0 : i32
    %c0_i32_2 = arith.constant 0 : i32
    return %c0_i32, %c0_i32_0, %c0_i32_1 : i32, i32, i32
  }
  func.func @transform_6(%arg0: i32) -> (i32, i32, i32, i32) {
    %c0_i32 = arith.constant 0 : i32
    %c0_i32_0 = arith.constant 0 : i32
    %c0_i32_1 = arith.constant 0 : i32
    %c0_i32_2 = arith.constant 0 : i32
    return %arg0, %c0_i32, %c0_i32_0, %c0_i32_1 : i32, i32, i32, i32
  }
}

module attributes {stable_mosaic.version = 11 : i64} {
  func.func @_bn_relu_matmul_kernel(%arg0: i32, %arg1: memref<256x64xf32, #tpu.memory_space<vmem>>, %arg2: memref<1x64xf32, #tpu.memory_space<vmem>>, %arg3: memref<1x64xf32, #tpu.memory_space<vmem>>, %arg4: memref<1x64xf32, #tpu.memory_space<vmem>>, %arg5: memref<1x64xf32, #tpu.memory_space<vmem>>, %arg6: memref<64x128xbf16, #tpu.memory_space<vmem>>, %arg7: memref<256x128xf32, #tpu.memory_space<vmem>>) attributes {dimension_semantics = [#tpu.dimension_semantics<parallel>], iteration_bounds = array<i64: 2>, scalar_prefetch = 0 : i64, scratch_operands = 0 : i64, tpu.core_type = #tpu.core_type<tc>, window_params = [{transform_indices = @transform_0, window_bounds = array<i64: 256, 64>}, {pipeline_mode = #tpu.pipeline_mode<synchronous>, transform_indices = @transform_1, window_bounds = array<i64: 1, 64>}, {pipeline_mode = #tpu.pipeline_mode<synchronous>, transform_indices = @transform_2, window_bounds = array<i64: 1, 64>}, {pipeline_mode = #tpu.pipeline_mode<synchronous>, transform_indices = @transform_3, window_bounds = array<i64: 1, 64>}, {pipeline_mode = #tpu.pipeline_mode<synchronous>, transform_indices = @transform_4, window_bounds = array<i64: 1, 64>}, {pipeline_mode = #tpu.pipeline_mode<synchronous>, transform_indices = @transform_5, window_bounds = array<i64: 64, 128>}, {transform_indices = @transform_6, window_bounds = array<i64: 256, 128>}]} {
    %c0 = arith.constant 0 : index
    %c0_0 = arith.constant 0 : index
    %0 = vector.load %arg2[%c0, %c0_0] : memref<1x64xf32, #tpu.memory_space<vmem>>, vector<1x64xf32>
    %cst = arith.constant 0.001953125 : f32
    %1 = vector.broadcast %cst : f32 to vector<1x64xf32>
    %2 = arith.mulf %0, %1 : vector<1x64xf32>
    %c0_1 = arith.constant 0 : index
    %c0_2 = arith.constant 0 : index
    %3 = vector.load %arg3[%c0_1, %c0_2] : memref<1x64xf32, #tpu.memory_space<vmem>>, vector<1x64xf32>
    %cst_3 = arith.constant 0.001953125 : f32
    %4 = vector.broadcast %cst_3 : f32 to vector<1x64xf32>
    %5 = arith.mulf %3, %4 : vector<1x64xf32>
    %6 = arith.mulf %2, %2 : vector<1x64xf32>
    %7 = arith.subf %5, %6 : vector<1x64xf32>
    %c0_4 = arith.constant 0 : index
    %c0_5 = arith.constant 0 : index
    %8 = vector.load %arg4[%c0_4, %c0_5] : memref<1x64xf32, #tpu.memory_space<vmem>>, vector<1x64xf32>
    %cst_6 = arith.constant 9.99999974E-6 : f32
    %9 = vector.broadcast %cst_6 : f32 to vector<1x64xf32>
    %10 = arith.addf %7, %9 : vector<1x64xf32>
    %11 = math.rsqrt %10 : vector<1x64xf32>
    %12 = arith.mulf %8, %11 : vector<1x64xf32>
    %c0_7 = arith.constant 0 : index
    %c0_8 = arith.constant 0 : index
    %13 = vector.load %arg5[%c0_7, %c0_8] : memref<1x64xf32, #tpu.memory_space<vmem>>, vector<1x64xf32>
    %14 = arith.mulf %2, %12 : vector<1x64xf32>
    %15 = arith.subf %13, %14 : vector<1x64xf32>
    %c0_9 = arith.constant 0 : index
    %c0_10 = arith.constant 0 : index
    %16 = vector.load %arg1[%c0_9, %c0_10] : memref<256x64xf32, #tpu.memory_space<vmem>>, vector<256x64xf32>
    %17 = vector.broadcast %12 : vector<1x64xf32> to vector<256x64xf32>
    %18 = arith.mulf %16, %17 : vector<256x64xf32>
    %19 = vector.broadcast %15 : vector<1x64xf32> to vector<256x64xf32>
    %20 = arith.addf %18, %19 : vector<256x64xf32>
    %cst_11 = arith.constant 0.000000e+00 : f32
    %21 = vector.broadcast %cst_11 : f32 to vector<256x64xf32>
    %22 = arith.maximumf %20, %21 : vector<256x64xf32>
    %23 = arith.truncf %22 : vector<256x64xf32> to vector<256x64xbf16>
    %c0_12 = arith.constant 0 : index
    %c0_13 = arith.constant 0 : index
    %24 = vector.load %arg6[%c0_12, %c0_13] : memref<64x128xbf16, #tpu.memory_space<vmem>>, vector<64x128xbf16>
    %cst_14 = arith.constant dense<0.000000e+00> : vector<256x128xf32>
    %25 = tpu.matmul %23, %24, %cst_14 {dimension_numbers = #tpu.dot_dimension_numbers<[1], [0], [0], [1], [0, 0, 1, 1], [], []>} : vector<256x64xbf16>, vector<64x128xbf16>, vector<256x128xf32> -> vector<256x128xf32>
    %c0_15 = arith.constant 0 : index
    %c0_16 = arith.constant 0 : index
    %26 = vector.load %arg7[%c0_15, %c0_16] : memref<256x128xf32, #tpu.memory_space<vmem>>, vector<256x128xf32>
    tpu.vector_store %arg7[%c0_15, %c0_16], %25 {strides = array<i32>} : memref<256x128xf32, #tpu.memory_space<vmem>>, vector<256x128xf32>,
    return
  }
  func.func @transform_0(%arg0: i32) -> (i32, i32) {
    %c0_i32 = arith.constant 0 : i32
    %c0_i32_0 = arith.constant 0 : i32
    return %arg0, %c0_i32 : i32, i32
  }
  func.func @transform_1(%arg0: i32) -> (i32, i32) {
    %c0_i32 = arith.constant 0 : i32
    %c0_i32_0 = arith.constant 0 : i32
    %c0_i32_1 = arith.constant 0 : i32
    return %c0_i32, %c0_i32_0 : i32, i32
  }
  func.func @transform_2(%arg0: i32) -> (i32, i32) {
    %c0_i32 = arith.constant 0 : i32
    %c0_i32_0 = arith.constant 0 : i32
    %c0_i32_1 = arith.constant 0 : i32
    return %c0_i32, %c0_i32_0 : i32, i32
  }
  func.func @transform_3(%arg0: i32) -> (i32, i32) {
    %c0_i32 = arith.constant 0 : i32
    %c0_i32_0 = arith.constant 0 : i32
    %c0_i32_1 = arith.constant 0 : i32
    return %c0_i32, %c0_i32_0 : i32, i32
  }
  func.func @transform_4(%arg0: i32) -> (i32, i32) {
    %c0_i32 = arith.constant 0 : i32
    %c0_i32_0 = arith.constant 0 : i32
    %c0_i32_1 = arith.constant 0 : i32
    return %c0_i32, %c0_i32_0 : i32, i32
  }
  func.func @transform_5(%arg0: i32) -> (i32, i32) {
    %c0_i32 = arith.constant 0 : i32
    %c0_i32_0 = arith.constant 0 : i32
    %c0_i32_1 = arith.constant 0 : i32
    return %c0_i32, %c0_i32_0 : i32, i32
  }
  func.func @transform_6(%arg0: i32) -> (i32, i32) {
    %c0_i32 = arith.constant 0 : i32
    %c0_i32_0 = arith.constant 0 : i32
    return %arg0, %c0_i32 : i32, i32
  }
}

</mosaic_0001>

<llo_original>
// kernel: dense_layer_forward.4
$region0: #{dense_layer_forward.4}
  #allocation0 [shape = 'u32[]', space=smem, size = 0x4, offset = 0x4, fixed_abs, tag = 'smem constant byte address 0x4 - core index']
  #allocation1 [shape = 'u32[144,128]{1,0:T(1,128)}', space=vmem, size = 0x12000, scoped, tag = 'internal scratch']
  %s0 = inlined_call_operand.hbm [shape: f32[512,64], index: 0, kind: input, shape index: {}]
  %s1 = inlined_call_operand.vmem [shape: f32[1,64], index: 1, kind: output, shape index: {0}]
  %s2 = inlined_call_operand.vmem [shape: f32[1,64], index: 2, kind: output, shape index: {1}]
  %3 = xla_tuple %s1, %s2
  %s4 = sld [smem:[#allocation0]]
  $region53: #{dense_layer_forward.4} parent=0
    _
  %s6 = ssub.s32 1, %s4
  %s7 = scalar_select 0, %s6, %s4
  $region1: #{dense_layer_forward.4} parent=0
    #allocation2 [shape = 'u8[262144]{0}', space=vmem, size = 0x40000, scoped, tag = 'input window, operand 0']
    #allocation3 [shape = 's32[2]{0}', space=sflag, size = 0x8, scoped, tag = 'scoped memory for dense_layer_forward.4']
    %8 = vsyncpa [#allocation3], 0
    %s9 = scalar_lea.sflag [#allocation3], 1
    %10 = vsyncpa %s9, 0
    loop: start=0, step=1, limit=4
    $region2: #{dense_layer_forward.4} parent=1 // loop_pre_header
      _
    $region3: #{dense_layer_forward.4} parent=1 // loop_header
      %s12 = sphi 0, %s16
      %p13 = scmp.ge.s32.totalorder %s12, 4
      %s22 = sphi 0, %s24
      %s25 = sphi 0, %s22
      %s26 = sphi 0, %s25
      %s42 = sphi 0, %s26
      %s46 = sphi 0, %s46
      %s48 = sphi 0, %s46
      %s49 = sphi 0, %s48
      %s63 = sphi 0, %s49
      %s67 = sphi 0, %s67
      %s69 = sphi 0, %s67
      %s70 = sphi 0, %s69
      %s84 = sphi 0, %s70
    $region4: #{dense_layer_forward.4} parent=1 // loop_header_branch
      %15 = sbr.rel (%p13) target = $region8
    $region5: #{dense_layer_forward.4} parent=1 // loop_body
      %s17 = ssub.s32 %s12, 1
      %s18 = ssub.s32 %s12, 2
      %s19 = sadd.s32 %s12, 1
      %s20 = ssub.s32 %s12, %s19
      %p21 = scmp.eq.s32.totalorder %s20, 0
      %s23 = sadd.s32 %s22, 1
      %s24 = scalar_select %p21, %s22, %s23
      %p27 = pneg %p21
      %p28 = scmp.eq.s32.totalorder %s12, 1
      %p29 = por %p27, %p28
      %p30 = scmp.ne.s32.totalorder %s22, %s25
      %p31 = scmp.eq.s32.totalorder %s12, 0
      %p32 = por %p30, %p31
      %p33 = scmp.ne.s32.totalorder %s22, %s25
      %p34 = scmp.eq.s32.totalorder %s17, 1
      %p35 = por %p33, %p34
      %p36 = scmp.ne.s32.totalorder %s25, %s26
      %p37 = scmp.eq.s32.totalorder %s17, 0
      %p38 = por %p36, %p37
      %p39 = scmp.ne.s32.totalorder %s25, %s26
      %p40 = scmp.eq.s32.totalorder %s18, 1
      %p41 = por %p39, %p40
      %p43 = scmp.ne.s32.totalorder %s26, %s42
      %p44 = scmp.eq.s32.totalorder %s18, 0
      %p45 = por %p43, %p44
      %s47 = sadd.s32 %s46, 1
      %p50 = scmp.eq.s32.totalorder %s12, 1
      %p51 = scmp.ne.s32.totalorder %s46, %s48
      %p52 = scmp.eq.s32.totalorder %s12, 0
      %p53 = por %p51, %p52
      %p54 = scmp.ne.s32.totalorder %s46, %s48
      %p55 = scmp.eq.s32.totalorder %s17, 1
      %p56 = por %p54, %p55
      %p57 = scmp.ne.s32.totalorder %s48, %s49
      %p58 = scmp.eq.s32.totalorder %s17, 0
      %p59 = por %p57, %p58
      %p60 = scmp.ne.s32.totalorder %s48, %s49
      %p61 = scmp.eq.s32.totalorder %s18, 1
      %p62 = por %p60, %p61
      %p64 = scmp.ne.s32.totalorder %s49, %s63
      %p65 = scmp.eq.s32.totalorder %s18, 0
      %p66 = por %p64, %p65
      %s68 = sadd.s32 %s67, 1
      %p71 = scmp.eq.s32.totalorder %s12, 1
      %p72 = scmp.ne.s32.totalorder %s67, %s69
      %p73 = scmp.eq.s32.totalorder %s12, 0
      %p74 = por %p72, %p73
      %p75 = scmp.ne.s32.totalorder %s67, %s69
      %p76 = scmp.eq.s32.totalorder %s17, 1
      %p77 = por %p75, %p76
      %p78 = scmp.ne.s32.totalorder %s69, %s70
      %p79 = scmp.eq.s32.totalorder %s17, 0
      %p80 = por %p78, %p79
      %p81 = scmp.ne.s32.totalorder %s69, %s70
      %p82 = scmp.eq.s32.totalorder %s18, 1
      %p83 = por %p81, %p82
      %p85 = scmp.ne.s32.totalorder %s70, %s84
      %p86 = scmp.eq.s32.totalorder %s18, 0
      %p87 = por %p85, %p86
      %p88 = scmp.le.s32.totalorder 1, %s12
      %p89 = scmp.lt.s32.totalorder %s12, 3
      %p90 = pnand %p88, %p89
      %p91 = pneg %p90
      // Predicated region
      $region9: #{dense_layer_forward.4} parent=5 // pred_check
        _
      $region10: #{dense_layer_forward.4} parent=5 // pred_check_branch
        %93 = sbr.rel (%p90) target = $region12
      $region11: #{dense_layer_forward.4} parent=5 // pred_region
        %s94 = ssub.s32 %s12, 1
      $region12: #{dense_layer_forward.4} parent=5 // pred_fallthru
        _
      %p95 = scmp.lt.s32.totalorder %s12, 2
      // Predicated region
      $region13: #{dense_layer_forward.4} parent=5 // pred_check
        %p96 = pneg %p95
      $region14: #{dense_layer_forward.4} parent=5 // pred_check_branch
        %98 = sbr.rel (%p96) target = $region16
      $region15: #{dense_layer_forward.4} parent=5 // pred_region
        // Predicated region
        $region17: #{dense_layer_forward.4} parent=15 // pred_check
          %p99 = pneg %p32
        $region18: #{dense_layer_forward.4} parent=15 // pred_check_branch
          %101 = sbr.rel (%p99) target = $region20
        $region19: #{dense_layer_forward.4} parent=15 // pred_region
          %s102 = sand.u32 %s22, 1
          %s103 = scalar_lea.sflag [#allocation3], %s102
          %s104 = sand.u32 %s22, 1
          %s105 = smul.addr %s104, 256
          %s106 = scalar_lea.vmem [#allocation2], %s105
          %s107 = smul.u32 32, %s12
          %s109 = ssub.s32 4096, 4096
          %110 = vsyncadd %s103, %s109
          %s111 = smul.addr %s107, 128
          %s112 = scalar_lea.hbm %s0, %s111
          %s113 = sshll.u32 %s106, 4
          %s114 = int_to_ptr.vmem [resolvable:$true] %s113
          %119 = dma.hbm_to_vmem [thread:$0]  %s112, 4096, %s114, %s103, 128, 128, 8
        $region20: #{dense_layer_forward.4} parent=15 // pred_fallthru
          _
      $region16: #{dense_layer_forward.4} parent=5 // pred_fallthru
        _
      %p120 = scmp.le.s32.totalorder 1, %s12
      %p121 = scmp.lt.s32.totalorder %s12, 3
      %p122 = pnand %p120, %p121
      %p123 = pneg %p122
      // Predicated region
      $region21: #{dense_layer_forward.4} parent=5 // pred_check
        _
      $region22: #{dense_layer_forward.4} parent=5 // pred_check_branch
        %125 = sbr.rel (%p122) target = $region24
      $region23: #{dense_layer_forward.4} parent=5 // pred_region
        %s126 = ssub.s32 %s12, 1
        %s127 = sand.u32 %s25, 1
        %s128 = scalar_lea.sflag [#allocation3], %s127
        %s129 = sand.u32 %s25, 1
        %s130 = smul.addr %s129, 256
        %s131 = scalar_lea.vmem [#allocation2], %s130
        // Predicated region
        $region25: #{dense_layer_forward.4} parent=23 // pred_check
          %p132 = pneg %p38
        $region26: #{dense_layer_forward.4} parent=23 // pred_check_branch
          %134 = sbr.rel (%p132) target = $region28
        $region27: #{dense_layer_forward.4} parent=23 // pred_region
          %135 = dma.done %s128, 4096
        $region28: #{dense_layer_forward.4} parent=23 // pred_fallthru
          _
        %s136 = sand.u32 %s25, 1
        %s137 = scalar_lea.sflag [#allocation3], %s136
        %s138 = sand.u32 %s25, 1
        %s139 = smul.addr %s138, 256
        %s140 = scalar_lea.vmem [#allocation2], %s139
        %p141 = pneg %p38
        %p142 = pneg %p35
        %p143 = pneg %p59
        %p144 = pneg %p56
        %p145 = pneg %p80
        %p146 = pneg %p77
        %s147 = smul.u32 32, %s17
        %p148 = scmp.eq.s32.totalorder %s17, 0
        // Predicated region
        $region29: #{dense_layer_forward.4} parent=23 // pred_check
          %p149 = pneg %p148
        $region30: #{dense_layer_forward.4} parent=23 // pred_check_branch
          %151 = sbr.rel (%p149) target = $region32
        $region31: #{dense_layer_forward.4} parent=23 // pred_region
          %vm152 = vcmask 516096
          %153 = vst.msk [vmem:[%s1] sm:$0x1] %vm152, 0.0
          %154 = vst.msk [vmem:[%s2] sm:$0x1] %vm152, 0.0
        $region32: #{dense_layer_forward.4} parent=23 // pred_fallthru
          _
        %v155 = vld [vmem:[%s131] sm:$0xff]
        %v156 = vld [vmem:[%s131 + $0x8] sm:$0xff]
        %v157 = vld [vmem:[%s131 + $0x10] sm:$0xff]
        %v158 = vld [vmem:[%s131 + $0x18] sm:$0xff]
        %v159 = vld [vmem:[%s131 + $0x20] sm:$0xff]
        %v160 = vld [vmem:[%s131 + $0x28] sm:$0xff]
        %v161 = vld [vmem:[%s131 + $0x30] sm:$0xff]
        %v162 = vld [vmem:[%s131 + $0x38] sm:$0xff]
        %v163 = vld [vmem:[%s131 + $0x40] sm:$0xff]
        %v164 = vld [vmem:[%s131 + $0x48] sm:$0xff]
        %v165 = vld [vmem:[%s131 + $0x50] sm:$0xff]
        %v166 = vld [vmem:[%s131 + $0x58] sm:$0xff]
        %v167 = vld [vmem:[%s131 + $0x60] sm:$0xff]
        %v168 = vld [vmem:[%s131 + $0x68] sm:$0xff]
        %v169 = vld [vmem:[%s131 + $0x70] sm:$0xff]
        %v170 = vld [vmem:[%s131 + $0x78] sm:$0xff]
        %v171 = vld [vmem:[%s131 + $0x80] sm:$0xff]
        %v172 = vld [vmem:[%s131 + $0x88] sm:$0xff]
        %v173 = vld [vmem:[%s131 + $0x90] sm:$0xff]
        %v174 = vld [vmem:[%s131 + $0x98] sm:$0xff]
        %v175 = vld [vmem:[%s131 + $0xa0] sm:$0xff]
        %v176 = vld [vmem:[%s131 + $0xa8] sm:$0xff]
        %v177 = vld [vmem:[%s131 + $0xb0] sm:$0xff]
        %v178 = vld [vmem:[%s131 + $0xb8] sm:$0xff]
        %v179 = vld [vmem:[%s131 + $0xc0] sm:$0xff]
        %v180 = vld [vmem:[%s131 + $0xc8] sm:$0xff]
        %v181 = vld [vmem:[%s131 + $0xd0] sm:$0xff]
        %v182 = vld [vmem:[%s131 + $0xd8] sm:$0xff]
        %v183 = vld [vmem:[%s131 + $0xe0] sm:$0xff]
        %v184 = vld [vmem:[%s131 + $0xe8] sm:$0xff]
        %v185 = vld [vmem:[%s131 + $0xf0] sm:$0xff]
        %v186 = vld [vmem:[%s131 + $0xf8] sm:$0xff]
        %v187 = vld [vmem:[%s1] sm:$0x1]
        %vm188 = vcmask 523264
        %v189 = vsel %vm188, %v155, 0.0
        %v190 = vsel %vm188, %v156, 0.0
        %v191 = vadd.f32 %v189, %v190
        %v192 = vsel %vm188, %v157, 0.0
        %v193 = vadd.f32 %v191, %v192
        %v194 = vsel %vm188, %v158, 0.0
        %v195 = vadd.f32 %v193, %v194
        %v196 = vsel %vm188, %v159, 0.0
        %v197 = vadd.f32 %v195, %v196
        %v198 = vsel %vm188, %v160, 0.0
        %v199 = vadd.f32 %v197, %v198
        %v200 = vsel %vm188, %v161, 0.0
        %v201 = vadd.f32 %v199, %v200
        %v202 = vsel %vm188, %v162, 0.0
        %v203 = vadd.f32 %v201, %v202
        %v204 = vsel %vm188, %v163, 0.0
        %v205 = vadd.f32 %v203, %v204
        %v206 = vsel %vm188, %v164, 0.0
        %v207 = vadd.f32 %v205, %v206
        %v208 = vsel %vm188, %v165, 0.0
        %v209 = vadd.f32 %v207, %v208
        %v210 = vsel %vm188, %v166, 0.0
        %v211 = vadd.f32 %v209, %v210
        %v212 = vsel %vm188, %v167, 0.0
        %v213 = vadd.f32 %v211, %v212
        %v214 = vsel %vm188, %v168, 0.0
        %v215 = vadd.f32 %v213, %v214
        %v216 = vsel %vm188, %v169, 0.0
        %v217 = vadd.f32 %v215, %v216
        %v218 = vsel %vm188, %v170, 0.0
        %v219 = vadd.f32 %v217, %v218
        %v220 = vsel %vm188, %v171, 0.0
        %v221 = vadd.f32 %v219, %v220
        %v222 = vsel %vm188, %v172, 0.0
        %v223 = vadd.f32 %v221, %v222
        %v224 = vsel %vm188, %v173, 0.0
        %v225 = vadd.f32 %v223, %v224
        %v226 = vsel %vm188, %v174, 0.0
        %v227 = vadd.f32 %v225, %v226
        %v228 = vsel %vm188, %v175, 0.0
        %v229 = vadd.f32 %v227, %v228
        %v230 = vsel %vm188, %v176, 0.0
        %v231 = vadd.f32 %v229, %v230
        %v232 = vsel %vm188, %v177, 0.0
        %v233 = vadd.f32 %v231, %v232
        %v234 = vsel %vm188, %v178, 0.0
        %v235 = vadd.f32 %v233, %v234
        %v236 = vsel %vm188, %v179, 0.0
        %v237 = vadd.f32 %v235, %v236
        %v238 = vsel %vm188, %v180, 0.0
        %v239 = vadd.f32 %v237, %v238
        %v240 = vsel %vm188, %v181, 0.0
        %v241 = vadd.f32 %v239, %v240
        %v242 = vsel %vm188, %v182, 0.0
        %v243 = vadd.f32 %v241, %v242
        %v244 = vsel %vm188, %v183, 0.0
        %v245 = vadd.f32 %v243, %v244
        %v246 = vsel %vm188, %v184, 0.0
        %v247 = vadd.f32 %v245, %v246
        %v248 = vsel %vm188, %v185, 0.0
        %v249 = vadd.f32 %v247, %v248
        %v250 = vsel %vm188, %v186, 0.0
        %v251 = vadd.f32 %v249, %v250
        %v252 = vrot.slane %v251, 4
        %v253 = vadd.f32 %v251, %v252
        %v254 = vrot.slane %v253, 2
        %v255 = vadd.f32 %v253, %v254
        %v256 = vrot.slane %v255, 1
        %v257 = vadd.f32 %v255, %v256
        %v258 = vadd.f32 %v187, %v257
        %vm259 = vcmask 516096
        %260 = vst.msk [vmem:[%s1] sm:$0x1] %vm259, %v258
        %v261 = vld [vmem:[%s2] sm:$0x1]
        %v262 = vmul.f32 %v155, %v155
        %v263 = vmul.f32 %v156, %v156
        %v264 = vmul.f32 %v157, %v157
        %v265 = vmul.f32 %v158, %v158
        %v266 = vmul.f32 %v159, %v159
        %v267 = vmul.f32 %v160, %v160
        %v268 = vmul.f32 %v161, %v161
        %v269 = vmul.f32 %v162, %v162
        %v270 = vmul.f32 %v163, %v163
        %v271 = vmul.f32 %v164, %v164
        %v272 = vmul.f32 %v165, %v165
        %v273 = vmul.f32 %v166, %v166
        %v274 = vmul.f32 %v167, %v167
        %v275 = vmul.f32 %v168, %v168
        %v276 = vmul.f32 %v169, %v169
        %v277 = vmul.f32 %v170, %v170
        %v278 = vmul.f32 %v171, %v171
        %v279 = vmul.f32 %v172, %v172
        %v280 = vmul.f32 %v173, %v173
        %v281 = vmul.f32 %v174, %v174
        %v282 = vmul.f32 %v175, %v175
        %v283 = vmul.f32 %v176, %v176
        %v284 = vmul.f32 %v177, %v177
        %v285 = vmul.f32 %v178, %v178
        %v286 = vmul.f32 %v179, %v179
        %v287 = vmul.f32 %v180, %v180
        %v288 = vmul.f32 %v181, %v181
        %v289 = vmul.f32 %v182, %v182
        %v290 = vmul.f32 %v183, %v183
        %v291 = vmul.f32 %v184, %v184
        %v292 = vmul.f32 %v185, %v185
        %v293 = vmul.f32 %v186, %v186
        %v294 = vsel %vm188, %v262, 0.0
        %v295 = vsel %vm188, %v263, 0.0
        %v296 = vadd.f32 %v294, %v295
        %v297 = vsel %vm188, %v264, 0.0
        %v298 = vadd.f32 %v296, %v297
        %v299 = vsel %vm188, %v265, 0.0
        %v300 = vadd.f32 %v298, %v299
        %v301 = vsel %vm188, %v266, 0.0
        %v302 = vadd.f32 %v300, %v301
        %v303 = vsel %vm188, %v267, 0.0
        %v304 = vadd.f32 %v302, %v303
        %v305 = vsel %vm188, %v268, 0.0
        %v306 = vadd.f32 %v304, %v305
        %v307 = vsel %vm188, %v269, 0.0
        %v308 = vadd.f32 %v306, %v307
        %v309 = vsel %vm188, %v270, 0.0
        %v310 = vadd.f32 %v308, %v309
        %v311 = vsel %vm188, %v271, 0.0
        %v312 = vadd.f32 %v310, %v311
        %v313 = vsel %vm188, %v272, 0.0
        %v314 = vadd.f32 %v312, %v313
        %v315 = vsel %vm188, %v273, 0.0
        %v316 = vadd.f32 %v314, %v315
        %v317 = vsel %vm188, %v274, 0.0
        %v318 = vadd.f32 %v316, %v317
        %v319 = vsel %vm188, %v275, 0.0
        %v320 = vadd.f32 %v318, %v319
        %v321 = vsel %vm188, %v276, 0.0
        %v322 = vadd.f32 %v320, %v321
        %v323 = vsel %vm188, %v277, 0.0
        %v324 = vadd.f32 %v322, %v323
        %v325 = vsel %vm188, %v278, 0.0
        %v326 = vadd.f32 %v324, %v325
        %v327 = vsel %vm188, %v279, 0.0
        %v328 = vadd.f32 %v326, %v327
        %v329 = vsel %vm188, %v280, 0.0
        %v330 = vadd.f32 %v328, %v329
        %v331 = vsel %vm188, %v281, 0.0
        %v332 = vadd.f32 %v330, %v331
        %v333 = vsel %vm188, %v282, 0.0
        %v334 = vadd.f32 %v332, %v333
        %v335 = vsel %vm188, %v283, 0.0
        %v336 = vadd.f32 %v334, %v335
        %v337 = vsel %vm188, %v284, 0.0
        %v338 = vadd.f32 %v336, %v337
        %v339 = vsel %vm188, %v285, 0.0
        %v340 = vadd.f32 %v338, %v339
        %v341 = vsel %vm188, %v286, 0.0
        %v342 = vadd.f32 %v340, %v341
        %v343 = vsel %vm188, %v287, 0.0
        %v344 = vadd.f32 %v342, %v343
        %v345 = vsel %vm188, %v288, 0.0
        %v346 = vadd.f32 %v344, %v345
        %v347 = vsel %vm188, %v289, 0.0
        %v348 = vadd.f32 %v346, %v347
        %v349 = vsel %vm188, %v290, 0.0
        %v350 = vadd.f32 %v348, %v349
        %v351 = vsel %vm188, %v291, 0.0
        %v352 = vadd.f32 %v350, %v351
        %v353 = vsel %vm188, %v292, 0.0
        %v354 = vadd.f32 %v352, %v353
        %v355 = vsel %vm188, %v293, 0.0
        %v356 = vadd.f32 %v354, %v355
        %v357 = vrot.slane %v356, 4
        %v358 = vadd.f32 %v356, %v357
        %v359 = vrot.slane %v358, 2
        %v360 = vadd.f32 %v358, %v359
        %v361 = vrot.slane %v360, 1
        %v362 = vadd.f32 %v360, %v361
        %v363 = vadd.f32 %v261, %v362
        %364 = vst.msk [vmem:[%s2] sm:$0x1] %vm259, %v363
        // Predicated region
        $region33: #{dense_layer_forward.4} parent=23 // pred_check
          %p365 = pneg %p56
        $region34: #{dense_layer_forward.4} parent=23 // pred_check_branch
          %367 = sbr.rel (%p365) target = $region36
        $region35: #{dense_layer_forward.4} parent=23 // pred_region
          _
        $region36: #{dense_layer_forward.4} parent=23 // pred_fallthru
          _
        // Predicated region
        $region37: #{dense_layer_forward.4} parent=23 // pred_check
          %p368 = pneg %p77
        $region38: #{dense_layer_forward.4} parent=23 // pred_check_branch
          %370 = sbr.rel (%p368) target = $region40
        $region39: #{dense_layer_forward.4} parent=23 // pred_region
          _
        $region40: #{dense_layer_forward.4} parent=23 // pred_fallthru
          _
        // Predicated region
        $region41: #{dense_layer_forward.4} parent=23 // pred_check
          %p371 = pneg %p56
        $region42: #{dense_layer_forward.4} parent=23 // pred_check_branch
          %373 = sbr.rel (%p371) target = $region44
        $region43: #{dense_layer_forward.4} parent=23 // pred_region
          _
        $region44: #{dense_layer_forward.4} parent=23 // pred_fallthru
          _
        // Predicated region
        $region45: #{dense_layer_forward.4} parent=23 // pred_check
          %p374 = pneg %p77
        $region46: #{dense_layer_forward.4} parent=23 // pred_check_branch
          %376 = sbr.rel (%p374) target = $region48
        $region47: #{dense_layer_forward.4} parent=23 // pred_region
          _
        $region48: #{dense_layer_forward.4} parent=23 // pred_fallthru
          _
      $region24: #{dense_layer_forward.4} parent=5 // pred_fallthru
        _
      %p377 = scmp.le.s32.totalorder 2, %s12
      // Predicated region
      $region49: #{dense_layer_forward.4} parent=5 // pred_check
        %p378 = pneg %p377
      $region50: #{dense_layer_forward.4} parent=5 // pred_check_branch
        %380 = sbr.rel (%p378) target = $region52
      $region51: #{dense_layer_forward.4} parent=5 // pred_region
        %s381 = ssub.s32 %s12, 2
      $region52: #{dense_layer_forward.4} parent=5 // pred_fallthru
        _
    $region6: #{dense_layer_forward.4} parent=1 // loop_footer
      %s16 = sadd.s32 1, %s12
    $region7: #{dense_layer_forward.4} parent=1 // loop_footer_branch
      %11 = sbr.rel target = $region3
    $region8: #{dense_layer_forward.4} parent=1 // loop_exit
      _
    %382 = vsyncpa [#allocation3], 1
    %s383 = scalar_lea.sflag [#allocation3], 1
    %384 = vsyncpa %s383, 1

// kernel: dense_layer_forward.6
$region0: #{dense_layer_forward.6}
  #allocation0 [shape = 'u32[]', space=smem, size = 0x4, offset = 0x4, fixed_abs, tag = 'smem constant byte address 0x4 - core index']
  #allocation1 [shape = 'u32[144,128]{1,0:T(1,128)}', space=vmem, size = 0x12000, scoped, tag = 'internal scratch']
  %s0 = inlined_call_operand.vmem [shape: f32[512,128], index: 0, kind: input, shape index: {}]
  %s1 = inlined_call_operand.vmem [shape: f32[1,128], index: 1, kind: output, shape index: {0}]
  %s2 = inlined_call_operand.vmem [shape: f32[1,128], index: 2, kind: output, shape index: {1}]
  %3 = xla_tuple %s1, %s2
  %s4 = sld [smem:[#allocation0]]
  $region49: #{dense_layer_forward.6} parent=0
    _
  %s6 = ssub.s32 1, %s4
  %s7 = scalar_select 0, %s6, %s4
  loop: start=0, step=1, limit=4
  $region2: #{dense_layer_forward.6} parent=0 // loop_pre_header
    _
  $region3: #{dense_layer_forward.6} parent=0 // loop_header
    %s9 = sphi 0, %s13
    %p10 = scmp.ge.s32.totalorder %s9, 4
    %s19 = sphi 0, %s21
    %s22 = sphi 0, %s19
    %s23 = sphi 0, %s22
    %s39 = sphi 0, %s23
    %s43 = sphi 0, %s43
    %s45 = sphi 0, %s43
    %s46 = sphi 0, %s45
    %s60 = sphi 0, %s46
    %s64 = sphi 0, %s64
    %s66 = sphi 0, %s64
    %s67 = sphi 0, %s66
    %s81 = sphi 0, %s67
  $region4: #{dense_layer_forward.6} parent=0 // loop_header_branch
    %12 = sbr.rel (%p10) target = $region8
  $region5: #{dense_layer_forward.6} parent=0 // loop_body
    %s14 = ssub.s32 %s9, 1
    %s15 = ssub.s32 %s9, 2
    %s16 = sadd.s32 %s9, 1
    %s17 = ssub.s32 %s9, %s16
    %p18 = scmp.eq.s32.totalorder %s17, 0
    %s20 = sadd.s32 %s19, 1
    %s21 = scalar_select %p18, %s19, %s20
    %p24 = pneg %p18
    %p25 = scmp.eq.s32.totalorder %s9, 1
    %p26 = por %p24, %p25
    %p27 = scmp.ne.s32.totalorder %s19, %s22
    %p28 = scmp.eq.s32.totalorder %s9, 0
    %p29 = por %p27, %p28
    %p30 = scmp.ne.s32.totalorder %s19, %s22
    %p31 = scmp.eq.s32.totalorder %s14, 1
    %p32 = por %p30, %p31
    %p33 = scmp.ne.s32.totalorder %s22, %s23
    %p34 = scmp.eq.s32.totalorder %s14, 0
    %p35 = por %p33, %p34
    %p36 = scmp.ne.s32.totalorder %s22, %s23
    %p37 = scmp.eq.s32.totalorder %s15, 1
    %p38 = por %p36, %p37
    %p40 = scmp.ne.s32.totalorder %s23, %s39
    %p41 = scmp.eq.s32.totalorder %s15, 0
    %p42 = por %p40, %p41
    %s44 = sadd.s32 %s43, 1
    %p47 = scmp.eq.s32.totalorder %s9, 1
    %p48 = scmp.ne.s32.totalorder %s43, %s45
    %p49 = scmp.eq.s32.totalorder %s9, 0
    %p50 = por %p48, %p49
    %p51 = scmp.ne.s32.totalorder %s43, %s45
    %p52 = scmp.eq.s32.totalorder %s14, 1
    %p53 = por %p51, %p52
    %p54 = scmp.ne.s32.totalorder %s45, %s46
    %p55 = scmp.eq.s32.totalorder %s14, 0
    %p56 = por %p54, %p55
    %p57 = scmp.ne.s32.totalorder %s45, %s46
    %p58 = scmp.eq.s32.totalorder %s15, 1
    %p59 = por %p57, %p58
    %p61 = scmp.ne.s32.totalorder %s46, %s60
    %p62 = scmp.eq.s32.totalorder %s15, 0
    %p63 = por %p61, %p62
    %s65 = sadd.s32 %s64, 1
    %p68 = scmp.eq.s32.totalorder %s9, 1
    %p69 = scmp.ne.s32.totalorder %s64, %s66
    %p70 = scmp.eq.s32.totalorder %s9, 0
    %p71 = por %p69, %p70
    %p72 = scmp.ne.s32.totalorder %s64, %s66
    %p73 = scmp.eq.s32.totalorder %s14, 1
    %p74 = por %p72, %p73
    %p75 = scmp.ne.s32.totalorder %s66, %s67
    %p76 = scmp.eq.s32.totalorder %s14, 0
    %p77 = por %p75, %p76
    %p78 = scmp.ne.s32.totalorder %s66, %s67
    %p79 = scmp.eq.s32.totalorder %s15, 1
    %p80 = por %p78, %p79
    %p82 = scmp.ne.s32.totalorder %s67, %s81
    %p83 = scmp.eq.s32.totalorder %s15, 0
    %p84 = por %p82, %p83
    %p85 = scmp.le.s32.totalorder 1, %s9
    %p86 = scmp.lt.s32.totalorder %s9, 3
    %p87 = pnand %p85, %p86
    %p88 = pneg %p87
    // Predicated region
    $region9: #{dense_layer_forward.6} parent=5 // pred_check
      _
    $region10: #{dense_layer_forward.6} parent=5 // pred_check_branch
      %90 = sbr.rel (%p87) target = $region12
    $region11: #{dense_layer_forward.6} parent=5 // pred_region
      %s91 = ssub.s32 %s9, 1
    $region12: #{dense_layer_forward.6} parent=5 // pred_fallthru
      _
    %p92 = scmp.lt.s32.totalorder %s9, 2
    // Predicated region
    $region13: #{dense_layer_forward.6} parent=5 // pred_check
      %p93 = pneg %p92
    $region14: #{dense_layer_forward.6} parent=5 // pred_check_branch
      %95 = sbr.rel (%p93) target = $region16
    $region15: #{dense_layer_forward.6} parent=5 // pred_region
      // Predicated region
      $region17: #{dense_layer_forward.6} parent=15 // pred_check
        %p96 = pneg %p29
      $region18: #{dense_layer_forward.6} parent=15 // pred_check_branch
        %98 = sbr.rel (%p96) target = $region20
      $region19: #{dense_layer_forward.6} parent=15 // pred_region
        %s99 = smul.u32 32, %s9
        %p100 = scmp.lt.s32.totalorder %s99, 63
        %s101 = scalar_select %p100, %s99, 63
        %s102 = smul.addr %s101, 8
        %s103 = scalar_lea.vmem %s0, %s102
        %s104 = smul.u32 32, %s9
      $region20: #{dense_layer_forward.6} parent=15 // pred_fallthru
        _
    $region16: #{dense_layer_forward.6} parent=5 // pred_fallthru
      _
    %p105 = scmp.le.s32.totalorder 1, %s9
    %p106 = scmp.lt.s32.totalorder %s9, 3
    %p107 = pnand %p105, %p106
    %p108 = pneg %p107
    // Predicated region
    $region21: #{dense_layer_forward.6} parent=5 // pred_check
      _
    $region22: #{dense_layer_forward.6} parent=5 // pred_check_branch
      %110 = sbr.rel (%p107) target = $region24
    $region23: #{dense_layer_forward.6} parent=5 // pred_region
      %s111 = ssub.s32 %s9, 1
      %s112 = smul.u32 32, %s14
      %p113 = scmp.lt.s32.totalorder %s112, 63
      %s114 = scalar_select %p113, %s112, 63
      %s115 = smul.addr %s114, 8
      %s116 = scalar_lea.vmem %s0, %s115
      %p117 = pneg %p35
      %p118 = pneg %p32
      %p119 = pneg %p56
      %p120 = pneg %p53
      %p121 = pneg %p77
      %p122 = pneg %p74
      %s123 = smul.u32 32, %s14
      %p124 = scmp.lt.s32.totalorder %s123, 63
      %s125 = scalar_select %p124, %s123, 63
      %s126 = smul.addr %s125, 8
      %s127 = scalar_lea.vmem %s0, %s126
      %s128 = smul.u32 32, %s14
      %p129 = scmp.eq.s32.totalorder %s14, 0
      // Predicated region
      $region25: #{dense_layer_forward.6} parent=23 // pred_check
        %p130 = pneg %p129
      $region26: #{dense_layer_forward.6} parent=23 // pred_check_branch
        %132 = sbr.rel (%p130) target = $region28
      $region27: #{dense_layer_forward.6} parent=23 // pred_region
        %133 = vst [vmem:[%s1] sm:$0x1] 0.0
        %134 = vst [vmem:[%s2] sm:$0x1] 0.0
      $region28: #{dense_layer_forward.6} parent=23 // pred_fallthru
        _
      %v135 = vld [vmem:[%s127] sm:$0xff]
      %v136 = vld [vmem:[%s127 + $0x8] sm:$0xff]
      %v137 = vld [vmem:[%s127 + $0x10] sm:$0xff]
      %v138 = vld [vmem:[%s127 + $0x18] sm:$0xff]
      %v139 = vld [vmem:[%s127 + $0x20] sm:$0xff]
      %v140 = vld [vmem:[%s127 + $0x28] sm:$0xff]
      %v141 = vld [vmem:[%s127 + $0x30] sm:$0xff]
      %v142 = vld [vmem:[%s127 + $0x38] sm:$0xff]
      %v143 = vld [vmem:[%s127 + $0x40] sm:$0xff]
      %v144 = vld [vmem:[%s127 + $0x48] sm:$0xff]
      %v145 = vld [vmem:[%s127 + $0x50] sm:$0xff]
      %v146 = vld [vmem:[%s127 + $0x58] sm:$0xff]
      %v147 = vld [vmem:[%s127 + $0x60] sm:$0xff]
      %v148 = vld [vmem:[%s127 + $0x68] sm:$0xff]
      %v149 = vld [vmem:[%s127 + $0x70] sm:$0xff]
      %v150 = vld [vmem:[%s127 + $0x78] sm:$0xff]
      %v151 = vld [vmem:[%s127 + $0x80] sm:$0xff]
      %v152 = vld [vmem:[%s127 + $0x88] sm:$0xff]
      %v153 = vld [vmem:[%s127 + $0x90] sm:$0xff]
      %v154 = vld [vmem:[%s127 + $0x98] sm:$0xff]
      %v155 = vld [vmem:[%s127 + $0xa0] sm:$0xff]
      %v156 = vld [vmem:[%s127 + $0xa8] sm:$0xff]
      %v157 = vld [vmem:[%s127 + $0xb0] sm:$0xff]
      %v158 = vld [vmem:[%s127 + $0xb8] sm:$0xff]
      %v159 = vld [vmem:[%s127 + $0xc0] sm:$0xff]
      %v160 = vld [vmem:[%s127 + $0xc8] sm:$0xff]
      %v161 = vld [vmem:[%s127 + $0xd0] sm:$0xff]
      %v162 = vld [vmem:[%s127 + $0xd8] sm:$0xff]
      %v163 = vld [vmem:[%s127 + $0xe0] sm:$0xff]
      %v164 = vld [vmem:[%s127 + $0xe8] sm:$0xff]
      %v165 = vld [vmem:[%s127 + $0xf0] sm:$0xff]
      %v166 = vld [vmem:[%s127 + $0xf8] sm:$0xff]
      %v167 = vld [vmem:[%s1] sm:$0x1]
      %v168 = vadd.f32 %v135, %v136
      %v169 = vadd.f32 %v168, %v137
      %v170 = vadd.f32 %v169, %v138
      %v171 = vadd.f32 %v170, %v139
      %v172 = vadd.f32 %v171, %v140
      %v173 = vadd.f32 %v172, %v141
      %v174 = vadd.f32 %v173, %v142
      %v175 = vadd.f32 %v174, %v143
      %v176 = vadd.f32 %v175, %v144
      %v177 = vadd.f32 %v176, %v145
      %v178 = vadd.f32 %v177, %v146
      %v179 = vadd.f32 %v178, %v147
      %v180 = vadd.f32 %v179, %v148
      %v181 = vadd.f32 %v180, %v149
      %v182 = vadd.f32 %v181, %v150
      %v183 = vadd.f32 %v182, %v151
      %v184 = vadd.f32 %v183, %v152
      %v185 = vadd.f32 %v184, %v153
      %v186 = vadd.f32 %v185, %v154
      %v187 = vadd.f32 %v186, %v155
      %v188 = vadd.f32 %v187, %v156
      %v189 = vadd.f32 %v188, %v157
      %v190 = vadd.f32 %v189, %v158
      %v191 = vadd.f32 %v190, %v159
      %v192 = vadd.f32 %v191, %v160
      %v193 = vadd.f32 %v192, %v161
      %v194 = vadd.f32 %v193, %v162
      %v195 = vadd.f32 %v194, %v163
      %v196 = vadd.f32 %v195, %v164
      %v197 = vadd.f32 %v196, %v165
      %v198 = vadd.f32 %v197, %v166
      %v199 = vrot.slane %v198, 4
      %v200 = vadd.f32 %v198, %v199
      %v201 = vrot.slane %v200, 2
      %v202 = vadd.f32 %v200, %v201
      %v203 = vrot.slane %v202, 1
      %v204 = vadd.f32 %v202, %v203
      %v205 = vadd.f32 %v167, %v204
      %206 = vst [vmem:[%s1] sm:$0x1] %v205
      %v207 = vld [vmem:[%s2] sm:$0x1]
      %v208 = vmul.f32 %v135, %v135
      %v209 = vmul.f32 %v136, %v136
      %v210 = vmul.f32 %v137, %v137
      %v211 = vmul.f32 %v138, %v138
      %v212 = vmul.f32 %v139, %v139
      %v213 = vmul.f32 %v140, %v140
      %v214 = vmul.f32 %v141, %v141
      %v215 = vmul.f32 %v142, %v142
      %v216 = vmul.f32 %v143, %v143
      %v217 = vmul.f32 %v144, %v144
      %v218 = vmul.f32 %v145, %v145
      %v219 = vmul.f32 %v146, %v146
      %v220 = vmul.f32 %v147, %v147
      %v221 = vmul.f32 %v148, %v148
      %v222 = vmul.f32 %v149, %v149
      %v223 = vmul.f32 %v150, %v150
      %v224 = vmul.f32 %v151, %v151
      %v225 = vmul.f32 %v152, %v152
      %v226 = vmul.f32 %v153, %v153
      %v227 = vmul.f32 %v154, %v154
      %v228 = vmul.f32 %v155, %v155
      %v229 = vmul.f32 %v156, %v156
      %v230 = vmul.f32 %v157, %v157
      %v231 = vmul.f32 %v158, %v158
      %v232 = vmul.f32 %v159, %v159
      %v233 = vmul.f32 %v160, %v160
      %v234 = vmul.f32 %v161, %v161
      %v235 = vmul.f32 %v162, %v162
      %v236 = vmul.f32 %v163, %v163
      %v237 = vmul.f32 %v164, %v164
      %v238 = vmul.f32 %v165, %v165
      %v239 = vmul.f32 %v166, %v166
      %v240 = vadd.f32 %v208, %v209
      %v241 = vadd.f32 %v240, %v210
      %v242 = vadd.f32 %v241, %v211
      %v243 = vadd.f32 %v242, %v212
      %v244 = vadd.f32 %v243, %v213
      %v245 = vadd.f32 %v244, %v214
      %v246 = vadd.f32 %v245, %v215
      %v247 = vadd.f32 %v246, %v216
      %v248 = vadd.f32 %v247, %v217
      %v249 = vadd.f32 %v248, %v218
      %v250 = vadd.f32 %v249, %v219
      %v251 = vadd.f32 %v250, %v220
      %v252 = vadd.f32 %v251, %v221
      %v253 = vadd.f32 %v252, %v222
      %v254 = vadd.f32 %v253, %v223
      %v255 = vadd.f32 %v254, %v224
      %v256 = vadd.f32 %v255, %v225
      %v257 = vadd.f32 %v256, %v226
      %v258 = vadd.f32 %v257, %v227
      %v259 = vadd.f32 %v258, %v228
      %v260 = vadd.f32 %v259, %v229
      %v261 = vadd.f32 %v260, %v230
      %v262 = vadd.f32 %v261, %v231
      %v263 = vadd.f32 %v262, %v232
      %v264 = vadd.f32 %v263, %v233
      %v265 = vadd.f32 %v264, %v234
      %v266 = vadd.f32 %v265, %v235
      %v267 = vadd.f32 %v266, %v236
      %v268 = vadd.f32 %v267, %v237
      %v269 = vadd.f32 %v268, %v238
      %v270 = vadd.f32 %v269, %v239
      %v271 = vrot.slane %v270, 4
      %v272 = vadd.f32 %v270, %v271
      %v273 = vrot.slane %v272, 2
      %v274 = vadd.f32 %v272, %v273
      %v275 = vrot.slane %v274, 1
      %v276 = vadd.f32 %v274, %v275
      %v277 = vadd.f32 %v207, %v276
      %278 = vst [vmem:[%s2] sm:$0x1] %v277
      // Predicated region
      $region29: #{dense_layer_forward.6} parent=23 // pred_check
        %p279 = pneg %p53
      $region30: #{dense_layer_forward.6} parent=23 // pred_check_branch
        %281 = sbr.rel (%p279) target = $region32
      $region31: #{dense_layer_forward.6} parent=23 // pred_region
        _
      $region32: #{dense_layer_forward.6} parent=23 // pred_fallthru
        _
      // Predicated region
      $region33: #{dense_layer_forward.6} parent=23 // pred_check
        %p282 = pneg %p74
      $region34: #{dense_layer_forward.6} parent=23 // pred_check_branch
        %284 = sbr.rel (%p282) target = $region36
      $region35: #{dense_layer_forward.6} parent=23 // pred_region
        _
      $region36: #{dense_layer_forward.6} parent=23 // pred_fallthru
        _
      // Predicated region
      $region37: #{dense_layer_forward.6} parent=23 // pred_check
        %p285 = pneg %p53
      $region38: #{dense_layer_forward.6} parent=23 // pred_check_branch
        %287 = sbr.rel (%p285) target = $region40
      $region39: #{dense_layer_forward.6} parent=23 // pred_region
        _
      $region40: #{dense_layer_forward.6} parent=23 // pred_fallthru
        _
      // Predicated region
      $region41: #{dense_layer_forward.6} parent=23 // pred_check
        %p288 = pneg %p74
      $region42: #{dense_layer_forward.6} parent=23 // pred_check_branch
        %290 = sbr.rel (%p288) target = $region44
      $region43: #{dense_layer_forward.6} parent=23 // pred_region
        _
      $region44: #{dense_layer_forward.6} parent=23 // pred_fallthru
        _
    $region24: #{dense_layer_forward.6} parent=5 // pred_fallthru
      _
    %p291 = scmp.le.s32.totalorder 2, %s9
    // Predicated region
    $region45: #{dense_layer_forward.6} parent=5 // pred_check
      %p292 = pneg %p291
    $region46: #{dense_layer_forward.6} parent=5 // pred_check_branch
      %294 = sbr.rel (%p292) target = $region48
    $region47: #{dense_layer_forward.6} parent=5 // pred_region
      %s295 = ssub.s32 %s9, 2
    $region48: #{dense_layer_forward.6} parent=5 // pred_fallthru
      _
  $region6: #{dense_layer_forward.6} parent=0 // loop_footer
    %s13 = sadd.s32 1, %s9
  $region7: #{dense_layer_forward.6} parent=0 // loop_footer_branch
    %8 = sbr.rel target = $region3
  $region8: #{dense_layer_forward.6} parent=0 // loop_exit
    _

// kernel: dense_layer_forward.5
$region0: #{dense_layer_forward.5}
  #allocation0 [shape = 'u32[]', space=smem, size = 0x4, offset = 0x4, fixed_abs, tag = 'smem constant byte address 0x4 - core index']
  #allocation1 [shape = 'u32[144,128]{1,0:T(1,128)}', space=vmem, size = 0x12000, scoped, tag = 'internal scratch']
  %s0 = inlined_call_operand.vmem [shape: f32[512,64], index: 0, kind: input, shape index: {}]
  %s1 = inlined_call_operand.vmem [shape: f32[1,64], index: 1, kind: input, shape index: {}]
  %s2 = inlined_call_operand.vmem [shape: f32[1,64], index: 2, kind: input, shape index: {}]
  %s3 = inlined_call_operand.vmem [shape: f32[1,64], index: 3, kind: input, shape index: {}]
  %s4 = inlined_call_operand.vmem [shape: f32[1,64], index: 4, kind: input, shape index: {}]
  %s5 = inlined_call_operand.vmem [shape: bf16[64,128], index: 5, kind: input, shape index: {}]
  %s6 = inlined_call_operand.vmem [shape: f32[512,128], index: 6, kind: output, shape index: {}]
  %s7 = sld [smem:[#allocation0]]
  $region57: #{dense_layer_forward.5} parent=0
    _
  %s9 = ssub.s32 1, %s7
  %s10 = scalar_select 0, %s9, %s7
  loop: start=0, step=1, limit=4
  $region2: #{dense_layer_forward.5} parent=0 // loop_pre_header
    _
  $region3: #{dense_layer_forward.5} parent=0 // loop_header
    %s12 = sphi 0, %s16
    %p13 = scmp.ge.s32.totalorder %s12, 4
    %s22 = sphi 0, %s24
    %s25 = sphi 0, %s22
    %s26 = sphi 0, %s25
    %s42 = sphi 0, %s26
    %s46 = sphi 0, %s46
    %s48 = sphi 0, %s46
    %s49 = sphi 0, %s48
    %s63 = sphi 0, %s49
    %s67 = sphi 0, %s67
    %s69 = sphi 0, %s67
    %s70 = sphi 0, %s69
    %s84 = sphi 0, %s70
    %s88 = sphi 0, %s88
    %s90 = sphi 0, %s88
    %s91 = sphi 0, %s90
    %s105 = sphi 0, %s91
    %s109 = sphi 0, %s109
    %s111 = sphi 0, %s109
    %s112 = sphi 0, %s111
    %s126 = sphi 0, %s112
    %s130 = sphi 0, %s130
    %s132 = sphi 0, %s130
    %s133 = sphi 0, %s132
    %s147 = sphi 0, %s133
    %s153 = sphi 0, %s155
    %s156 = sphi 0, %s153
    %s157 = sphi 0, %s156
    %s173 = sphi 0, %s157
  $region4: #{dense_layer_forward.5} parent=0 // loop_header_branch
    %15 = sbr.rel (%p13) target = $region8
  $region5: #{dense_layer_forward.5} parent=0 // loop_body
    %s17 = ssub.s32 %s12, 1
    %s18 = ssub.s32 %s12, 2
    %s19 = sadd.s32 %s12, 1
    %s20 = ssub.s32 %s12, %s19
    %p21 = scmp.eq.s32.totalorder %s20, 0
    %s23 = sadd.s32 %s22, 1
    %s24 = scalar_select %p21, %s22, %s23
    %p27 = pneg %p21
    %p28 = scmp.eq.s32.totalorder %s12, 1
    %p29 = por %p27, %p28
    %p30 = scmp.ne.s32.totalorder %s22, %s25
    %p31 = scmp.eq.s32.totalorder %s12, 0
    %p32 = por %p30, %p31
    %p33 = scmp.ne.s32.totalorder %s22, %s25
    %p34 = scmp.eq.s32.totalorder %s17, 1
    %p35 = por %p33, %p34
    %p36 = scmp.ne.s32.totalorder %s25, %s26
    %p37 = scmp.eq.s32.totalorder %s17, 0
    %p38 = por %p36, %p37
    %p39 = scmp.ne.s32.totalorder %s25, %s26
    %p40 = scmp.eq.s32.totalorder %s18, 1
    %p41 = por %p39, %p40
    %p43 = scmp.ne.s32.totalorder %s26, %s42
    %p44 = scmp.eq.s32.totalorder %s18, 0
    %p45 = por %p43, %p44
    %s47 = sadd.s32 %s46, 1
    %p50 = scmp.eq.s32.totalorder %s12, 1
    %p51 = scmp.ne.s32.totalorder %s46, %s48
    %p52 = scmp.eq.s32.totalorder %s12, 0
    %p53 = por %p51, %p52
    %p54 = scmp.ne.s32.totalorder %s46, %s48
    %p55 = scmp.eq.s32.totalorder %s17, 1
    %p56 = por %p54, %p55
    %p57 = scmp.ne.s32.totalorder %s48, %s49
    %p58 = scmp.eq.s32.totalorder %s17, 0
    %p59 = por %p57, %p58
    %p60 = scmp.ne.s32.totalorder %s48, %s49
    %p61 = scmp.eq.s32.totalorder %s18, 1
    %p62 = por %p60, %p61
    %p64 = scmp.ne.s32.totalorder %s49, %s63
    %p65 = scmp.eq.s32.totalorder %s18, 0
    %p66 = por %p64, %p65
    %s68 = sadd.s32 %s67, 1
    %p71 = scmp.eq.s32.totalorder %s12, 1
    %p72 = scmp.ne.s32.totalorder %s67, %s69
    %p73 = scmp.eq.s32.totalorder %s12, 0
    %p74 = por %p72, %p73
    %p75 = scmp.ne.s32.totalorder %s67, %s69
    %p76 = scmp.eq.s32.totalorder %s17, 1
    %p77 = por %p75, %p76
    %p78 = scmp.ne.s32.totalorder %s69, %s70
    %p79 = scmp.eq.s32.totalorder %s17, 0
    %p80 = por %p78, %p79
    %p81 = scmp.ne.s32.totalorder %s69, %s70
    %p82 = scmp.eq.s32.totalorder %s18, 1
    %p83 = por %p81, %p82
    %p85 = scmp.ne.s32.totalorder %s70, %s84
    %p86 = scmp.eq.s32.totalorder %s18, 0
    %p87 = por %p85, %p86
    %s89 = sadd.s32 %s88, 1
    %p92 = scmp.eq.s32.totalorder %s12, 1
    %p93 = scmp.ne.s32.totalorder %s88, %s90
    %p94 = scmp.eq.s32.totalorder %s12, 0
    %p95 = por %p93, %p94
    %p96 = scmp.ne.s32.totalorder %s88, %s90
    %p97 = scmp.eq.s32.totalorder %s17, 1
    %p98 = por %p96, %p97
    %p99 = scmp.ne.s32.totalorder %s90, %s91
    %p100 = scmp.eq.s32.totalorder %s17, 0
    %p101 = por %p99, %p100
    %p102 = scmp.ne.s32.totalorder %s90, %s91
    %p103 = scmp.eq.s32.totalorder %s18, 1
    %p104 = por %p102, %p103
    %p106 = scmp.ne.s32.totalorder %s91, %s105
    %p107 = scmp.eq.s32.totalorder %s18, 0
    %p108 = por %p106, %p107
    %s110 = sadd.s32 %s109, 1
    %p113 = scmp.eq.s32.totalorder %s12, 1
    %p114 = scmp.ne.s32.totalorder %s109, %s111
    %p115 = scmp.eq.s32.totalorder %s12, 0
    %p116 = por %p114, %p115
    %p117 = scmp.ne.s32.totalorder %s109, %s111
    %p118 = scmp.eq.s32.totalorder %s17, 1
    %p119 = por %p117, %p118
    %p120 = scmp.ne.s32.totalorder %s111, %s112
    %p121 = scmp.eq.s32.totalorder %s17, 0
    %p122 = por %p120, %p121
    %p123 = scmp.ne.s32.totalorder %s111, %s112
    %p124 = scmp.eq.s32.totalorder %s18, 1
    %p125 = por %p123, %p124
    %p127 = scmp.ne.s32.totalorder %s112, %s126
    %p128 = scmp.eq.s32.totalorder %s18, 0
    %p129 = por %p127, %p128
    %s131 = sadd.s32 %s130, 1
    %p134 = scmp.eq.s32.totalorder %s12, 1
    %p135 = scmp.ne.s32.totalorder %s130, %s132
    %p136 = scmp.eq.s32.totalorder %s12, 0
    %p137 = por %p135, %p136
    %p138 = scmp.ne.s32.totalorder %s130, %s132
    %p139 = scmp.eq.s32.totalorder %s17, 1
    %p140 = por %p138, %p139
    %p141 = scmp.ne.s32.totalorder %s132, %s133
    %p142 = scmp.eq.s32.totalorder %s17, 0
    %p143 = por %p141, %p142
    %p144 = scmp.ne.s32.totalorder %s132, %s133
    %p145 = scmp.eq.s32.totalorder %s18, 1
    %p146 = por %p144, %p145
    %p148 = scmp.ne.s32.totalorder %s133, %s147
    %p149 = scmp.eq.s32.totalorder %s18, 0
    %p150 = por %p148, %p149
    %s151 = ssub.s32 %s12, %s19
    %p152 = scmp.eq.s32.totalorder %s151, 0
    %s154 = sadd.s32 %s153, 1
    %s155 = scalar_select %p152, %s153, %s154
    %p158 = pneg %p152
    %p159 = scmp.eq.s32.totalorder %s12, 1
    %p160 = por %p158, %p159
    %p161 = scmp.ne.s32.totalorder %s153, %s156
    %p162 = scmp.eq.s32.totalorder %s12, 0
    %p163 = por %p161, %p162
    %p164 = scmp.ne.s32.totalorder %s153, %s156
    %p165 = scmp.eq.s32.totalorder %s17, 1
    %p166 = por %p164, %p165
    %p167 = scmp.ne.s32.totalorder %s156, %s157
    %p168 = scmp.eq.s32.totalorder %s17, 0
    %p169 = por %p167, %p168
    %p170 = scmp.ne.s32.totalorder %s156, %s157
    %p171 = scmp.eq.s32.totalorder %s18, 1
    %p172 = por %p170, %p171
    %p174 = scmp.ne.s32.totalorder %s157, %s173
    %p175 = scmp.eq.s32.totalorder %s18, 0
    %p176 = por %p174, %p175
    %p177 = scmp.le.s32.totalorder 1, %s12
    %p178 = scmp.lt.s32.totalorder %s12, 3
    %p179 = pnand %p177, %p178
    %p180 = pneg %p179
    // Predicated region
    $region9: #{dense_layer_forward.5} parent=5 // pred_check
      _
    $region10: #{dense_layer_forward.5} parent=5 // pred_check_branch
      %182 = sbr.rel (%p179) target = $region12
    $region11: #{dense_layer_forward.5} parent=5 // pred_region
      %s183 = ssub.s32 %s12, 1
      // Predicated region
      $region13: #{dense_layer_forward.5} parent=11 // pred_check
        %p184 = pneg %p59
      $region14: #{dense_layer_forward.5} parent=11 // pred_check_branch
        %186 = sbr.rel (%p184) target = $region16
      $region15: #{dense_layer_forward.5} parent=11 // pred_region
        _
      $region16: #{dense_layer_forward.5} parent=11 // pred_fallthru
        _
      // Predicated region
      $region17: #{dense_layer_forward.5} parent=11 // pred_check
        %p187 = pneg %p80
      $region18: #{dense_layer_forward.5} parent=11 // pred_check_branch
        %189 = sbr.rel (%p187) target = $region20
      $region19: #{dense_layer_forward.5} parent=11 // pred_region
        _
      $region20: #{dense_layer_forward.5} parent=11 // pred_fallthru
        _
      // Predicated region
      $region21: #{dense_layer_forward.5} parent=11 // pred_check
        %p190 = pneg %p101
      $region22: #{dense_layer_forward.5} parent=11 // pred_check_branch
        %192 = sbr.rel (%p190) target = $region24
      $region23: #{dense_layer_forward.5} parent=11 // pred_region
        _
      $region24: #{dense_layer_forward.5} parent=11 // pred_fallthru
        _
      // Predicated region
      $region25: #{dense_layer_forward.5} parent=11 // pred_check
        %p193 = pneg %p122
      $region26: #{dense_layer_forward.5} parent=11 // pred_check_branch
        %195 = sbr.rel (%p193) target = $region28
      $region27: #{dense_layer_forward.5} parent=11 // pred_region
        _
      $region28: #{dense_layer_forward.5} parent=11 // pred_fallthru
        _
      // Predicated region
      $region29: #{dense_layer_forward.5} parent=11 // pred_check
        %p196 = pneg %p143
      $region30: #{dense_layer_forward.5} parent=11 // pred_check_branch
        %198 = sbr.rel (%p196) target = $region32
      $region31: #{dense_layer_forward.5} parent=11 // pred_region
        _
      $region32: #{dense_layer_forward.5} parent=11 // pred_fallthru
        _
    $region12: #{dense_layer_forward.5} parent=5 // pred_fallthru
      _
    %p199 = scmp.lt.s32.totalorder %s12, 2
    // Predicated region
    $region33: #{dense_layer_forward.5} parent=5 // pred_check
      %p200 = pneg %p199
    $region34: #{dense_layer_forward.5} parent=5 // pred_check_branch
      %202 = sbr.rel (%p200) target = $region36
    $region35: #{dense_layer_forward.5} parent=5 // pred_region
      // Predicated region
      $region37: #{dense_layer_forward.5} parent=35 // pred_check
        %p203 = pneg %p32
      $region38: #{dense_layer_forward.5} parent=35 // pred_check_branch
        %205 = sbr.rel (%p203) target = $region40
      $region39: #{dense_layer_forward.5} parent=35 // pred_region
        %s206 = smul.u32 32, %s12
        %p207 = scmp.lt.s32.totalorder %s206, 63
        %s208 = scalar_select %p207, %s206, 63
        %s209 = smul.addr %s208, 8
        %s210 = scalar_lea.vmem %s0, %s209
        %s211 = smul.u32 32, %s12
      $region40: #{dense_layer_forward.5} parent=35 // pred_fallthru
        _
    $region36: #{dense_layer_forward.5} parent=5 // pred_fallthru
      _
    %p212 = scmp.le.s32.totalorder 1, %s12
    %p213 = scmp.lt.s32.totalorder %s12, 3
    %p214 = pnand %p212, %p213
    %p215 = pneg %p214
    // Predicated region
    $region41: #{dense_layer_forward.5} parent=5 // pred_check
      _
    $region42: #{dense_layer_forward.5} parent=5 // pred_check_branch
      %217 = sbr.rel (%p214) target = $region44
    $region43: #{dense_layer_forward.5} parent=5 // pred_region
      %s218 = ssub.s32 %s12, 1
      %s219 = smul.u32 32, %s17
      %p220 = scmp.lt.s32.totalorder %s219, 63
      %s221 = scalar_select %p220, %s219, 63
      %s222 = smul.addr %s221, 8
      %s223 = scalar_lea.vmem %s0, %s222
      %p224 = pneg %p38
      %p225 = pneg %p35
      %p226 = pneg %p59
      %p227 = pneg %p56
      %p228 = pneg %p80
      %p229 = pneg %p77
      %p230 = pneg %p101
      %p231 = pneg %p98
      %p232 = pneg %p122
      %p233 = pneg %p119
      %p234 = pneg %p143
      %p235 = pneg %p140
      %p236 = pneg %p169
      %p237 = pneg %p166
      %s238 = smul.u32 32, %s17
      %p239 = scmp.lt.s32.totalorder %s238, 63
      %s240 = scalar_select %p239, %s238, 63
      %s241 = smul.addr %s240, 8
      %s242 = scalar_lea.vmem %s6, %s241
      %s243 = smul.u32 32, %s17
      %p244 = scmp.lt.s32.totalorder %s243, 63
      %s245 = scalar_select %p244, %s243, 63
      %s246 = smul.addr %s245, 8
      %s247 = scalar_lea.vmem %s0, %s246
      %s248 = smul.u32 32, %s17
      %s249 = smul.u32 32, %s17
      %p250 = scmp.lt.s32.totalorder %s249, 63
      %s251 = scalar_select %p250, %s249, 63
      %s252 = smul.addr %s251, 8
      %s253 = scalar_lea.vmem %s6, %s252
      %s254 = smul.u32 32, %s17
      %v256 = vld [vmem:[%s1] sm:$0x1]
      %v257 = vmul.f32 %v256, 0.001953125
      %v258 = vld [vmem:[%s2] sm:$0x1]
      %v259 = vmul.f32 %v258, 0.001953125
      %v260 = vmul.f32 %v257, %v257
      %v261 = vsub.f32 %v259, %v260
      %v262 = vld [vmem:[%s3] sm:$0x1]
      %v263 = vadd.f32 %v261, 1e-05
      %v264 = vrsqrt.pop %v263
      %v265 = vmul.f32 %v262, %v264
      %v266 = vld [vmem:[%s4] sm:$0x1]
      %v267 = vmul.f32 %v257, %v265
      %v268 = vsub.f32 %v266, %v267
      %v269 = vld [vmem:[%s247] sm:$0xff]
      %v270 = vld [vmem:[%s247 + $0x8] sm:$0xff]
      %v271 = vld [vmem:[%s247 + $0x10] sm:$0xff]
      %v272 = vld [vmem:[%s247 + $0x18] sm:$0xff]
      %v273 = vld [vmem:[%s247 + $0x20] sm:$0xff]
      %v274 = vld [vmem:[%s247 + $0x28] sm:$0xff]
      %v275 = vld [vmem:[%s247 + $0x30] sm:$0xff]
      %v276 = vld [vmem:[%s247 + $0x38] sm:$0xff]
      %v277 = vld [vmem:[%s247 + $0x40] sm:$0xff]
      %v278 = vld [vmem:[%s247 + $0x48] sm:$0xff]
      %v279 = vld [vmem:[%s247 + $0x50] sm:$0xff]
      %v280 = vld [vmem:[%s247 + $0x58] sm:$0xff]
      %v281 = vld [vmem:[%s247 + $0x60] sm:$0xff]
      %v282 = vld [vmem:[%s247 + $0x68] sm:$0xff]
      %v283 = vld [vmem:[%s247 + $0x70] sm:$0xff]
      %v284 = vld [vmem:[%s247 + $0x78] sm:$0xff]
      %v285 = vld [vmem:[%s247 + $0x80] sm:$0xff]
      %v286 = vld [vmem:[%s247 + $0x88] sm:$0xff]
      %v287 = vld [vmem:[%s247 + $0x90] sm:$0xff]
      %v288 = vld [vmem:[%s247 + $0x98] sm:$0xff]
      %v289 = vld [vmem:[%s247 + $0xa0] sm:$0xff]
      %v290 = vld [vmem:[%s247 + $0xa8] sm:$0xff]
      %v291 = vld [vmem:[%s247 + $0xb0] sm:$0xff]
      %v292 = vld [vmem:[%s247 + $0xb8] sm:$0xff]
      %v293 = vld [vmem:[%s247 + $0xc0] sm:$0xff]
      %v294 = vld [vmem:[%s247 + $0xc8] sm:$0xff]
      %v295 = vld [vmem:[%s247 + $0xd0] sm:$0xff]
      %v296 = vld [vmem:[%s247 + $0xd8] sm:$0xff]
      %v297 = vld [vmem:[%s247 + $0xe0] sm:$0xff]
      %v298 = vld [vmem:[%s247 + $0xe8] sm:$0xff]
      %v299 = vld [vmem:[%s247 + $0xf0] sm:$0xff]
      %v300 = vld [vmem:[%s247 + $0xf8] sm:$0xff]
      %v302 = vlaneseq
      %v303 = vshrl.u32 %v302, 7
      %v304 = vsub.s32 0, %v303
      %v305 = vrot.slane %v265, %v304
      %v307 = vmul.f32 %v269, %v305
      %v308 = vmul.f32 %v270, %v305
      %v309 = vmul.f32 %v271, %v305
      %v310 = vmul.f32 %v272, %v305
      %v311 = vmul.f32 %v273, %v305
      %v312 = vmul.f32 %v274, %v305
      %v313 = vmul.f32 %v275, %v305
      %v314 = vmul.f32 %v276, %v305
      %v315 = vmul.f32 %v277, %v305
      %v316 = vmul.f32 %v278, %v305
      %v317 = vmul.f32 %v279, %v305
      %v318 = vmul.f32 %v280, %v305
      %v319 = vmul.f32 %v281, %v305
      %v320 = vmul.f32 %v282, %v305
      %v321 = vmul.f32 %v283, %v305
      %v322 = vmul.f32 %v284, %v305
      %v323 = vmul.f32 %v285, %v305
      %v324 = vmul.f32 %v286, %v305
      %v325 = vmul.f32 %v287, %v305
      %v326 = vmul.f32 %v288, %v305
      %v327 = vmul.f32 %v289, %v305
      %v328 = vmul.f32 %v290, %v305
      %v329 = vmul.f32 %v291, %v305
      %v330 = vmul.f32 %v292, %v305
      %v331 = vmul.f32 %v293, %v305
      %v332 = vmul.f32 %v294, %v305
      %v333 = vmul.f32 %v295, %v305
      %v334 = vmul.f32 %v296, %v305
      %v335 = vmul.f32 %v297, %v305
      %v336 = vmul.f32 %v298, %v305
      %v337 = vmul.f32 %v299, %v305
      %v338 = vmul.f32 %v300, %v305
      %v340 = vlaneseq
      %v341 = vshrl.u32 %v340, 7
      %v342 = vsub.s32 0, %v341
      %v343 = vrot.slane %v268, %v342
      %v345 = vadd.f32 %v307, %v343
      %v346 = vadd.f32 %v308, %v343
      %v347 = vadd.f32 %v309, %v343
      %v348 = vadd.f32 %v310, %v343
      %v349 = vadd.f32 %v311, %v343
      %v350 = vadd.f32 %v312, %v343
      %v351 = vadd.f32 %v313, %v343
      %v352 = vadd.f32 %v314, %v343
      %v353 = vadd.f32 %v315, %v343
      %v354 = vadd.f32 %v316, %v343
      %v355 = vadd.f32 %v317, %v343
      %v356 = vadd.f32 %v318, %v343
      %v357 = vadd.f32 %v319, %v343
      %v358 = vadd.f32 %v320, %v343
      %v359 = vadd.f32 %v321, %v343
      %v360 = vadd.f32 %v322, %v343
      %v361 = vadd.f32 %v323, %v343
      %v362 = vadd.f32 %v324, %v343
      %v363 = vadd.f32 %v325, %v343
      %v364 = vadd.f32 %v326, %v343
      %v365 = vadd.f32 %v327, %v343
      %v366 = vadd.f32 %v328, %v343
      %v367 = vadd.f32 %v329, %v343
      %v368 = vadd.f32 %v330, %v343
      %v369 = vadd.f32 %v331, %v343
      %v370 = vadd.f32 %v332, %v343
      %v371 = vadd.f32 %v333, %v343
      %v372 = vadd.f32 %v334, %v343
      %v373 = vadd.f32 %v335, %v343
      %v374 = vadd.f32 %v336, %v343
      %v375 = vadd.f32 %v337, %v343
      %v376 = vadd.f32 %v338, %v343
      %v377 = vmax.f32 %v345, 0.0
      %v378 = vmax.f32 %v346, 0.0
      %v379 = vmax.f32 %v347, 0.0
      %v380 = vmax.f32 %v348, 0.0
      %v381 = vmax.f32 %v349, 0.0
      %v382 = vmax.f32 %v350, 0.0
      %v383 = vmax.f32 %v351, 0.0
      %v384 = vmax.f32 %v352, 0.0
      %v385 = vmax.f32 %v353, 0.0
      %v386 = vmax.f32 %v354, 0.0
      %v387 = vmax.f32 %v355, 0.0
      %v388 = vmax.f32 %v356, 0.0
      %v389 = vmax.f32 %v357, 0.0
      %v390 = vmax.f32 %v358, 0.0
      %v391 = vmax.f32 %v359, 0.0
      %v392 = vmax.f32 %v360, 0.0
      %v393 = vmax.f32 %v361, 0.0
      %v394 = vmax.f32 %v362, 0.0
      %v395 = vmax.f32 %v363, 0.0
      %v396 = vmax.f32 %v364, 0.0
      %v397 = vmax.f32 %v365, 0.0
      %v398 = vmax.f32 %v366, 0.0
      %v399 = vmax.f32 %v367, 0.0
      %v400 = vmax.f32 %v368, 0.0
      %v401 = vmax.f32 %v369, 0.0
      %v402 = vmax.f32 %v370, 0.0
      %v403 = vmax.f32 %v371, 0.0
      %v404 = vmax.f32 %v372, 0.0
      %v405 = vmax.f32 %v373, 0.0
      %v406 = vmax.f32 %v374, 0.0
      %v407 = vmax.f32 %v375, 0.0
      %v408 = vmax.f32 %v376, 0.0
      %v409 = vpack.c.bf16 %v378, %v377
      %v410 = vpack.c.bf16 %v380, %v379
      %v411 = vpack.c.bf16 %v382, %v381
      %v412 = vpack.c.bf16 %v384, %v383
      %v413 = vpack.c.bf16 %v386, %v385
      %v414 = vpack.c.bf16 %v388, %v387
      %v415 = vpack.c.bf16 %v390, %v389
      %v416 = vpack.c.bf16 %v392, %v391
      %v417 = vpack.c.bf16 %v394, %v393
      %v418 = vpack.c.bf16 %v396, %v395
      %v419 = vpack.c.bf16 %v398, %v397
      %v420 = vpack.c.bf16 %v400, %v399
      %v421 = vpack.c.bf16 %v402, %v401
      %v422 = vpack.c.bf16 %v404, %v403
      %v423 = vpack.c.bf16 %v406, %v405
      %v424 = vpack.c.bf16 %v408, %v407
      %v425 = vld [vmem:[%s5] sm:$0xf]
      %v426 = vld [vmem:[%s5 + $0x4] sm:$0xf]
      %v427 = vld [vmem:[%s5 + $0x8] sm:$0xf]
      %v428 = vld [vmem:[%s5 + $0xc] sm:$0xf]
      %v429 = vld [vmem:[%s5 + $0x10] sm:$0xf]
      %v430 = vld [vmem:[%s5 + $0x14] sm:$0xf]
      %v431 = vld [vmem:[%s5 + $0x18] sm:$0xf]
      %v432 = vld [vmem:[%s5 + $0x1c] sm:$0xf]
      %v441 = vunpack.c.l.b16 %v425
      %v442 = vunpack.c.l.b16 %v426
      %v443 = vunpack.c.l.b16 %v427
      %v444 = vunpack.c.l.b16 %v428
      %v445 = vunpack.c.l.b16 %v429
      %v446 = vunpack.c.l.b16 %v430
      %v447 = vunpack.c.l.b16 %v431
      %v448 = vunpack.c.l.b16 %v432
      %v449 = vpack.c.b16 %v442, %v441
      %v450 = vpack.c.b16 %v444, %v443
      %v451 = vpack.c.b16 %v446, %v445
      %v452 = vpack.c.b16 %v448, %v447
      %vm457 = vcmask 523264
      %v459 = vsel %vm457, %v409, 0
      %v462 = vsel %vm457, %v410, 0
      %v465 = vsel %vm457, %v411, 0
      %v468 = vsel %vm457, %v412, 0
      %v471 = vsel %vm457, %v413, 0
      %v474 = vsel %vm457, %v414, 0
      %v477 = vsel %vm457, %v415, 0
      %v480 = vsel %vm457, %v416, 0
      %v483 = vsel %vm457, %v417, 0
      %v486 = vsel %vm457, %v418, 0
      %v489 = vsel %vm457, %v419, 0
      %v492 = vsel %vm457, %v420, 0
      %v495 = vsel %vm457, %v421, 0
      %v498 = vsel %vm457, %v422, 0
      %v501 = vsel %vm457, %v423, 0
      %v504 = vsel %vm457, %v424, 0
      %506 = vmatprep.subr.bf16.mxu0 0
      %507 = vmatpush1.bf16.msra.mxu0 %v449
      %508 = vmatprep.subr.bf16.mxu0 0
      %509 = vmatpush1.bf16.msra.mxu0 %v450
      %510 = vmatprep.subr.bf16.mxu0 0
      %511 = vmatpush1.bf16.msra.mxu0 %v451
      %512 = vmatprep.subr.bf16.mxu0 0
      %513 = vmatpush1.bf16.msra.mxu0 %v452
      %514 = vmatprep.subr.bf16.mxu0 0
      %515 = vmatpush1.bf16.msra.mxu0 0
      %516 = vmatprep.subr.bf16.mxu0 0
      %517 = vmatpush1.bf16.msra.mxu0 0
      %518 = vmatprep.subr.bf16.mxu0 0
      %519 = vmatpush1.bf16.msra.mxu0 0
      %520 = vmatprep.subr.bf16.mxu0 0
      %521 = vmatpush1.bf16.msra.mxu0 0
      %522 = vmatprep.subr.bf16.mxu0 0
      %523 = vmatpush1.bf16.msra.mxu0 0
      %524 = vmatprep.subr.bf16.mxu0 0
      %525 = vmatpush1.bf16.msra.mxu0 0
      %526 = vmatprep.subr.bf16.mxu0 0
      %527 = vmatpush1.bf16.msra.mxu0 0
      %528 = vmatprep.subr.bf16.mxu0 0
      %529 = vmatpush1.bf16.msra.mxu0 0
      %530 = vmatprep.subr.bf16.mxu0 0
      %531 = vmatpush1.bf16.msra.mxu0 0
      %532 = vmatprep.subr.bf16.mxu0 0
      %533 = vmatpush1.bf16.msra.mxu0 0
      %534 = vmatprep.subr.bf16.mxu0 0
      %535 = vmatpush1.bf16.msra.mxu0 0
      %536 = vmatprep.subr.bf16.mxu0 0
      %537 = vmatpush1.bf16.msra.mxu0 0
      %538 = vmatprep.mubr.bf16.mxu0 0
      %539 = vmatmul.mubr.bf16.gmra.mrb[0].mxu0 %v459
      %v540 = vpop.f32.mrb[0].mxu0
      %v541 = vadd.f32 0.0, %v540
      %v542 = vpop.f32.mrb[0].mxu0
      %v543 = vpop.f32.mrb[0].mxu0
      %v544 = vadd.f32 0.0, %v543
      %v545 = vpop.f32.mrb[0].mxu0
      %546 = vmatprep.mubr.bf16.mxu0 0
      %547 = vmatmul.mubr.bf16.gmra.mrb[0].mxu0 %v462
      %v548 = vpop.f32.mrb[0].mxu0
      %v549 = vadd.f32 0.0, %v548
      %v550 = vpop.f32.mrb[0].mxu0
      %v551 = vpop.f32.mrb[0].mxu0
      %v552 = vadd.f32 0.0, %v551
      %v553 = vpop.f32.mrb[0].mxu0
      %554 = vmatprep.mubr.bf16.mxu0 0
      %555 = vmatmul.mubr.bf16.gmra.mrb[0].mxu0 %v465
      %v556 = vpop.f32.mrb[0].mxu0
      %v557 = vadd.f32 0.0, %v556
      %v558 = vpop.f32.mrb[0].mxu0
      %v559 = vpop.f32.mrb[0].mxu0
      %v560 = vadd.f32 0.0, %v559
      %v561 = vpop.f32.mrb[0].mxu0
      %562 = vmatprep.mubr.bf16.mxu0 0
      %563 = vmatmul.mubr.bf16.gmra.mrb[0].mxu0 %v468
      %v564 = vpop.f32.mrb[0].mxu0
      %v565 = vadd.f32 0.0, %v564
      %v566 = vpop.f32.mrb[0].mxu0
      %v567 = vpop.f32.mrb[0].mxu0
      %v568 = vadd.f32 0.0, %v567
      %v569 = vpop.f32.mrb[0].mxu0
      %570 = vmatprep.mubr.bf16.mxu0 0
      %571 = vmatmul.mubr.bf16.gmra.mrb[0].mxu0 %v471
      %v572 = vpop.f32.mrb[0].mxu0
      %v573 = vadd.f32 0.0, %v572
      %v574 = vpop.f32.mrb[0].mxu0
      %v575 = vpop.f32.mrb[0].mxu0
      %v576 = vadd.f32 0.0, %v575
      %v577 = vpop.f32.mrb[0].mxu0
      %578 = vmatprep.mubr.bf16.mxu0 0
      %579 = vmatmul.mubr.bf16.gmra.mrb[0].mxu0 %v474
      %v580 = vpop.f32.mrb[0].mxu0
      %v581 = vadd.f32 0.0, %v580
      %v582 = vpop.f32.mrb[0].mxu0
      %v583 = vpop.f32.mrb[0].mxu0
      %v584 = vadd.f32 0.0, %v583
      %v585 = vpop.f32.mrb[0].mxu0
      %586 = vmatprep.mubr.bf16.mxu0 0
      %587 = vmatmul.mubr.bf16.gmra.mrb[0].mxu0 %v477
      %v588 = vpop.f32.mrb[0].mxu0
      %v589 = vadd.f32 0.0, %v588
      %v590 = vpop.f32.mrb[0].mxu0
      %v591 = vpop.f32.mrb[0].mxu0
      %v592 = vadd.f32 0.0, %v591
      %v593 = vpop.f32.mrb[0].mxu0
      %594 = vmatprep.mubr.bf16.mxu0 0
      %595 = vmatmul.mubr.bf16.gmra.mrb[0].mxu0 %v480
      %v596 = vpop.f32.mrb[0].mxu0
      %v597 = vadd.f32 0.0, %v596
      %v598 = vpop.f32.mrb[0].mxu0
      %v599 = vpop.f32.mrb[0].mxu0
      %v600 = vadd.f32 0.0, %v599
      %v601 = vpop.f32.mrb[0].mxu0
      %602 = vmatprep.mubr.bf16.mxu0 0
      %603 = vmatmul.mubr.bf16.gmra.mrb[0].mxu0 %v483
      %v604 = vpop.f32.mrb[0].mxu0
      %v605 = vadd.f32 0.0, %v604
      %v606 = vpop.f32.mrb[0].mxu0
      %v607 = vpop.f32.mrb[0].mxu0
      %v608 = vadd.f32 0.0, %v607
      %v609 = vpop.f32.mrb[0].mxu0
      %610 = vmatprep.mubr.bf16.mxu0 0
      %611 = vmatmul.mubr.bf16.gmra.mrb[0].mxu0 %v486
      %v612 = vpop.f32.mrb[0].mxu0
      %v613 = vadd.f32 0.0, %v612
      %v614 = vpop.f32.mrb[0].mxu0
      %v615 = vpop.f32.mrb[0].mxu0
      %v616 = vadd.f32 0.0, %v615
      %v617 = vpop.f32.mrb[0].mxu0
      %618 = vmatprep.mubr.bf16.mxu0 0
      %619 = vmatmul.mubr.bf16.gmra.mrb[0].mxu0 %v489
      %v620 = vpop.f32.mrb[0].mxu0
      %v621 = vadd.f32 0.0, %v620
      %v622 = vpop.f32.mrb[0].mxu0
      %v623 = vpop.f32.mrb[0].mxu0
      %v624 = vadd.f32 0.0, %v623
      %v625 = vpop.f32.mrb[0].mxu0
      %626 = vmatprep.mubr.bf16.mxu0 0
      %627 = vmatmul.mubr.bf16.gmra.mrb[0].mxu0 %v492
      %v628 = vpop.f32.mrb[0].mxu0
      %v629 = vadd.f32 0.0, %v628
      %v630 = vpop.f32.mrb[0].mxu0
      %v631 = vpop.f32.mrb[0].mxu0
      %v632 = vadd.f32 0.0, %v631
      %v633 = vpop.f32.mrb[0].mxu0
      %634 = vmatprep.mubr.bf16.mxu0 0
      %635 = vmatmul.mubr.bf16.gmra.mrb[0].mxu0 %v495
      %v636 = vpop.f32.mrb[0].mxu0
      %v637 = vadd.f32 0.0, %v636
      %v638 = vpop.f32.mrb[0].mxu0
      %v639 = vpop.f32.mrb[0].mxu0
      %v640 = vadd.f32 0.0, %v639
      %v641 = vpop.f32.mrb[0].mxu0
      %642 = vmatprep.mubr.bf16.mxu0 0
      %643 = vmatmul.mubr.bf16.gmra.mrb[0].mxu0 %v498
      %v644 = vpop.f32.mrb[0].mxu0
      %v645 = vadd.f32 0.0, %v644
      %v646 = vpop.f32.mrb[0].mxu0
      %v647 = vpop.f32.mrb[0].mxu0
      %v648 = vadd.f32 0.0, %v647
      %v649 = vpop.f32.mrb[0].mxu0
      %650 = vmatprep.mubr.bf16.mxu0 0
      %651 = vmatmul.mubr.bf16.gmra.mrb[0].mxu0 %v501
      %v652 = vpop.f32.mrb[0].mxu0
      %v653 = vadd.f32 0.0, %v652
      %v654 = vpop.f32.mrb[0].mxu0
      %v655 = vpop.f32.mrb[0].mxu0
      %v656 = vadd.f32 0.0, %v655
      %v657 = vpop.f32.mrb[0].mxu0
      %658 = vmatprep.mubr.bf16.mxu0 0
      %659 = vmatmul.mubr.bf16.gmra.mrb[0].mxu0 %v504
      %v660 = vpop.f32.mrb[0].mxu0
      %v661 = vadd.f32 0.0, %v660
      %v662 = vpop.f32.mrb[0].mxu0
      %v663 = vpop.f32.mrb[0].mxu0
      %v664 = vadd.f32 0.0, %v663
      %v665 = vpop.f32.mrb[0].mxu0
      %666 = vdwg.mxu0
      %667 = vst [vmem:[%s253] sm:$0xff] %v541
      %668 = vst [vmem:[%s253 + $0x8] sm:$0xff] %v544
      %669 = vst [vmem:[%s253 + $0x10] sm:$0xff] %v549
      %670 = vst [vmem:[%s253 + $0x18] sm:$0xff] %v552
      %671 = vst [vmem:[%s253 + $0x20] sm:$0xff] %v557
      %672 = vst [vmem:[%s253 + $0x28] sm:$0xff] %v560
      %673 = vst [vmem:[%s253 + $0x30] sm:$0xff] %v565
      %674 = vst [vmem:[%s253 + $0x38] sm:$0xff] %v568
      %675 = vst [vmem:[%s253 + $0x40] sm:$0xff] %v573
      %676 = vst [vmem:[%s253 + $0x48] sm:$0xff] %v576
      %677 = vst [vmem:[%s253 + $0x50] sm:$0xff] %v581
      %678 = vst [vmem:[%s253 + $0x58] sm:$0xff] %v584
      %679 = vst [vmem:[%s253 + $0x60] sm:$0xff] %v589
      %680 = vst [vmem:[%s253 + $0x68] sm:$0xff] %v592
      %681 = vst [vmem:[%s253 + $0x70] sm:$0xff] %v597
      %682 = vst [vmem:[%s253 + $0x78] sm:$0xff] %v600
      %683 = vst [vmem:[%s253 + $0x80] sm:$0xff] %v605
      %684 = vst [vmem:[%s253 + $0x88] sm:$0xff] %v608
      %685 = vst [vmem:[%s253 + $0x90] sm:$0xff] %v613
      %686 = vst [vmem:[%s253 + $0x98] sm:$0xff] %v616
      %687 = vst [vmem:[%s253 + $0xa0] sm:$0xff] %v621
      %688 = vst [vmem:[%s253 + $0xa8] sm:$0xff] %v624
      %689 = vst [vmem:[%s253 + $0xb0] sm:$0xff] %v629
      %690 = vst [vmem:[%s253 + $0xb8] sm:$0xff] %v632
      %691 = vst [vmem:[%s253 + $0xc0] sm:$0xff] %v637
      %692 = vst [vmem:[%s253 + $0xc8] sm:$0xff] %v640
      %693 = vst [vmem:[%s253 + $0xd0] sm:$0xff] %v645
      %694 = vst [vmem:[%s253 + $0xd8] sm:$0xff] %v648
      %695 = vst [vmem:[%s253 + $0xe0] sm:$0xff] %v653
      %696 = vst [vmem:[%s253 + $0xe8] sm:$0xff] %v656
      %697 = vst [vmem:[%s253 + $0xf0] sm:$0xff] %v661
      %698 = vst [vmem:[%s253 + $0xf8] sm:$0xff] %v664
      %s699 = smul.u32 32, %s17
      %p700 = scmp.lt.s32.totalorder %s699, 63
      %s701 = scalar_select %p700, %s699, 63
      %s702 = smul.addr %s701, 8
      %s703 = scalar_lea.vmem %s6, %s702
      // Predicated region
      $region45: #{dense_layer_forward.5} parent=43 // pred_check
        %p704 = pneg %p166
      $region46: #{dense_layer_forward.5} parent=43 // pred_check_branch
        %706 = sbr.rel (%p704) target = $region48
      $region47: #{dense_layer_forward.5} parent=43 // pred_region
        %s707 = smul.u32 32, %s17
      $region48: #{dense_layer_forward.5} parent=43 // pred_fallthru
        _
    $region44: #{dense_layer_forward.5} parent=5 // pred_fallthru
      _
    %p708 = scmp.le.s32.totalorder 2, %s12
    // Predicated region
    $region49: #{dense_layer_forward.5} parent=5 // pred_check
      %p709 = pneg %p708
    $region50: #{dense_layer_forward.5} parent=5 // pred_check_branch
      %711 = sbr.rel (%p709) target = $region52
    $region51: #{dense_layer_forward.5} parent=5 // pred_region
      %s712 = ssub.s32 %s12, 2
      // Predicated region
      $region53: #{dense_layer_forward.5} parent=51 // pred_check
        %p713 = pneg %p172
      $region54: #{dense_layer_forward.5} parent=51 // pred_check_branch
        %715 = sbr.rel (%p713) target = $region56
      $region55: #{dense_layer_forward.5} parent=51 // pred_region
        %s716 = smul.u32 32, %s18
        %p717 = scmp.lt.s32.totalorder %s716, 63
        %s718 = scalar_select %p717, %s716, 63
        %s719 = smul.addr %s718, 8
        %s720 = scalar_lea.vmem %s6, %s719
      $region56: #{dense_layer_forward.5} parent=51 // pred_fallthru
        _
    $region52: #{dense_layer_forward.5} parent=5 // pred_fallthru
      _
  $region6: #{dense_layer_forward.5} parent=0 // loop_footer
    %s16 = sadd.s32 1, %s12
  $region7: #{dense_layer_forward.5} parent=0 // loop_footer_branch
    %11 = sbr.rel target = $region3
  $region8: #{dense_layer_forward.5} parent=0 // loop_exit
    _

// kernel: dense_layer_forward.7
$region0: #{dense_layer_forward.7}
  #allocation0 [shape = 'u32[]', space=smem, size = 0x4, offset = 0x4, fixed_abs, tag = 'smem constant byte address 0x4 - core index']
  #allocation1 [shape = 'u32[144,128]{1,0:T(1,128)}', space=vmem, size = 0x12000, scoped, tag = 'internal scratch']
  #allocation2 [shape = 'f32[18,18,128]{2,1,0:T(8,128)}', space=vmem, size = 0x36000, scoped, tag = 'scratch operand']
  %s0 = inlined_call_operand.vmem [shape: f32[2,16,16,128], index: 0, kind: input, shape index: {}]
  %s1 = inlined_call_operand.vmem [shape: f32[1,128], index: 1, kind: input, shape index: {}]
  %s2 = inlined_call_operand.vmem [shape: f32[1,128], index: 2, kind: input, shape index: {}]
  %s3 = inlined_call_operand.vmem [shape: f32[1,128], index: 3, kind: input, shape index: {}]
  %s4 = inlined_call_operand.vmem [shape: f32[1,128], index: 4, kind: input, shape index: {}]
  %s5 = inlined_call_operand.vmem [shape: bf16[9,128,32], index: 5, kind: input, shape index: {}]
  %s6 = inlined_call_operand.hbm [shape: f32[2,16,16,32], index: 6, kind: output, shape index: {}]
  %s7 = sld [smem:[#allocation0]]
  $region57: #{dense_layer_forward.7} parent=0
    _
  %s9 = ssub.s32 1, %s7
  %s10 = scalar_select 0, %s9, %s7
  $region1: #{dense_layer_forward.7} parent=0
    #allocation3 [shape = 'u8[262144]{0}', space=vmem, size = 0x40000, scoped, tag = 'output window, operand 0']
    #allocation4 [shape = 's32[2]{0}', space=sflag, size = 0x8, scoped, tag = 'scoped memory for dense_layer_forward.7']
    %11 = vsyncpa [#allocation4], 0
    %s12 = scalar_lea.sflag [#allocation4], 1
    %13 = vsyncpa %s12, 0
    loop: start=0, step=1, limit=4
    $region2: #{dense_layer_forward.7} parent=1 // loop_pre_header
      _
    $region3: #{dense_layer_forward.7} parent=1 // loop_header
      %s15 = sphi 0, %s19
      %p16 = scmp.ge.s32.totalorder %s15, 4
      %s25 = sphi 0, %s27
      %s28 = sphi 0, %s25
      %s29 = sphi 0, %s28
      %s45 = sphi 0, %s29
      %s49 = sphi 0, %s49
      %s51 = sphi 0, %s49
      %s52 = sphi 0, %s51
      %s66 = sphi 0, %s52
      %s70 = sphi 0, %s70
      %s72 = sphi 0, %s70
      %s73 = sphi 0, %s72
      %s87 = sphi 0, %s73
      %s91 = sphi 0, %s91
      %s93 = sphi 0, %s91
      %s94 = sphi 0, %s93
      %s108 = sphi 0, %s94
      %s112 = sphi 0, %s112
      %s114 = sphi 0, %s112
      %s115 = sphi 0, %s114
      %s129 = sphi 0, %s115
      %s133 = sphi 0, %s133
      %s135 = sphi 0, %s133
      %s136 = sphi 0, %s135
      %s150 = sphi 0, %s136
      %s156 = sphi 0, %s158
      %s159 = sphi 0, %s156
      %s160 = sphi 0, %s159
      %s176 = sphi 0, %s160
    $region4: #{dense_layer_forward.7} parent=1 // loop_header_branch
      %18 = sbr.rel (%p16) target = $region8
    $region5: #{dense_layer_forward.7} parent=1 // loop_body
      %s20 = ssub.s32 %s15, 1
      %s21 = ssub.s32 %s15, 2
      %s22 = sadd.s32 %s15, 1
      %s23 = ssub.s32 %s15, %s22
      %p24 = scmp.eq.s32.totalorder %s23, 0
      %s26 = sadd.s32 %s25, 1
      %s27 = scalar_select %p24, %s25, %s26
      %p30 = pneg %p24
      %p31 = scmp.eq.s32.totalorder %s15, 1
      %p32 = por %p30, %p31
      %p33 = scmp.ne.s32.totalorder %s25, %s28
      %p34 = scmp.eq.s32.totalorder %s15, 0
      %p35 = por %p33, %p34
      %p36 = scmp.ne.s32.totalorder %s25, %s28
      %p37 = scmp.eq.s32.totalorder %s20, 1
      %p38 = por %p36, %p37
      %p39 = scmp.ne.s32.totalorder %s28, %s29
      %p40 = scmp.eq.s32.totalorder %s20, 0
      %p41 = por %p39, %p40
      %p42 = scmp.ne.s32.totalorder %s28, %s29
      %p43 = scmp.eq.s32.totalorder %s21, 1
      %p44 = por %p42, %p43
      %p46 = scmp.ne.s32.totalorder %s29, %s45
      %p47 = scmp.eq.s32.totalorder %s21, 0
      %p48 = por %p46, %p47
      %s50 = sadd.s32 %s49, 1
      %p53 = scmp.eq.s32.totalorder %s15, 1
      %p54 = scmp.ne.s32.totalorder %s49, %s51
      %p55 = scmp.eq.s32.totalorder %s15, 0
      %p56 = por %p54, %p55
      %p57 = scmp.ne.s32.totalorder %s49, %s51
      %p58 = scmp.eq.s32.totalorder %s20, 1
      %p59 = por %p57, %p58
      %p60 = scmp.ne.s32.totalorder %s51, %s52
      %p61 = scmp.eq.s32.totalorder %s20, 0
      %p62 = por %p60, %p61
      %p63 = scmp.ne.s32.totalorder %s51, %s52
      %p64 = scmp.eq.s32.totalorder %s21, 1
      %p65 = por %p63, %p64
      %p67 = scmp.ne.s32.totalorder %s52, %s66
      %p68 = scmp.eq.s32.totalorder %s21, 0
      %p69 = por %p67, %p68
      %s71 = sadd.s32 %s70, 1
      %p74 = scmp.eq.s32.totalorder %s15, 1
      %p75 = scmp.ne.s32.totalorder %s70, %s72
      %p76 = scmp.eq.s32.totalorder %s15, 0
      %p77 = por %p75, %p76
      %p78 = scmp.ne.s32.totalorder %s70, %s72
      %p79 = scmp.eq.s32.totalorder %s20, 1
      %p80 = por %p78, %p79
      %p81 = scmp.ne.s32.totalorder %s72, %s73
      %p82 = scmp.eq.s32.totalorder %s20, 0
      %p83 = por %p81, %p82
      %p84 = scmp.ne.s32.totalorder %s72, %s73
      %p85 = scmp.eq.s32.totalorder %s21, 1
      %p86 = por %p84, %p85
      %p88 = scmp.ne.s32.totalorder %s73, %s87
      %p89 = scmp.eq.s32.totalorder %s21, 0
      %p90 = por %p88, %p89
      %s92 = sadd.s32 %s91, 1
      %p95 = scmp.eq.s32.totalorder %s15, 1
      %p96 = scmp.ne.s32.totalorder %s91, %s93
      %p97 = scmp.eq.s32.totalorder %s15, 0
      %p98 = por %p96, %p97
      %p99 = scmp.ne.s32.totalorder %s91, %s93
      %p100 = scmp.eq.s32.totalorder %s20, 1
      %p101 = por %p99, %p100
      %p102 = scmp.ne.s32.totalorder %s93, %s94
      %p103 = scmp.eq.s32.totalorder %s20, 0
      %p104 = por %p102, %p103
      %p105 = scmp.ne.s32.totalorder %s93, %s94
      %p106 = scmp.eq.s32.totalorder %s21, 1
      %p107 = por %p105, %p106
      %p109 = scmp.ne.s32.totalorder %s94, %s108
      %p110 = scmp.eq.s32.totalorder %s21, 0
      %p111 = por %p109, %p110
      %s113 = sadd.s32 %s112, 1
      %p116 = scmp.eq.s32.totalorder %s15, 1
      %p117 = scmp.ne.s32.totalorder %s112, %s114
      %p118 = scmp.eq.s32.totalorder %s15, 0
      %p119 = por %p117, %p118
      %p120 = scmp.ne.s32.totalorder %s112, %s114
      %p121 = scmp.eq.s32.totalorder %s20, 1
      %p122 = por %p120, %p121
      %p123 = scmp.ne.s32.totalorder %s114, %s115
      %p124 = scmp.eq.s32.totalorder %s20, 0
      %p125 = por %p123, %p124
      %p126 = scmp.ne.s32.totalorder %s114, %s115
      %p127 = scmp.eq.s32.totalorder %s21, 1
      %p128 = por %p126, %p127
      %p130 = scmp.ne.s32.totalorder %s115, %s129
      %p131 = scmp.eq.s32.totalorder %s21, 0
      %p132 = por %p130, %p131
      %s134 = sadd.s32 %s133, 1
      %p137 = scmp.eq.s32.totalorder %s15, 1
      %p138 = scmp.ne.s32.totalorder %s133, %s135
      %p139 = scmp.eq.s32.totalorder %s15, 0
      %p140 = por %p138, %p139
      %p141 = scmp.ne.s32.totalorder %s133, %s135
      %p142 = scmp.eq.s32.totalorder %s20, 1
      %p143 = por %p141, %p142
      %p144 = scmp.ne.s32.totalorder %s135, %s136
      %p145 = scmp.eq.s32.totalorder %s20, 0
      %p146 = por %p144, %p145
      %p147 = scmp.ne.s32.totalorder %s135, %s136
      %p148 = scmp.eq.s32.totalorder %s21, 1
      %p149 = por %p147, %p148
      %p151 = scmp.ne.s32.totalorder %s136, %s150
      %p152 = scmp.eq.s32.totalorder %s21, 0
      %p153 = por %p151, %p152
      %s154 = ssub.s32 %s15, %s22
      %p155 = scmp.eq.s32.totalorder %s154, 0
      %s157 = sadd.s32 %s156, 1
      %s158 = scalar_select %p155, %s156, %s157
      %p161 = pneg %p155
      %p162 = scmp.eq.s32.totalorder %s15, 1
      %p163 = por %p161, %p162
      %p164 = scmp.ne.s32.totalorder %s156, %s159
      %p165 = scmp.eq.s32.totalorder %s15, 0
      %p166 = por %p164, %p165
      %p167 = scmp.ne.s32.totalorder %s156, %s159
      %p168 = scmp.eq.s32.totalorder %s20, 1
      %p169 = por %p167, %p168
      %p170 = scmp.ne.s32.totalorder %s159, %s160
      %p171 = scmp.eq.s32.totalorder %s20, 0
      %p172 = por %p170, %p171
      %p173 = scmp.ne.s32.totalorder %s159, %s160
      %p174 = scmp.eq.s32.totalorder %s21, 1
      %p175 = por %p173, %p174
      %p177 = scmp.ne.s32.totalorder %s160, %s176
      %p178 = scmp.eq.s32.totalorder %s21, 0
      %p179 = por %p177, %p178
      %p180 = scmp.le.s32.totalorder 1, %s15
      %p181 = scmp.lt.s32.totalorder %s15, 3
      %p182 = pnand %p180, %p181
      %p183 = pneg %p182
      // Predicated region
      $region9: #{dense_layer_forward.7} parent=5 // pred_check
        _
      $region10: #{dense_layer_forward.7} parent=5 // pred_check_branch
        %185 = sbr.rel (%p182) target = $region12
      $region11: #{dense_layer_forward.7} parent=5 // pred_region
        %s186 = ssub.s32 %s15, 1
        // Predicated region
        $region13: #{dense_layer_forward.7} parent=11 // pred_check
          %p187 = pneg %p62
        $region14: #{dense_layer_forward.7} parent=11 // pred_check_branch
          %189 = sbr.rel (%p187) target = $region16
        $region15: #{dense_layer_forward.7} parent=11 // pred_region
          _
        $region16: #{dense_layer_forward.7} parent=11 // pred_fallthru
          _
        // Predicated region
        $region17: #{dense_layer_forward.7} parent=11 // pred_check
          %p190 = pneg %p83
        $region18: #{dense_layer_forward.7} parent=11 // pred_check_branch
          %192 = sbr.rel (%p190) target = $region20
        $region19: #{dense_layer_forward.7} parent=11 // pred_region
          _
        $region20: #{dense_layer_forward.7} parent=11 // pred_fallthru
          _
        // Predicated region
        $region21: #{dense_layer_forward.7} parent=11 // pred_check
          %p193 = pneg %p104
        $region22: #{dense_layer_forward.7} parent=11 // pred_check_branch
          %195 = sbr.rel (%p193) target = $region24
        $region23: #{dense_layer_forward.7} parent=11 // pred_region
          _
        $region24: #{dense_layer_forward.7} parent=11 // pred_fallthru
          _
        // Predicated region
        $region25: #{dense_layer_forward.7} parent=11 // pred_check
          %p196 = pneg %p125
        $region26: #{dense_layer_forward.7} parent=11 // pred_check_branch
          %198 = sbr.rel (%p196) target = $region28
        $region27: #{dense_layer_forward.7} parent=11 // pred_region
          _
        $region28: #{dense_layer_forward.7} parent=11 // pred_fallthru
          _
        // Predicated region
        $region29: #{dense_layer_forward.7} parent=11 // pred_check
          %p199 = pneg %p146
        $region30: #{dense_layer_forward.7} parent=11 // pred_check_branch
          %201 = sbr.rel (%p199) target = $region32
        $region31: #{dense_layer_forward.7} parent=11 // pred_region
          _
        $region32: #{dense_layer_forward.7} parent=11 // pred_fallthru
          _
      $region12: #{dense_layer_forward.7} parent=5 // pred_fallthru
        _
      %p202 = scmp.lt.s32.totalorder %s15, 2
      // Predicated region
      $region33: #{dense_layer_forward.7} parent=5 // pred_check
        %p203 = pneg %p202
      $region34: #{dense_layer_forward.7} parent=5 // pred_check_branch
        %205 = sbr.rel (%p203) target = $region36
      $region35: #{dense_layer_forward.7} parent=5 // pred_region
        // Predicated region
        $region37: #{dense_layer_forward.7} parent=35 // pred_check
          %p206 = pneg %p35
        $region38: #{dense_layer_forward.7} parent=35 // pred_check_branch
          %208 = sbr.rel (%p206) target = $region40
        $region39: #{dense_layer_forward.7} parent=35 // pred_region
          %p209 = scmp.lt.s32.totalorder %s15, 1
          %s210 = scalar_select %p209, %s15, 1
          %s211 = smul.addr %s210, 32
          %s212 = smul.addr %s211, 8
          %s213 = scalar_lea.vmem %s0, %s212
        $region40: #{dense_layer_forward.7} parent=35 // pred_fallthru
          _
      $region36: #{dense_layer_forward.7} parent=5 // pred_fallthru
        _
      %p214 = scmp.le.s32.totalorder 1, %s15
      %p215 = scmp.lt.s32.totalorder %s15, 3
      %p216 = pnand %p214, %p215
      %p217 = pneg %p216
      // Predicated region
      $region41: #{dense_layer_forward.7} parent=5 // pred_check
        _
      $region42: #{dense_layer_forward.7} parent=5 // pred_check_branch
        %219 = sbr.rel (%p216) target = $region44
      $region43: #{dense_layer_forward.7} parent=5 // pred_region
        %s220 = ssub.s32 %s15, 1
        %p221 = scmp.lt.s32.totalorder %s20, 1
        %s222 = scalar_select %p221, %s20, 1
        %s223 = smul.addr %s222, 32
        %s224 = smul.addr %s223, 8
        %s225 = scalar_lea.vmem %s0, %s224
        %p226 = pneg %p41
        %p227 = pneg %p38
        %p228 = pneg %p62
        %p229 = pneg %p59
        %p230 = pneg %p83
        %p231 = pneg %p80
        %p232 = pneg %p104
        %p233 = pneg %p101
        %p234 = pneg %p125
        %p235 = pneg %p122
        %p236 = pneg %p146
        %p237 = pneg %p143
        %p238 = pneg %p172
        %p239 = pneg %p169
        %s240 = sand.u32 %s159, 1
        %s241 = scalar_lea.sflag [#allocation4], %s240
        %s242 = sand.u32 %s159, 1
        %s243 = smul.addr %s242, 256
        %s244 = scalar_lea.vmem [#allocation3], %s243
        %p245 = scmp.lt.s32.totalorder %s20, 1
        %s246 = scalar_select %p245, %s20, 1
        %s247 = smul.addr %s246, 32
        %s248 = smul.addr %s247, 8
        %s249 = scalar_lea.vmem %s0, %s248
        %v251 = vld [vmem:[%s1] sm:$0x1]
        %v252 = vmul.f32 %v251, 0.001953125
        %v253 = vld [vmem:[%s2] sm:$0x1]
        %v254 = vmul.f32 %v253, 0.001953125
        %v255 = vmul.f32 %v252, %v252
        %v256 = vsub.f32 %v254, %v255
        %v257 = vld [vmem:[%s3] sm:$0x1]
        %v258 = vadd.f32 %v256, 1e-05
        %v259 = vrsqrt.pop %v258
        %v260 = vmul.f32 %v257, %v259
        %v261 = vld [vmem:[%s4] sm:$0x1]
        %v262 = vmul.f32 %v252, %v260
        %v263 = vsub.f32 %v261, %v262
        %v264 = vld [vmem:[%s249] sm:$0xff]
        %v265 = vld [vmem:[%s249 + $0x8] sm:$0xff]
        %v266 = vld [vmem:[%s249 + $0x10] sm:$0xff]
        %v267 = vld [vmem:[%s249 + $0x18] sm:$0xff]
        %v268 = vld [vmem:[%s249 + $0x20] sm:$0xff]
        %v269 = vld [vmem:[%s249 + $0x28] sm:$0xff]
        %v270 = vld [vmem:[%s249 + $0x30] sm:$0xff]
        %v271 = vld [vmem:[%s249 + $0x38] sm:$0xff]
        %v272 = vld [vmem:[%s249 + $0x40] sm:$0xff]
        %v273 = vld [vmem:[%s249 + $0x48] sm:$0xff]
        %v274 = vld [vmem:[%s249 + $0x50] sm:$0xff]
        %v275 = vld [vmem:[%s249 + $0x58] sm:$0xff]
        %v276 = vld [vmem:[%s249 + $0x60] sm:$0xff]
        %v277 = vld [vmem:[%s249 + $0x68] sm:$0xff]
        %v278 = vld [vmem:[%s249 + $0x70] sm:$0xff]
        %v279 = vld [vmem:[%s249 + $0x78] sm:$0xff]
        %v280 = vld [vmem:[%s249 + $0x80] sm:$0xff]
        %v281 = vld [vmem:[%s249 + $0x88] sm:$0xff]
        %v282 = vld [vmem:[%s249 + $0x90] sm:$0xff]
        %v283 = vld [vmem:[%s249 + $0x98] sm:$0xff]
        %v284 = vld [vmem:[%s249 + $0xa0] sm:$0xff]
        %v285 = vld [vmem:[%s249 + $0xa8] sm:$0xff]
        %v286 = vld [vmem:[%s249 + $0xb0] sm:$0xff]
        %v287 = vld [vmem:[%s249 + $0xb8] sm:$0xff]
        %v288 = vld [vmem:[%s249 + $0xc0] sm:$0xff]
        %v289 = vld [vmem:[%s249 + $0xc8] sm:$0xff]
        %v290 = vld [vmem:[%s249 + $0xd0] sm:$0xff]
        %v291 = vld [vmem:[%s249 + $0xd8] sm:$0xff]
        %v292 = vld [vmem:[%s249 + $0xe0] sm:$0xff]
        %v293 = vld [vmem:[%s249 + $0xe8] sm:$0xff]
        %v294 = vld [vmem:[%s249 + $0xf0] sm:$0xff]
        %v295 = vld [vmem:[%s249 + $0xf8] sm:$0xff]
        %v297 = vlaneseq
        %v298 = vshrl.u32 %v297, 7
        %v299 = vsub.s32 0, %v298
        %v300 = vrot.slane %v260, %v299
        %v302 = vmul.f32 %v264, %v300
        %v303 = vmul.f32 %v265, %v300
        %v304 = vmul.f32 %v266, %v300
        %v305 = vmul.f32 %v267, %v300
        %v306 = vmul.f32 %v268, %v300
        %v307 = vmul.f32 %v269, %v300
        %v308 = vmul.f32 %v270, %v300
        %v309 = vmul.f32 %v271, %v300
        %v310 = vmul.f32 %v272, %v300
        %v311 = vmul.f32 %v273, %v300
        %v312 = vmul.f32 %v274, %v300
        %v313 = vmul.f32 %v275, %v300
        %v314 = vmul.f32 %v276, %v300
        %v315 = vmul.f32 %v277, %v300
        %v316 = vmul.f32 %v278, %v300
        %v317 = vmul.f32 %v279, %v300
        %v318 = vmul.f32 %v280, %v300
        %v319 = vmul.f32 %v281, %v300
        %v320 = vmul.f32 %v282, %v300
        %v321 = vmul.f32 %v283, %v300
        %v322 = vmul.f32 %v284, %v300
        %v323 = vmul.f32 %v285, %v300
        %v324 = vmul.f32 %v286, %v300
        %v325 = vmul.f32 %v287, %v300
        %v326 = vmul.f32 %v288, %v300
        %v327 = vmul.f32 %v289, %v300
        %v328 = vmul.f32 %v290, %v300
        %v329 = vmul.f32 %v291, %v300
        %v330 = vmul.f32 %v292, %v300
        %v331 = vmul.f32 %v293, %v300
        %v332 = vmul.f32 %v294, %v300
        %v333 = vmul.f32 %v295, %v300
        %v335 = vlaneseq
        %v336 = vshrl.u32 %v335, 7
        %v337 = vsub.s32 0, %v336
        %v338 = vrot.slane %v263, %v337
        %v340 = vadd.f32 %v302, %v338
        %v341 = vadd.f32 %v303, %v338
        %v342 = vadd.f32 %v304, %v338
        %v343 = vadd.f32 %v305, %v338
        %v344 = vadd.f32 %v306, %v338
        %v345 = vadd.f32 %v307, %v338
        %v346 = vadd.f32 %v308, %v338
        %v347 = vadd.f32 %v309, %v338
        %v348 = vadd.f32 %v310, %v338
        %v349 = vadd.f32 %v311, %v338
        %v350 = vadd.f32 %v312, %v338
        %v351 = vadd.f32 %v313, %v338
        %v352 = vadd.f32 %v314, %v338
        %v353 = vadd.f32 %v315, %v338
        %v354 = vadd.f32 %v316, %v338
        %v355 = vadd.f32 %v317, %v338
        %v356 = vadd.f32 %v318, %v338
        %v357 = vadd.f32 %v319, %v338
        %v358 = vadd.f32 %v320, %v338
        %v359 = vadd.f32 %v321, %v338
        %v360 = vadd.f32 %v322, %v338
        %v361 = vadd.f32 %v323, %v338
        %v362 = vadd.f32 %v324, %v338
        %v363 = vadd.f32 %v325, %v338
        %v364 = vadd.f32 %v326, %v338
        %v365 = vadd.f32 %v327, %v338
        %v366 = vadd.f32 %v328, %v338
        %v367 = vadd.f32 %v329, %v338
        %v368 = vadd.f32 %v330, %v338
        %v369 = vadd.f32 %v331, %v338
        %v370 = vadd.f32 %v332, %v338
        %v371 = vadd.f32 %v333, %v338
        %v372 = vmax.f32 %v340, 0.0
        %v373 = vmax.f32 %v341, 0.0
        %v374 = vmax.f32 %v342, 0.0
        %v375 = vmax.f32 %v343, 0.0
        %v376 = vmax.f32 %v344, 0.0
        %v377 = vmax.f32 %v345, 0.0
        %v378 = vmax.f32 %v346, 0.0
        %v379 = vmax.f32 %v347, 0.0
        %v380 = vmax.f32 %v348, 0.0
        %v381 = vmax.f32 %v349, 0.0
        %v382 = vmax.f32 %v350, 0.0
        %v383 = vmax.f32 %v351, 0.0
        %v384 = vmax.f32 %v352, 0.0
        %v385 = vmax.f32 %v353, 0.0
        %v386 = vmax.f32 %v354, 0.0
        %v387 = vmax.f32 %v355, 0.0
        %v388 = vmax.f32 %v356, 0.0
        %v389 = vmax.f32 %v357, 0.0
        %v390 = vmax.f32 %v358, 0.0
        %v391 = vmax.f32 %v359, 0.0
        %v392 = vmax.f32 %v360, 0.0
        %v393 = vmax.f32 %v361, 0.0
        %v394 = vmax.f32 %v362, 0.0
        %v395 = vmax.f32 %v363, 0.0
        %v396 = vmax.f32 %v364, 0.0
        %v397 = vmax.f32 %v365, 0.0
        %v398 = vmax.f32 %v366, 0.0
        %v399 = vmax.f32 %v367, 0.0
        %v400 = vmax.f32 %v368, 0.0
        %v401 = vmax.f32 %v369, 0.0
        %v402 = vmax.f32 %v370, 0.0
        %v403 = vmax.f32 %v371, 0.0
        %404 = vst [vmem:[#allocation2] sm:$0xff] 0.0
        %405 = vst [vmem:[#allocation2 + $0x8] sm:$0xff] 0.0
        %406 = vst [vmem:[#allocation2 + $0x10] sm:$0x3] 0.0
        %407 = vst [vmem:[#allocation2 + $0x18] sm:$0xff] 0.0
        %408 = vst [vmem:[#allocation2 + $0x20] sm:$0xff] 0.0
        %409 = vst [vmem:[#allocation2 + $0x28] sm:$0x3] 0.0
        %410 = vst [vmem:[#allocation2 + $0x30] sm:$0xff] 0.0
        %411 = vst [vmem:[#allocation2 + $0x38] sm:$0xff] 0.0
        %412 = vst [vmem:[#allocation2 + $0x40] sm:$0x3] 0.0
        %413 = vst [vmem:[#allocation2 + $0x48] sm:$0xff] 0.0
        %414 = vst [vmem:[#allocation2 + $0x50] sm:$0xff] 0.0
        %415 = vst [vmem:[#allocation2 + $0x58] sm:$0x3] 0.0
        %416 = vst [vmem:[#allocation2 + $0x60] sm:$0xff] 0.0
        %417 = vst [vmem:[#allocation2 + $0x68] sm:$0xff] 0.0
        %418 = vst [vmem:[#allocation2 + $0x70] sm:$0x3] 0.0
        %419 = vst [vmem:[#allocation2 + $0x78] sm:$0xff] 0.0
        %420 = vst [vmem:[#allocation2 + $0x80] sm:$0xff] 0.0
        %421 = vst [vmem:[#allocation2 + $0x88] sm:$0x3] 0.0
        %422 = vst [vmem:[#allocation2 + $0x90] sm:$0xff] 0.0
        %423 = vst [vmem:[#allocation2 + $0x98] sm:$0xff] 0.0
        %424 = vst [vmem:[#allocation2 + $0xa0] sm:$0x3] 0.0
        %425 = vst [vmem:[#allocation2 + $0xa8] sm:$0xff] 0.0
        %426 = vst [vmem:[#allocation2 + $0xb0] sm:$0xff] 0.0
        %427 = vst [vmem:[#allocation2 + $0xb8] sm:$0x3] 0.0
        %428 = vst [vmem:[#allocation2 + $0xc0] sm:$0xff] 0.0
        %429 = vst [vmem:[#allocation2 + $0xc8] sm:$0xff] 0.0
        %430 = vst [vmem:[#allocation2 + $0xd0] sm:$0x3] 0.0
        %431 = vst [vmem:[#allocation2 + $0xd8] sm:$0xff] 0.0
        %432 = vst [vmem:[#allocation2 + $0xe0] sm:$0xff] 0.0
        %433 = vst [vmem:[#allocation2 + $0xe8] sm:$0x3] 0.0
        %434 = vst [vmem:[#allocation2 + $0xf0] sm:$0xff] 0.0
        %435 = vst [vmem:[#allocation2 + $0xf8] sm:$0xff] 0.0
        %436 = vst [vmem:[#allocation2 + $0x100] sm:$0x3] 0.0
        %437 = vst [vmem:[#allocation2 + $0x108] sm:$0xff] 0.0
        %438 = vst [vmem:[#allocation2 + $0x110] sm:$0xff] 0.0
        %439 = vst [vmem:[#allocation2 + $0x118] sm:$0x3] 0.0
        %440 = vst [vmem:[#allocation2 + $0x120] sm:$0xff] 0.0
        %441 = vst [vmem:[#allocation2 + $0x128] sm:$0xff] 0.0
        %442 = vst [vmem:[#allocation2 + $0x130] sm:$0x3] 0.0
        %443 = vst [vmem:[#allocation2 + $0x138] sm:$0xff] 0.0
        %444 = vst [vmem:[#allocation2 + $0x140] sm:$0xff] 0.0
        %445 = vst [vmem:[#allocation2 + $0x148] sm:$0x3] 0.0
        %446 = vst [vmem:[#allocation2 + $0x150] sm:$0xff] 0.0
        %447 = vst [vmem:[#allocation2 + $0x158] sm:$0xff] 0.0
        %448 = vst [vmem:[#allocation2 + $0x160] sm:$0x3] 0.0
        %449 = vst [vmem:[#allocation2 + $0x168] sm:$0xff] 0.0
        %450 = vst [vmem:[#allocation2 + $0x170] sm:$0xff] 0.0
        %451 = vst [vmem:[#allocation2 + $0x178] sm:$0x3] 0.0
        %452 = vst [vmem:[#allocation2 + $0x180] sm:$0xff] 0.0
        %453 = vst [vmem:[#allocation2 + $0x188] sm:$0xff] 0.0
        %454 = vst [vmem:[#allocation2 + $0x190] sm:$0x3] 0.0
        %455 = vst [vmem:[#allocation2 + $0x198] sm:$0xff] 0.0
        %456 = vst [vmem:[#allocation2 + $0x1a0] sm:$0xff] 0.0
        %457 = vst [vmem:[#allocation2 + $0x1a8] sm:$0x3] 0.0
        %s458 = scalar_lea.vmem [#allocation2], 24
        %459 = vst [vmem:[%s458 + $0x1] sm:$0xff] %v372
        %460 = vst [vmem:[%s458 + $0x9] sm:$0xff] %v373
        %461 = vst [vmem:[%s458 + $0x19] sm:$0xff] %v374
        %462 = vst [vmem:[%s458 + $0x21] sm:$0xff] %v375
        %463 = vst [vmem:[%s458 + $0x31] sm:$0xff] %v376
        %464 = vst [vmem:[%s458 + $0x39] sm:$0xff] %v377
        %465 = vst [vmem:[%s458 + $0x49] sm:$0xff] %v378
        %466 = vst [vmem:[%s458 + $0x51] sm:$0xff] %v379
        %467 = vst [vmem:[%s458 + $0x61] sm:$0xff] %v380
        %468 = vst [vmem:[%s458 + $0x69] sm:$0xff] %v381
        %469 = vst [vmem:[%s458 + $0x79] sm:$0xff] %v382
        %470 = vst [vmem:[%s458 + $0x81] sm:$0xff] %v383
        %471 = vst [vmem:[%s458 + $0x91] sm:$0xff] %v384
        %472 = vst [vmem:[%s458 + $0x99] sm:$0xff] %v385
        %473 = vst [vmem:[%s458 + $0xa9] sm:$0xff] %v386
        %474 = vst [vmem:[%s458 + $0xb1] sm:$0xff] %v387
        %475 = vst [vmem:[%s458 + $0xc1] sm:$0xff] %v388
        %476 = vst [vmem:[%s458 + $0xc9] sm:$0xff] %v389
        %477 = vst [vmem:[%s458 + $0xd9] sm:$0xff] %v390
        %478 = vst [vmem:[%s458 + $0xe1] sm:$0xff] %v391
        %479 = vst [vmem:[%s458 + $0xf1] sm:$0xff] %v392
        %480 = vst [vmem:[%s458 + $0xf9] sm:$0xff] %v393
        %481 = vst [vmem:[%s458 + $0x109] sm:$0xff] %v394
        %482 = vst [vmem:[%s458 + $0x111] sm:$0xff] %v395
        %483 = vst [vmem:[%s458 + $0x121] sm:$0xff] %v396
        %484 = vst [vmem:[%s458 + $0x129] sm:$0xff] %v397
        %485 = vst [vmem:[%s458 + $0x139] sm:$0xff] %v398
        %486 = vst [vmem:[%s458 + $0x141] sm:$0xff] %v399
        %487 = vst [vmem:[%s458 + $0x151] sm:$0xff] %v400
        %488 = vst [vmem:[%s458 + $0x159] sm:$0xff] %v401
        %489 = vst [vmem:[%s458 + $0x169] sm:$0xff] %v402
        %490 = vst [vmem:[%s458 + $0x171] sm:$0xff] %v403
        %v491 = vld [vmem:[#allocation2] sm:$0xff]
        %v492 = vld [vmem:[#allocation2 + $0x8] sm:$0xff]
        %v493 = vld [vmem:[#allocation2 + $0x18] sm:$0xff]
        %v494 = vld [vmem:[#allocation2 + $0x20] sm:$0xff]
        %v495 = vld [vmem:[#allocation2 + $0x30] sm:$0xff]
        %v496 = vld [vmem:[#allocation2 + $0x38] sm:$0xff]
        %v497 = vld [vmem:[#allocation2 + $0x48] sm:$0xff]
        %v498 = vld [vmem:[#allocation2 + $0x50] sm:$0xff]
        %v499 = vld [vmem:[#allocation2 + $0x60] sm:$0xff]
        %v500 = vld [vmem:[#allocation2 + $0x68] sm:$0xff]
        %v501 = vld [vmem:[#allocation2 + $0x78] sm:$0xff]
        %v502 = vld [vmem:[#allocation2 + $0x80] sm:$0xff]
        %v503 = vld [vmem:[#allocation2 + $0x90] sm:$0xff]
        %v504 = vld [vmem:[#allocation2 + $0x98] sm:$0xff]
        %v505 = vld [vmem:[#allocation2 + $0xa8] sm:$0xff]
        %v506 = vld [vmem:[#allocation2 + $0xb0] sm:$0xff]
        %v507 = vld [vmem:[#allocation2 + $0xc0] sm:$0xff]
        %v508 = vld [vmem:[#allocation2 + $0xc8] sm:$0xff]
        %v509 = vld [vmem:[#allocation2 + $0xd8] sm:$0xff]
        %v510 = vld [vmem:[#allocation2 + $0xe0] sm:$0xff]
        %v511 = vld [vmem:[#allocation2 + $0xf0] sm:$0xff]
        %v512 = vld [vmem:[#allocation2 + $0xf8] sm:$0xff]
        %v513 = vld [vmem:[#allocation2 + $0x108] sm:$0xff]
        %v514 = vld [vmem:[#allocation2 + $0x110] sm:$0xff]
        %v515 = vld [vmem:[#allocation2 + $0x120] sm:$0xff]
        %v516 = vld [vmem:[#allocation2 + $0x128] sm:$0xff]
        %v517 = vld [vmem:[#allocation2 + $0x138] sm:$0xff]
        %v518 = vld [vmem:[#allocation2 + $0x140] sm:$0xff]
        %v519 = vld [vmem:[#allocation2 + $0x150] sm:$0xff]
        %v520 = vld [vmem:[#allocation2 + $0x158] sm:$0xff]
        %v521 = vld [vmem:[#allocation2 + $0x168] sm:$0xff]
        %v522 = vld [vmem:[#allocation2 + $0x170] sm:$0xff]
        %v523 = vpack.c.bf16 %v492, %v491
        %v524 = vpack.c.bf16 %v494, %v493
        %v525 = vpack.c.bf16 %v496, %v495
        %v526 = vpack.c.bf16 %v498, %v497
        %v527 = vpack.c.bf16 %v500, %v499
        %v528 = vpack.c.bf16 %v502, %v501
        %v529 = vpack.c.bf16 %v504, %v503
        %v530 = vpack.c.bf16 %v506, %v505
        %v531 = vpack.c.bf16 %v508, %v507
        %v532 = vpack.c.bf16 %v510, %v509
        %v533 = vpack.c.bf16 %v512, %v511
        %v534 = vpack.c.bf16 %v514, %v513
        %v535 = vpack.c.bf16 %v516, %v515
        %v536 = vpack.c.bf16 %v518, %v517
        %v537 = vpack.c.bf16 %v520, %v519
        %v538 = vpack.c.bf16 %v522, %v521
        %v539 = vld [vmem:[%s5] sm:$0xf]
        %v540 = vld [vmem:[%s5 + $0x4] sm:$0xf]
        %v541 = vld [vmem:[%s5 + $0x8] sm:$0xf]
        %v542 = vld [vmem:[%s5 + $0xc] sm:$0xf]
        %v543 = vld [vmem:[%s5 + $0x10] sm:$0xf]
        %v544 = vld [vmem:[%s5 + $0x14] sm:$0xf]
        %v545 = vld [vmem:[%s5 + $0x18] sm:$0xf]
        %v546 = vld [vmem:[%s5 + $0x1c] sm:$0xf]
        %v547 = vld [vmem:[%s5 + $0x20] sm:$0xf]
        %v548 = vld [vmem:[%s5 + $0x24] sm:$0xf]
        %v549 = vld [vmem:[%s5 + $0x28] sm:$0xf]
        %v550 = vld [vmem:[%s5 + $0x2c] sm:$0xf]
        %v551 = vld [vmem:[%s5 + $0x30] sm:$0xf]
        %v552 = vld [vmem:[%s5 + $0x34] sm:$0xf]
        %v553 = vld [vmem:[%s5 + $0x38] sm:$0xf]
        %v554 = vld [vmem:[%s5 + $0x3c] sm:$0xf]
        %v555 = vld [vmem:[#allocation2 + $0x1] sm:$0xff]
        %v556 = vld [vmem:[#allocation2 + $0x9] sm:$0xff]
        %v557 = vld [vmem:[#allocation2 + $0x19] sm:$0xff]
        %v558 = vld [vmem:[#allocation2 + $0x21] sm:$0xff]
        %v559 = vld [vmem:[#allocation2 + $0x31] sm:$0xff]
        %v560 = vld [vmem:[#allocation2 + $0x39] sm:$0xff]
        %v561 = vld [vmem:[#allocation2 + $0x49] sm:$0xff]
        %v562 = vld [vmem:[#allocation2 + $0x51] sm:$0xff]
        %v563 = vld [vmem:[#allocation2 + $0x61] sm:$0xff]
        %v564 = vld [vmem:[#allocation2 + $0x69] sm:$0xff]
        %v565 = vld [vmem:[#allocation2 + $0x79] sm:$0xff]
        %v566 = vld [vmem:[#allocation2 + $0x81] sm:$0xff]
        %v567 = vld [vmem:[#allocation2 + $0x91] sm:$0xff]
        %v568 = vld [vmem:[#allocation2 + $0x99] sm:$0xff]
        %v569 = vld [vmem:[#allocation2 + $0xa9] sm:$0xff]
        %v570 = vld [vmem:[#allocation2 + $0xb1] sm:$0xff]
        %v571 = vld [vmem:[#allocation2 + $0xc1] sm:$0xff]
        %v572 = vld [vmem:[#allocation2 + $0xc9] sm:$0xff]
        %v573 = vld [vmem:[#allocation2 + $0xd9] sm:$0xff]
        %v574 = vld [vmem:[#allocation2 + $0xe1] sm:$0xff]
        %v575 = vld [vmem:[#allocation2 + $0xf1] sm:$0xff]
        %v576 = vld [vmem:[#allocation2 + $0xf9] sm:$0xff]
        %v577 = vld [vmem:[#allocation2 + $0x109] sm:$0xff]
        %v578 = vld [vmem:[#allocation2 + $0x111] sm:$0xff]
        %v579 = vld [vmem:[#allocation2 + $0x121] sm:$0xff]
        %v580 = vld [vmem:[#allocation2 + $0x129] sm:$0xff]
        %v581 = vld [vmem:[#allocation2 + $0x139] sm:$0xff]
        %v582 = vld [vmem:[#allocation2 + $0x141] sm:$0xff]
        %v583 = vld [vmem:[#allocation2 + $0x151] sm:$0xff]
        %v584 = vld [vmem:[#allocation2 + $0x159] sm:$0xff]
        %v585 = vld [vmem:[#allocation2 + $0x169] sm:$0xff]
        %v586 = vld [vmem:[#allocation2 + $0x171] sm:$0xff]
        %v587 = vpack.c.bf16 %v556, %v555
        %v588 = vpack.c.bf16 %v558, %v557
        %v589 = vpack.c.bf16 %v560, %v559
        %v590 = vpack.c.bf16 %v562, %v561
        %v591 = vpack.c.bf16 %v564, %v563
        %v592 = vpack.c.bf16 %v566, %v565
        %v593 = vpack.c.bf16 %v568, %v567
        %v594 = vpack.c.bf16 %v570, %v569
        %v595 = vpack.c.bf16 %v572, %v571
        %v596 = vpack.c.bf16 %v574, %v573
        %v597 = vpack.c.bf16 %v576, %v575
        %v598 = vpack.c.bf16 %v578, %v577
        %v599 = vpack.c.bf16 %v580, %v579
        %v600 = vpack.c.bf16 %v582, %v581
        %v601 = vpack.c.bf16 %v584, %v583
        %v602 = vpack.c.bf16 %v586, %v585
        %s603 = scalar_lea.vmem %s5, 64
        %v604 = vld [vmem:[%s603] sm:$0xf]
        %v605 = vld [vmem:[%s603 + $0x4] sm:$0xf]
        %v606 = vld [vmem:[%s603 + $0x8] sm:$0xf]
        %v607 = vld [vmem:[%s603 + $0xc] sm:$0xf]
        %v608 = vld [vmem:[%s603 + $0x10] sm:$0xf]
        %v609 = vld [vmem:[%s603 + $0x14] sm:$0xf]
        %v610 = vld [vmem:[%s603 + $0x18] sm:$0xf]
        %v611 = vld [vmem:[%s603 + $0x1c] sm:$0xf]
        %v612 = vld [vmem:[%s603 + $0x20] sm:$0xf]
        %v613 = vld [vmem:[%s603 + $0x24] sm:$0xf]
        %v614 = vld [vmem:[%s603 + $0x28] sm:$0xf]
        %v615 = vld [vmem:[%s603 + $0x2c] sm:$0xf]
        %v616 = vld [vmem:[%s603 + $0x30] sm:$0xf]
        %v617 = vld [vmem:[%s603 + $0x34] sm:$0xf]
        %v618 = vld [vmem:[%s603 + $0x38] sm:$0xf]
        %v619 = vld [vmem:[%s603 + $0x3c] sm:$0xf]
        %v636 = vunpack.c.l.b16 %v604
        %v637 = vunpack.c.l.b16 %v605
        %v638 = vunpack.c.l.b16 %v606
        %v639 = vunpack.c.l.b16 %v607
        %v640 = vunpack.c.l.b16 %v608
        %v641 = vunpack.c.l.b16 %v609
        %v642 = vunpack.c.l.b16 %v610
        %v643 = vunpack.c.l.b16 %v611
        %v644 = vunpack.c.l.b16 %v612
        %v645 = vunpack.c.l.b16 %v613
        %v646 = vunpack.c.l.b16 %v614
        %v647 = vunpack.c.l.b16 %v615
        %v648 = vunpack.c.l.b16 %v616
        %v649 = vunpack.c.l.b16 %v617
        %v650 = vunpack.c.l.b16 %v618
        %v651 = vunpack.c.l.b16 %v619
        %v652 = vpack.c.b16 %v637, %v636
        %v653 = vpack.c.b16 %v639, %v638
        %v654 = vpack.c.b16 %v641, %v640
        %v655 = vpack.c.b16 %v643, %v642
        %v656 = vpack.c.b16 %v645, %v644
        %v657 = vpack.c.b16 %v647, %v646
        %v658 = vpack.c.b16 %v649, %v648
        %v659 = vpack.c.b16 %v651, %v650
        %668 = vmatprep.subr.bf16.mxu0 0
        %669 = vmatpush1.bf16.msra.mxu0 %v652
        %670 = vmatprep.subr.bf16.mxu0 0
        %671 = vmatpush1.bf16.msra.mxu0 %v653
        %672 = vmatprep.subr.bf16.mxu0 0
        %673 = vmatpush1.bf16.msra.mxu0 %v654
        %674 = vmatprep.subr.bf16.mxu0 0
        %675 = vmatpush1.bf16.msra.mxu0 %v655
        %676 = vmatprep.subr.bf16.mxu0 0
        %677 = vmatpush1.bf16.msra.mxu0 %v656
        %678 = vmatprep.subr.bf16.mxu0 0
        %679 = vmatpush1.bf16.msra.mxu0 %v657
        %680 = vmatprep.subr.bf16.mxu0 0
        %681 = vmatpush1.bf16.msra.mxu0 %v658
        %682 = vmatprep.subr.bf16.mxu0 0
        %683 = vmatpush1.bf16.msra.mxu0 %v659
        %684 = vmatprep.subr.bf16.mxu0 0
        %685 = vmatpush1.bf16.msra.mxu0 0
        %686 = vmatprep.subr.bf16.mxu0 0
        %687 = vmatpush1.bf16.msra.mxu0 0
        %688 = vmatprep.subr.bf16.mxu0 0
        %689 = vmatpush1.bf16.msra.mxu0 0
        %690 = vmatprep.subr.bf16.mxu0 0
        %691 = vmatpush1.bf16.msra.mxu0 0
        %692 = vmatprep.subr.bf16.mxu0 0
        %693 = vmatpush1.bf16.msra.mxu0 0
        %694 = vmatprep.subr.bf16.mxu0 0
        %695 = vmatpush1.bf16.msra.mxu0 0
        %696 = vmatprep.subr.bf16.mxu0 0
        %697 = vmatpush1.bf16.msra.mxu0 0
        %698 = vmatprep.subr.bf16.mxu0 0
        %699 = vmatpush1.bf16.msra.mxu0 0
        %700 = vmatprep.mubr.bf16.mxu0 0
        %701 = vmatmul.mubr.bf16.gmra.mrb[0].mxu0 %v587
        %v702 = vpop.f32.mrb[0].mxu0
        %v703 = vadd.f32 0.0, %v702
        %v704 = vpop.f32.mrb[0].mxu0
        %v705 = vpop.f32.mrb[0].mxu0
        %v706 = vadd.f32 0.0, %v705
        %v707 = vpop.f32.mrb[0].mxu0
        %708 = vmatprep.mubr.bf16.mxu0 0
        %709 = vmatmul.mubr.bf16.gmra.mrb[0].mxu0 %v588
        %v710 = vpop.f32.mrb[0].mxu0
        %v711 = vadd.f32 0.0, %v710
        %v712 = vpop.f32.mrb[0].mxu0
        %v713 = vpop.f32.mrb[0].mxu0
        %v714 = vadd.f32 0.0, %v713
        %v715 = vpop.f32.mrb[0].mxu0
        %716 = vmatprep.mubr.bf16.mxu0 0
        %717 = vmatmul.mubr.bf16.gmra.mrb[0].mxu0 %v589
        %v718 = vpop.f32.mrb[0].mxu0
        %v719 = vadd.f32 0.0, %v718
        %v720 = vpop.f32.mrb[0].mxu0
        %v721 = vpop.f32.mrb[0].mxu0
        %v722 = vadd.f32 0.0, %v721
        %v723 = vpop.f32.mrb[0].mxu0
        %724 = vmatprep.mubr.bf16.mxu0 0
        %725 = vmatmul.mubr.bf16.gmra.mrb[0].mxu0 %v590
        %v726 = vpop.f32.mrb[0].mxu0
        %v727 = vadd.f32 0.0, %v726
        %v728 = vpop.f32.mrb[0].mxu0
        %v729 = vpop.f32.mrb[0].mxu0
        %v730 = vadd.f32 0.0, %v729
        %v731 = vpop.f32.mrb[0].mxu0
        %732 = vmatprep.mubr.bf16.mxu0 0
        %733 = vmatmul.mubr.bf16.gmra.mrb[0].mxu0 %v591
        %v734 = vpop.f32.mrb[0].mxu0
        %v735 = vadd.f32 0.0, %v734
        %v736 = vpop.f32.mrb[0].mxu0
        %v737 = vpop.f32.mrb[0].mxu0
        %v738 = vadd.f32 0.0, %v737
        %v739 = vpop.f32.mrb[0].mxu0
        %740 = vmatprep.mubr.bf16.mxu0 0
        %741 = vmatmul.mubr.bf16.gmra.mrb[0].mxu0 %v592
        %v742 = vpop.f32.mrb[0].mxu0
        %v743 = vadd.f32 0.0, %v742
        %v744 = vpop.f32.mrb[0].mxu0
        %v745 = vpop.f32.mrb[0].mxu0
        %v746 = vadd.f32 0.0, %v745
        %v747 = vpop.f32.mrb[0].mxu0
        %748 = vmatprep.mubr.bf16.mxu0 0
        %749 = vmatmul.mubr.bf16.gmra.mrb[0].mxu0 %v593
        %v750 = vpop.f32.mrb[0].mxu0
        %v751 = vadd.f32 0.0, %v750
        %v752 = vpop.f32.mrb[0].mxu0
        %v753 = vpop.f32.mrb[0].mxu0
        %v754 = vadd.f32 0.0, %v753
        %v755 = vpop.f32.mrb[0].mxu0
        %756 = vmatprep.mubr.bf16.mxu0 0
        %757 = vmatmul.mubr.bf16.gmra.mrb[0].mxu0 %v594
        %v758 = vpop.f32.mrb[0].mxu0
        %v759 = vadd.f32 0.0, %v758
        %v760 = vpop.f32.mrb[0].mxu0
        %v761 = vpop.f32.mrb[0].mxu0
        %v762 = vadd.f32 0.0, %v761
        %v763 = vpop.f32.mrb[0].mxu0
        %764 = vmatprep.mubr.bf16.mxu0 0
        %765 = vmatmul.mubr.bf16.gmra.mrb[0].mxu0 %v595
        %v766 = vpop.f32.mrb[0].mxu0
        %v767 = vadd.f32 0.0, %v766
        %v768 = vpop.f32.mrb[0].mxu0
        %v769 = vpop.f32.mrb[0].mxu0
        %v770 = vadd.f32 0.0, %v769
        %v771 = vpop.f32.mrb[0].mxu0
        %772 = vmatprep.mubr.bf16.mxu0 0
        %773 = vmatmul.mubr.bf16.gmra.mrb[0].mxu0 %v596
        %v774 = vpop.f32.mrb[0].mxu0
        %v775 = vadd.f32 0.0, %v774
        %v776 = vpop.f32.mrb[0].mxu0
        %v777 = vpop.f32.mrb[0].mxu0
        %v778 = vadd.f32 0.0, %v777
        %v779 = vpop.f32.mrb[0].mxu0
        %780 = vmatprep.mubr.bf16.mxu0 0
        %781 = vmatmul.mubr.bf16.gmra.mrb[0].mxu0 %v597
        %v782 = vpop.f32.mrb[0].mxu0
        %v783 = vadd.f32 0.0, %v782
        %v784 = vpop.f32.mrb[0].mxu0
        %v785 = vpop.f32.mrb[0].mxu0
        %v786 = vadd.f32 0.0, %v785
        %v787 = vpop.f32.mrb[0].mxu0
        %788 = vmatprep.mubr.bf16.mxu0 0
        %789 = vmatmul.mubr.bf16.gmra.mrb[0].mxu0 %v598
        %v790 = vpop.f32.mrb[0].mxu0
        %v791 = vadd.f32 0.0, %v790
        %v792 = vpop.f32.mrb[0].mxu0
        %v793 = vpop.f32.mrb[0].mxu0
        %v794 = vadd.f32 0.0, %v793
        %v795 = vpop.f32.mrb[0].mxu0
        %796 = vmatprep.mubr.bf16.mxu0 0
        %797 = vmatmul.mubr.bf16.gmra.mrb[0].mxu0 %v599
        %v798 = vpop.f32.mrb[0].mxu0
        %v799 = vadd.f32 0.0, %v798
        %v800 = vpop.f32.mrb[0].mxu0
        %v801 = vpop.f32.mrb[0].mxu0
        %v802 = vadd.f32 0.0, %v801
        %v803 = vpop.f32.mrb[0].mxu0
        %804 = vmatprep.mubr.bf16.mxu0 0
        %805 = vmatmul.mubr.bf16.gmra.mrb[0].mxu0 %v600
        %v806 = vpop.f32.mrb[0].mxu0
        %v807 = vadd.f32 0.0, %v806
        %v808 = vpop.f32.mrb[0].mxu0
        %v809 = vpop.f32.mrb[0].mxu0
        %v810 = vadd.f32 0.0, %v809
        %v811 = vpop.f32.mrb[0].mxu0
        %812 = vmatprep.mubr.bf16.mxu0 0
        %813 = vmatmul.mubr.bf16.gmra.mrb[0].mxu0 %v601
        %v814 = vpop.f32.mrb[0].mxu0
        %v815 = vadd.f32 0.0, %v814
        %v816 = vpop.f32.mrb[0].mxu0
        %v817 = vpop.f32.mrb[0].mxu0
        %v818 = vadd.f32 0.0, %v817
        %v819 = vpop.f32.mrb[0].mxu0
        %820 = vmatprep.mubr.bf16.mxu0 0
        %821 = vmatmul.mubr.bf16.gmra.mrb[0].mxu0 %v602
        %v822 = vpop.f32.mrb[0].mxu0
        %v823 = vadd.f32 0.0, %v822
        %v824 = vpop.f32.mrb[0].mxu0
        %v825 = vpop.f32.mrb[0].mxu0
        %v826 = vadd.f32 0.0, %v825
        %v827 = vpop.f32.mrb[0].mxu0
        %828 = vdwg.mxu0
        %v845 = vunpack.c.l.b16 %v539
        %v846 = vunpack.c.l.b16 %v540
        %v847 = vunpack.c.l.b16 %v541
        %v848 = vunpack.c.l.b16 %v542
        %v849 = vunpack.c.l.b16 %v543
        %v850 = vunpack.c.l.b16 %v544
        %v851 = vunpack.c.l.b16 %v545
        %v852 = vunpack.c.l.b16 %v546
        %v853 = vunpack.c.l.b16 %v547
        %v854 = vunpack.c.l.b16 %v548
        %v855 = vunpack.c.l.b16 %v549
        %v856 = vunpack.c.l.b16 %v550
        %v857 = vunpack.c.l.b16 %v551
        %v858 = vunpack.c.l.b16 %v552
        %v859 = vunpack.c.l.b16 %v553
        %v860 = vunpack.c.l.b16 %v554
        %v861 = vpack.c.b16 %v846, %v845
        %v862 = vpack.c.b16 %v848, %v847
        %v863 = vpack.c.b16 %v850, %v849
        %v864 = vpack.c.b16 %v852, %v851
        %v865 = vpack.c.b16 %v854, %v853
        %v866 = vpack.c.b16 %v856, %v855
        %v867 = vpack.c.b16 %v858, %v857
        %v868 = vpack.c.b16 %v860, %v859
        %877 = vmatprep.subr.bf16.mxu0 0
        %878 = vmatpush1.bf16.msra.mxu0 %v861
        %879 = vmatprep.subr.bf16.mxu0 0
        %880 = vmatpush1.bf16.msra.mxu0 %v862
        %881 = vmatprep.subr.bf16.mxu0 0
        %882 = vmatpush1.bf16.msra.mxu0 %v863
        %883 = vmatprep.subr.bf16.mxu0 0
        %884 = vmatpush1.bf16.msra.mxu0 %v864
        %885 = vmatprep.subr.bf16.mxu0 0
        %886 = vmatpush1.bf16.msra.mxu0 %v865
        %887 = vmatprep.subr.bf16.mxu0 0
        %888 = vmatpush1.bf16.msra.mxu0 %v866
        %889 = vmatprep.subr.bf16.mxu0 0
        %890 = vmatpush1.bf16.msra.mxu0 %v867
        %891 = vmatprep.subr.bf16.mxu0 0
        %892 = vmatpush1.bf16.msra.mxu0 %v868
        %893 = vmatprep.subr.bf16.mxu0 0
        %894 = vmatpush1.bf16.msra.mxu0 0
        %895 = vmatprep.subr.bf16.mxu0 0
        %896 = vmatpush1.bf16.msra.mxu0 0
        %897 = vmatprep.subr.bf16.mxu0 0
        %898 = vmatpush1.bf16.msra.mxu0 0
        %899 = vmatprep.subr.bf16.mxu0 0
        %900 = vmatpush1.bf16.msra.mxu0 0
        %901 = vmatprep.subr.bf16.mxu0 0
        %902 = vmatpush1.bf16.msra.mxu0 0
        %903 = vmatprep.subr.bf16.mxu0 0
        %904 = vmatpush1.bf16.msra.mxu0 0
        %905 = vmatprep.subr.bf16.mxu0 0
        %906 = vmatpush1.bf16.msra.mxu0 0
        %907 = vmatprep.subr.bf16.mxu0 0
        %908 = vmatpush1.bf16.msra.mxu0 0
        %909 = vmatprep.mubr.bf16.mxu0 0
        %910 = vmatmul.mubr.bf16.gmra.mrb[0].mxu0 %v523
        %v911 = vpop.f32.mrb[0].mxu0
        %v912 = vadd.f32 %v703, %v911
        %v913 = vpop.f32.mrb[0].mxu0
        %v914 = vpop.f32.mrb[0].mxu0
        %v915 = vadd.f32 %v706, %v914
        %v916 = vpop.f32.mrb[0].mxu0
        %917 = vmatprep.mubr.bf16.mxu0 0
        %918 = vmatmul.mubr.bf16.gmra.mrb[0].mxu0 %v524
        %v919 = vpop.f32.mrb[0].mxu0
        %v920 = vadd.f32 %v711, %v919
        %v921 = vpop.f32.mrb[0].mxu0
        %v922 = vpop.f32.mrb[0].mxu0
        %v923 = vadd.f32 %v714, %v922
        %v924 = vpop.f32.mrb[0].mxu0
        %925 = vmatprep.mubr.bf16.mxu0 0
        %926 = vmatmul.mubr.bf16.gmra.mrb[0].mxu0 %v525
        %v927 = vpop.f32.mrb[0].mxu0
        %v928 = vadd.f32 %v719, %v927
        %v929 = vpop.f32.mrb[0].mxu0
        %v930 = vpop.f32.mrb[0].mxu0
        %v931 = vadd.f32 %v722, %v930
        %v932 = vpop.f32.mrb[0].mxu0
        %933 = vmatprep.mubr.bf16.mxu0 0
        %934 = vmatmul.mubr.bf16.gmra.mrb[0].mxu0 %v526
        %v935 = vpop.f32.mrb[0].mxu0
        %v936 = vadd.f32 %v727, %v935
        %v937 = vpop.f32.mrb[0].mxu0
        %v938 = vpop.f32.mrb[0].mxu0
        %v939 = vadd.f32 %v730, %v938
        %v940 = vpop.f32.mrb[0].mxu0
        %941 = vmatprep.mubr.bf16.mxu0 0
        %942 = vmatmul.mubr.bf16.gmra.mrb[0].mxu0 %v527
        %v943 = vpop.f32.mrb[0].mxu0
        %v944 = vadd.f32 %v735, %v943
        %v945 = vpop.f32.mrb[0].mxu0
        %v946 = vpop.f32.mrb[0].mxu0
        %v947 = vadd.f32 %v738, %v946
        %v948 = vpop.f32.mrb[0].mxu0
        %949 = vmatprep.mubr.bf16.mxu0 0
        %950 = vmatmul.mubr.bf16.gmra.mrb[0].mxu0 %v528
        %v951 = vpop.f32.mrb[0].mxu0
        %v952 = vadd.f32 %v743, %v951
        %v953 = vpop.f32.mrb[0].mxu0
        %v954 = vpop.f32.mrb[0].mxu0
        %v955 = vadd.f32 %v746, %v954
        %v956 = vpop.f32.mrb[0].mxu0
        %957 = vmatprep.mubr.bf16.mxu0 0
        %958 = vmatmul.mubr.bf16.gmra.mrb[0].mxu0 %v529
        %v959 = vpop.f32.mrb[0].mxu0
        %v960 = vadd.f32 %v751, %v959
        %v961 = vpop.f32.mrb[0].mxu0
        %v962 = vpop.f32.mrb[0].mxu0
        %v963 = vadd.f32 %v754, %v962
        %v964 = vpop.f32.mrb[0].mxu0
        %965 = vmatprep.mubr.bf16.mxu0 0
        %966 = vmatmul.mubr.bf16.gmra.mrb[0].mxu0 %v530
        %v967 = vpop.f32.mrb[0].mxu0
        %v968 = vadd.f32 %v759, %v967
        %v969 = vpop.f32.mrb[0].mxu0
        %v970 = vpop.f32.mrb[0].mxu0
        %v971 = vadd.f32 %v762, %v970
        %v972 = vpop.f32.mrb[0].mxu0
        %973 = vmatprep.mubr.bf16.mxu0 0
        %974 = vmatmul.mubr.bf16.gmra.mrb[0].mxu0 %v531
        %v975 = vpop.f32.mrb[0].mxu0
        %v976 = vadd.f32 %v767, %v975
        %v977 = vpop.f32.mrb[0].mxu0
        %v978 = vpop.f32.mrb[0].mxu0
        %v979 = vadd.f32 %v770, %v978
        %v980 = vpop.f32.mrb[0].mxu0
        %981 = vmatprep.mubr.bf16.mxu0 0
        %982 = vmatmul.mubr.bf16.gmra.mrb[0].mxu0 %v532
        %v983 = vpop.f32.mrb[0].mxu0
        %v984 = vadd.f32 %v775, %v983
        %v985 = vpop.f32.mrb[0].mxu0
        %v986 = vpop.f32.mrb[0].mxu0
        %v987 = vadd.f32 %v778, %v986
        %v988 = vpop.f32.mrb[0].mxu0
        %989 = vmatprep.mubr.bf16.mxu0 0
        %990 = vmatmul.mubr.bf16.gmra.mrb[0].mxu0 %v533
        %v991 = vpop.f32.mrb[0].mxu0
        %v992 = vadd.f32 %v783, %v991
        %v993 = vpop.f32.mrb[0].mxu0
        %v994 = vpop.f32.mrb[0].mxu0
        %v995 = vadd.f32 %v786, %v994
        %v996 = vpop.f32.mrb[0].mxu0
        %997 = vmatprep.mubr.bf16.mxu0 0
        %998 = vmatmul.mubr.bf16.gmra.mrb[0].mxu0 %v534
        %v999 = vpop.f32.mrb[0].mxu0
        %v1000 = vadd.f32 %v791, %v999
        %v1001 = vpop.f32.mrb[0].mxu0
        %v1002 = vpop.f32.mrb[0].mxu0
        %v1003 = vadd.f32 %v794, %v1002
        %v1004 = vpop.f32.mrb[0].mxu0
        %1005 = vmatprep.mubr.bf16.mxu0 0
        %1006 = vmatmul.mubr.bf16.gmra.mrb[0].mxu0 %v535
        %v1007 = vpop.f32.mrb[0].mxu0
        %v1008 = vadd.f32 %v799, %v1007
        %v1009 = vpop.f32.mrb[0].mxu0
        %v1010 = vpop.f32.mrb[0].mxu0
        %v1011 = vadd.f32 %v802, %v1010
        %v1012 = vpop.f32.mrb[0].mxu0
        %1013 = vmatprep.mubr.bf16.mxu0 0
        %1014 = vmatmul.mubr.bf16.gmra.mrb[0].mxu0 %v536
        %v1015 = vpop.f32.mrb[0].mxu0
        %v1016 = vadd.f32 %v807, %v1015
        %v1017 = vpop.f32.mrb[0].mxu0
        %v1018 = vpop.f32.mrb[0].mxu0
        %v1019 = vadd.f32 %v810, %v1018
        %v1020 = vpop.f32.mrb[0].mxu0
        %1021 = vmatprep.mubr.bf16.mxu0 0
        %1022 = vmatmul.mubr.bf16.gmra.mrb[0].mxu0 %v537
        %v1023 = vpop.f32.mrb[0].mxu0
        %v1024 = vadd.f32 %v815, %v1023
        %v1025 = vpop.f32.mrb[0].mxu0
        %v1026 = vpop.f32.mrb[0].mxu0
        %v1027 = vadd.f32 %v818, %v1026
        %v1028 = vpop.f32.mrb[0].mxu0
        %1029 = vmatprep.mubr.bf16.mxu0 0
        %1030 = vmatmul.mubr.bf16.gmra.mrb[0].mxu0 %v538
        %v1031 = vpop.f32.mrb[0].mxu0
        %v1032 = vadd.f32 %v823, %v1031
        %v1033 = vpop.f32.mrb[0].mxu0
        %v1034 = vpop.f32.mrb[0].mxu0
        %v1035 = vadd.f32 %v826, %v1034
        %v1036 = vpop.f32.mrb[0].mxu0
        %1037 = vdwg.mxu0
        %v1038 = vld [vmem:[#allocation2 + $0x2] sm:$0xff]
        %v1039 = vld [vmem:[#allocation2 + $0xa] sm:$0xff]
        %v1040 = vld [vmem:[#allocation2 + $0x1a] sm:$0xff]
        %v1041 = vld [vmem:[#allocation2 + $0x22] sm:$0xff]
        %v1042 = vld [vmem:[#allocation2 + $0x32] sm:$0xff]
        %v1043 = vld [vmem:[#allocation2 + $0x3a] sm:$0xff]
        %v1044 = vld [vmem:[#allocation2 + $0x4a] sm:$0xff]
        %v1045 = vld [vmem:[#allocation2 + $0x52] sm:$0xff]
        %v1046 = vld [vmem:[#allocation2 + $0x62] sm:$0xff]
        %v1047 = vld [vmem:[#allocation2 + $0x6a] sm:$0xff]
        %v1048 = vld [vmem:[#allocation2 + $0x7a] sm:$0xff]
        %v1049 = vld [vmem:[#allocation2 + $0x82] sm:$0xff]
        %v1050 = vld [vmem:[#allocation2 + $0x92] sm:$0xff]
        %v1051 = vld [vmem:[#allocation2 + $0x9a] sm:$0xff]
        %v1052 = vld [vmem:[#allocation2 + $0xaa] sm:$0xff]
        %v1053 = vld [vmem:[#allocation2 + $0xb2] sm:$0xff]
        %v1054 = vld [vmem:[#allocation2 + $0xc2] sm:$0xff]
        %v1055 = vld [vmem:[#allocation2 + $0xca] sm:$0xff]
        %v1056 = vld [vmem:[#allocation2 + $0xda] sm:$0xff]
        %v1057 = vld [vmem:[#allocation2 + $0xe2] sm:$0xff]
        %v1058 = vld [vmem:[#allocation2 + $0xf2] sm:$0xff]
        %v1059 = vld [vmem:[#allocation2 + $0xfa] sm:$0xff]
        %v1060 = vld [vmem:[#allocation2 + $0x10a] sm:$0xff]
        %v1061 = vld [vmem:[#allocation2 + $0x112] sm:$0xff]
        %v1062 = vld [vmem:[#allocation2 + $0x122] sm:$0xff]
        %v1063 = vld [vmem:[#allocation2 + $0x12a] sm:$0xff]
        %v1064 = vld [vmem:[#allocation2 + $0x13a] sm:$0xff]
        %v1065 = vld [vmem:[#allocation2 + $0x142] sm:$0xff]
        %v1066 = vld [vmem:[#allocation2 + $0x152] sm:$0xff]
        %v1067 = vld [vmem:[#allocation2 + $0x15a] sm:$0xff]
        %v1068 = vld [vmem:[#allocation2 + $0x16a] sm:$0xff]
        %v1069 = vld [vmem:[#allocation2 + $0x172] sm:$0xff]
        %v1070 = vpack.c.bf16 %v1039, %v1038
        %v1071 = vpack.c.bf16 %v1041, %v1040
        %v1072 = vpack.c.bf16 %v1043, %v1042
        %v1073 = vpack.c.bf16 %v1045, %v1044
        %v1074 = vpack.c.bf16 %v1047, %v1046
        %v1075 = vpack.c.bf16 %v1049, %v1048
        %v1076 = vpack.c.bf16 %v1051, %v1050
        %v1077 = vpack.c.bf16 %v1053, %v1052
        %v1078 = vpack.c.bf16 %v1055, %v1054
        %v1079 = vpack.c.bf16 %v1057, %v1056
        %v1080 = vpack.c.bf16 %v1059, %v1058
        %v1081 = vpack.c.bf16 %v1061, %v1060
        %v1082 = vpack.c.bf16 %v1063, %v1062
        %v1083 = vpack.c.bf16 %v1065, %v1064
        %v1084 = vpack.c.bf16 %v1067, %v1066
        %v1085 = vpack.c.bf16 %v1069, %v1068
        %s1086 = scalar_lea.vmem %s5, 128
        %v1087 = vld [vmem:[%s1086] sm:$0xf]
        %v1088 = vld [vmem:[%s1086 + $0x4] sm:$0xf]
        %v1089 = vld [vmem:[%s1086 + $0x8] sm:$0xf]
        %v1090 = vld [vmem:[%s1086 + $0xc] sm:$0xf]
        %v1091 = vld [vmem:[%s1086 + $0x10] sm:$0xf]
        %v1092 = vld [vmem:[%s1086 + $0x14] sm:$0xf]
        %v1093 = vld [vmem:[%s1086 + $0x18] sm:$0xf]
        %v1094 = vld [vmem:[%s1086 + $0x1c] sm:$0xf]
        %v1095 = vld [vmem:[%s1086 + $0x20] sm:$0xf]
        %v1096 = vld [vmem:[%s1086 + $0x24] sm:$0xf]
        %v1097 = vld [vmem:[%s1086 + $0x28] sm:$0xf]
        %v1098 = vld [vmem:[%s1086 + $0x2c] sm:$0xf]
        %v1099 = vld [vmem:[%s1086 + $0x30] sm:$0xf]
        %v1100 = vld [vmem:[%s1086 + $0x34] sm:$0xf]
        %v1101 = vld [vmem:[%s1086 + $0x38] sm:$0xf]
        %v1102 = vld [vmem:[%s1086 + $0x3c] sm:$0xf]
        %v1119 = vunpack.c.l.b16 %v1087
        %v1120 = vunpack.c.l.b16 %v1088
        %v1121 = vunpack.c.l.b16 %v1089
        %v1122 = vunpack.c.l.b16 %v1090
        %v1123 = vunpack.c.l.b16 %v1091
        %v1124 = vunpack.c.l.b16 %v1092
        %v1125 = vunpack.c.l.b16 %v1093
        %v1126 = vunpack.c.l.b16 %v1094
        %v1127 = vunpack.c.l.b16 %v1095
        %v1128 = vunpack.c.l.b16 %v1096
        %v1129 = vunpack.c.l.b16 %v1097
        %v1130 = vunpack.c.l.b16 %v1098
        %v1131 = vunpack.c.l.b16 %v1099
        %v1132 = vunpack.c.l.b16 %v1100
        %v1133 = vunpack.c.l.b16 %v1101
        %v1134 = vunpack.c.l.b16 %v1102
        %v1135 = vpack.c.b16 %v1120, %v1119
        %v1136 = vpack.c.b16 %v1122, %v1121
        %v1137 = vpack.c.b16 %v1124, %v1123
        %v1138 = vpack.c.b16 %v1126, %v1125
        %v1139 = vpack.c.b16 %v1128, %v1127
        %v1140 = vpack.c.b16 %v1130, %v1129
        %v1141 = vpack.c.b16 %v1132, %v1131
        %v1142 = vpack.c.b16 %v1134, %v1133
        %1151 = vmatprep.subr.bf16.mxu0 0
        %1152 = vmatpush1.bf16.msra.mxu0 %v1135
        %1153 = vmatprep.subr.bf16.mxu0 0
        %1154 = vmatpush1.bf16.msra.mxu0 %v1136
        %1155 = vmatprep.subr.bf16.mxu0 0
        %1156 = vmatpush1.bf16.msra.mxu0 %v1137
        %1157 = vmatprep.subr.bf16.mxu0 0
        %1158 = vmatpush1.bf16.msra.mxu0 %v1138
        %1159 = vmatprep.subr.bf16.mxu0 0
        %1160 = vmatpush1.bf16.msra.mxu0 %v1139
        %1161 = vmatprep.subr.bf16.mxu0 0
        %1162 = vmatpush1.bf16.msra.mxu0 %v1140
        %1163 = vmatprep.subr.bf16.mxu0 0
        %1164 = vmatpush1.bf16.msra.mxu0 %v1141
        %1165 = vmatprep.subr.bf16.mxu0 0
        %1166 = vmatpush1.bf16.msra.mxu0 %v1142
        %1167 = vmatprep.subr.bf16.mxu0 0
        %1168 = vmatpush1.bf16.msra.mxu0 0
        %1169 = vmatprep.subr.bf16.mxu0 0
        %1170 = vmatpush1.bf16.msra.mxu0 0
        %1171 = vmatprep.subr.bf16.mxu0 0
        %1172 = vmatpush1.bf16.msra.mxu0 0
        %1173 = vmatprep.subr.bf16.mxu0 0
        %1174 = vmatpush1.bf16.msra.mxu0 0
        %1175 = vmatprep.subr.bf16.mxu0 0
        %1176 = vmatpush1.bf16.msra.mxu0 0
        %1177 = vmatprep.subr.bf16.mxu0 0
        %1178 = vmatpush1.bf16.msra.mxu0 0
        %1179 = vmatprep.subr.bf16.mxu0 0
        %1180 = vmatpush1.bf16.msra.mxu0 0
        %1181 = vmatprep.subr.bf16.mxu0 0
        %1182 = vmatpush1.bf16.msra.mxu0 0
        %1183 = vmatprep.mubr.bf16.mxu0 0
        %1184 = vmatmul.mubr.bf16.gmra.mrb[0].mxu0 %v1070
        %v1185 = vpop.f32.mrb[0].mxu0
        %v1186 = vadd.f32 0.0, %v1185
        %v1187 = vpop.f32.mrb[0].mxu0
        %v1188 = vpop.f32.mrb[0].mxu0
        %v1189 = vadd.f32 0.0, %v1188
        %v1190 = vpop.f32.mrb[0].mxu0
        %1191 = vmatprep.mubr.bf16.mxu0 0
        %1192 = vmatmul.mubr.bf16.gmra.mrb[0].mxu0 %v1071
        %v1193 = vpop.f32.mrb[0].mxu0
        %v1194 = vadd.f32 0.0, %v1193
        %v1195 = vpop.f32.mrb[0].mxu0
        %v1196 = vpop.f32.mrb[0].mxu0
        %v1197 = vadd.f32 0.0, %v1196
        %v1198 = vpop.f32.mrb[0].mxu0
        %1199 = vmatprep.mubr.bf16.mxu0 0
        %1200 = vmatmul.mubr.bf16.gmra.mrb[0].mxu0 %v1072
        %v1201 = vpop.f32.mrb[0].mxu0
        %v1202 = vadd.f32 0.0, %v1201
        %v1203 = vpop.f32.mrb[0].mxu0
        %v1204 = vpop.f32.mrb[0].mxu0
        %v1205 = vadd.f32 0.0, %v1204
        %v1206 = vpop.f32.mrb[0].mxu0
        %1207 = vmatprep.mubr.bf16.mxu0 0
        %1208 = vmatmul.mubr.bf16.gmra.mrb[0].mxu0 %v1073
        %v1209 = vpop.f32.mrb[0].mxu0
        %v1210 = vadd.f32 0.0, %v1209
        %v1211 = vpop.f32.mrb[0].mxu0
        %v1212 = vpop.f32.mrb[0].mxu0
        %v1213 = vadd.f32 0.0, %v1212
        %v1214 = vpop.f32.mrb[0].mxu0
        %1215 = vmatprep.mubr.bf16.mxu0 0
        %1216 = vmatmul.mubr.bf16.gmra.mrb[0].mxu0 %v1074
        %v1217 = vpop.f32.mrb[0].mxu0
        %v1218 = vadd.f32 0.0, %v1217
        %v1219 = vpop.f32.mrb[0].mxu0
        %v1220 = vpop.f32.mrb[0].mxu0
        %v1221 = vadd.f32 0.0, %v1220
        %v1222 = vpop.f32.mrb[0].mxu0
        %1223 = vmatprep.mubr.bf16.mxu0 0
        %1224 = vmatmul.mubr.bf16.gmra.mrb[0].mxu0 %v1075
        %v1225 = vpop.f32.mrb[0].mxu0
        %v1226 = vadd.f32 0.0, %v1225
        %v1227 = vpop.f32.mrb[0].mxu0
        %v1228 = vpop.f32.mrb[0].mxu0
        %v1229 = vadd.f32 0.0, %v1228
        %v1230 = vpop.f32.mrb[0].mxu0
        %1231 = vmatprep.mubr.bf16.mxu0 0
        %1232 = vmatmul.mubr.bf16.gmra.mrb[0].mxu0 %v1076
        %v1233 = vpop.f32.mrb[0].mxu0
        %v1234 = vadd.f32 0.0, %v1233
        %v1235 = vpop.f32.mrb[0].mxu0
        %v1236 = vpop.f32.mrb[0].mxu0
        %v1237 = vadd.f32 0.0, %v1236
        %v1238 = vpop.f32.mrb[0].mxu0
        %1239 = vmatprep.mubr.bf16.mxu0 0
        %1240 = vmatmul.mubr.bf16.gmra.mrb[0].mxu0 %v1077
        %v1241 = vpop.f32.mrb[0].mxu0
        %v1242 = vadd.f32 0.0, %v1241
        %v1243 = vpop.f32.mrb[0].mxu0
        %v1244 = vpop.f32.mrb[0].mxu0
        %v1245 = vadd.f32 0.0, %v1244
        %v1246 = vpop.f32.mrb[0].mxu0
        %1247 = vmatprep.mubr.bf16.mxu0 0
        %1248 = vmatmul.mubr.bf16.gmra.mrb[0].mxu0 %v1078
        %v1249 = vpop.f32.mrb[0].mxu0
        %v1250 = vadd.f32 0.0, %v1249
        %v1251 = vpop.f32.mrb[0].mxu0
        %v1252 = vpop.f32.mrb[0].mxu0
        %v1253 = vadd.f32 0.0, %v1252
        %v1254 = vpop.f32.mrb[0].mxu0
        %1255 = vmatprep.mubr.bf16.mxu0 0
        %1256 = vmatmul.mubr.bf16.gmra.mrb[0].mxu0 %v1079
        %v1257 = vpop.f32.mrb[0].mxu0
        %v1258 = vadd.f32 0.0, %v1257
        %v1259 = vpop.f32.mrb[0].mxu0
        %v1260 = vpop.f32.mrb[0].mxu0
        %v1261 = vadd.f32 0.0, %v1260
        %v1262 = vpop.f32.mrb[0].mxu0
        %1263 = vmatprep.mubr.bf16.mxu0 0
        %1264 = vmatmul.mubr.bf16.gmra.mrb[0].mxu0 %v1080
        %v1265 = vpop.f32.mrb[0].mxu0
        %v1266 = vadd.f32 0.0, %v1265
        %v1267 = vpop.f32.mrb[0].mxu0
        %v1268 = vpop.f32.mrb[0].mxu0
        %v1269 = vadd.f32 0.0, %v1268
        %v1270 = vpop.f32.mrb[0].mxu0
        %1271 = vmatprep.mubr.bf16.mxu0 0
        %1272 = vmatmul.mubr.bf16.gmra.mrb[0].mxu0 %v1081
        %v1273 = vpop.f32.mrb[0].mxu0
        %v1274 = vadd.f32 0.0, %v1273
        %v1275 = vpop.f32.mrb[0].mxu0
        %v1276 = vpop.f32.mrb[0].mxu0
        %v1277 = vadd.f32 0.0, %v1276
        %v1278 = vpop.f32.mrb[0].mxu0
        %1279 = vmatprep.mubr.bf16.mxu0 0
        %1280 = vmatmul.mubr.bf16.gmra.mrb[0].mxu0 %v1082
        %v1281 = vpop.f32.mrb[0].mxu0
        %v1282 = vadd.f32 0.0, %v1281
        %v1283 = vpop.f32.mrb[0].mxu0
        %v1284 = vpop.f32.mrb[0].mxu0
        %v1285 = vadd.f32 0.0, %v1284
        %v1286 = vpop.f32.mrb[0].mxu0
        %1287 = vmatprep.mubr.bf16.mxu0 0
        %1288 = vmatmul.mubr.bf16.gmra.mrb[0].mxu0 %v1083
        %v1289 = vpop.f32.mrb[0].mxu0
        %v1290 = vadd.f32 0.0, %v1289
        %v1291 = vpop.f32.mrb[0].mxu0
        %v1292 = vpop.f32.mrb[0].mxu0
        %v1293 = vadd.f32 0.0, %v1292
        %v1294 = vpop.f32.mrb[0].mxu0
        %1295 = vmatprep.mubr.bf16.mxu0 0
        %1296 = vmatmul.mubr.bf16.gmra.mrb[0].mxu0 %v1084
        %v1297 = vpop.f32.mrb[0].mxu0
        %v1298 = vadd.f32 0.0, %v1297
        %v1299 = vpop.f32.mrb[0].mxu0
        %v1300 = vpop.f32.mrb[0].mxu0
        %v1301 = vadd.f32 0.0, %v1300
        %v1302 = vpop.f32.mrb[0].mxu0
        %1303 = vmatprep.mubr.bf16.mxu0 0
        %1304 = vmatmul.mubr.bf16.gmra.mrb[0].mxu0 %v1085
        %v1305 = vpop.f32.mrb[0].mxu0
        %v1306 = vadd.f32 0.0, %v1305
        %v1307 = vpop.f32.mrb[0].mxu0
        %v1308 = vpop.f32.mrb[0].mxu0
        %v1309 = vadd.f32 0.0, %v1308
        %v1310 = vpop.f32.mrb[0].mxu0
        %1311 = vdwg.mxu0
        %v1312 = vadd.f32 %v912, %v1186
        %v1313 = vadd.f32 %v915, %v1189
        %v1314 = vadd.f32 %v920, %v1194
        %v1315 = vadd.f32 %v923, %v1197
        %v1316 = vadd.f32 %v928, %v1202
        %v1317 = vadd.f32 %v931, %v1205
        %v1318 = vadd.f32 %v936, %v1210
        %v1319 = vadd.f32 %v939, %v1213
        %v1320 = vadd.f32 %v944, %v1218
        %v1321 = vadd.f32 %v947, %v1221
        %v1322 = vadd.f32 %v952, %v1226
        %v1323 = vadd.f32 %v955, %v1229
        %v1324 = vadd.f32 %v960, %v1234
        %v1325 = vadd.f32 %v963, %v1237
        %v1326 = vadd.f32 %v968, %v1242
        %v1327 = vadd.f32 %v971, %v1245
        %v1328 = vadd.f32 %v976, %v1250
        %v1329 = vadd.f32 %v979, %v1253
        %v1330 = vadd.f32 %v984, %v1258
        %v1331 = vadd.f32 %v987, %v1261
        %v1332 = vadd.f32 %v992, %v1266
        %v1333 = vadd.f32 %v995, %v1269
        %v1334 = vadd.f32 %v1000, %v1274
        %v1335 = vadd.f32 %v1003, %v1277
        %v1336 = vadd.f32 %v1008, %v1282
        %v1337 = vadd.f32 %v1011, %v1285
        %v1338 = vadd.f32 %v1016, %v1290
        %v1339 = vadd.f32 %v1019, %v1293
        %v1340 = vadd.f32 %v1024, %v1298
        %v1341 = vadd.f32 %v1027, %v1301
        %v1342 = vadd.f32 %v1032, %v1306
        %v1343 = vadd.f32 %v1035, %v1309
        %v1344 = vld [vmem:[%s458] sm:$0xff]
        %v1345 = vld [vmem:[%s458 + $0x8] sm:$0xff]
        %v1346 = vld [vmem:[%s458 + $0x18] sm:$0xff]
        %v1347 = vld [vmem:[%s458 + $0x20] sm:$0xff]
        %v1348 = vld [vmem:[%s458 + $0x30] sm:$0xff]
        %v1349 = vld [vmem:[%s458 + $0x38] sm:$0xff]
        %v1350 = vld [vmem:[%s458 + $0x48] sm:$0xff]
        %v1351 = vld [vmem:[%s458 + $0x50] sm:$0xff]
        %v1352 = vld [vmem:[%s458 + $0x60] sm:$0xff]
        %v1353 = vld [vmem:[%s458 + $0x68] sm:$0xff]
        %v1354 = vld [vmem:[%s458 + $0x78] sm:$0xff]
        %v1355 = vld [vmem:[%s458 + $0x80] sm:$0xff]
        %v1356 = vld [vmem:[%s458 + $0x90] sm:$0xff]
        %v1357 = vld [vmem:[%s458 + $0x98] sm:$0xff]
        %v1358 = vld [vmem:[%s458 + $0xa8] sm:$0xff]
        %v1359 = vld [vmem:[%s458 + $0xb0] sm:$0xff]
        %v1360 = vld [vmem:[%s458 + $0xc0] sm:$0xff]
        %v1361 = vld [vmem:[%s458 + $0xc8] sm:$0xff]
        %v1362 = vld [vmem:[%s458 + $0xd8] sm:$0xff]
        %v1363 = vld [vmem:[%s458 + $0xe0] sm:$0xff]
        %v1364 = vld [vmem:[%s458 + $0xf0] sm:$0xff]
        %v1365 = vld [vmem:[%s458 + $0xf8] sm:$0xff]
        %v1366 = vld [vmem:[%s458 + $0x108] sm:$0xff]
        %v1367 = vld [vmem:[%s458 + $0x110] sm:$0xff]
        %v1368 = vld [vmem:[%s458 + $0x120] sm:$0xff]
        %v1369 = vld [vmem:[%s458 + $0x128] sm:$0xff]
        %v1370 = vld [vmem:[%s458 + $0x138] sm:$0xff]
        %v1371 = vld [vmem:[%s458 + $0x140] sm:$0xff]
        %v1372 = vld [vmem:[%s458 + $0x150] sm:$0xff]
        %v1373 = vld [vmem:[%s458 + $0x158] sm:$0xff]
        %v1374 = vld [vmem:[%s458 + $0x168] sm:$0xff]
        %v1375 = vld [vmem:[%s458 + $0x170] sm:$0xff]
        %v1376 = vpack.c.bf16 %v1345, %v1344
        %v1377 = vpack.c.bf16 %v1347, %v1346
        %v1378 = vpack.c.bf16 %v1349, %v1348
        %v1379 = vpack.c.bf16 %v1351, %v1350
        %v1380 = vpack.c.bf16 %v1353, %v1352
        %v1381 = vpack.c.bf16 %v1355, %v1354
        %v1382 = vpack.c.bf16 %v1357, %v1356
        %v1383 = vpack.c.bf16 %v1359, %v1358
        %v1384 = vpack.c.bf16 %v1361, %v1360
        %v1385 = vpack.c.bf16 %v1363, %v1362
        %v1386 = vpack.c.bf16 %v1365, %v1364
        %v1387 = vpack.c.bf16 %v1367, %v1366
        %v1388 = vpack.c.bf16 %v1369, %v1368
        %v1389 = vpack.c.bf16 %v1371, %v1370
        %v1390 = vpack.c.bf16 %v1373, %v1372
        %v1391 = vpack.c.bf16 %v1375, %v1374
        %s1392 = scalar_lea.vmem %s5, 192
        %v1393 = vld [vmem:[%s1392] sm:$0xf]
        %v1394 = vld [vmem:[%s1392 + $0x4] sm:$0xf]
        %v1395 = vld [vmem:[%s1392 + $0x8] sm:$0xf]
        %v1396 = vld [vmem:[%s1392 + $0xc] sm:$0xf]
        %v1397 = vld [vmem:[%s1392 + $0x10] sm:$0xf]
        %v1398 = vld [vmem:[%s1392 + $0x14] sm:$0xf]
        %v1399 = vld [vmem:[%s1392 + $0x18] sm:$0xf]
        %v1400 = vld [vmem:[%s1392 + $0x1c] sm:$0xf]
        %v1401 = vld [vmem:[%s1392 + $0x20] sm:$0xf]
        %v1402 = vld [vmem:[%s1392 + $0x24] sm:$0xf]
        %v1403 = vld [vmem:[%s1392 + $0x28] sm:$0xf]
        %v1404 = vld [vmem:[%s1392 + $0x2c] sm:$0xf]
        %v1405 = vld [vmem:[%s1392 + $0x30] sm:$0xf]
        %v1406 = vld [vmem:[%s1392 + $0x34] sm:$0xf]
        %v1407 = vld [vmem:[%s1392 + $0x38] sm:$0xf]
        %v1408 = vld [vmem:[%s1392 + $0x3c] sm:$0xf]
        %v1425 = vunpack.c.l.b16 %v1393
        %v1426 = vunpack.c.l.b16 %v1394
        %v1427 = vunpack.c.l.b16 %v1395
        %v1428 = vunpack.c.l.b16 %v1396
        %v1429 = vunpack.c.l.b16 %v1397
        %v1430 = vunpack.c.l.b16 %v1398
        %v1431 = vunpack.c.l.b16 %v1399
        %v1432 = vunpack.c.l.b16 %v1400
        %v1433 = vunpack.c.l.b16 %v1401
        %v1434 = vunpack.c.l.b16 %v1402
        %v1435 = vunpack.c.l.b16 %v1403
        %v1436 = vunpack.c.l.b16 %v1404
        %v1437 = vunpack.c.l.b16 %v1405
        %v1438 = vunpack.c.l.b16 %v1406
        %v1439 = vunpack.c.l.b16 %v1407
        %v1440 = vunpack.c.l.b16 %v1408
        %v1441 = vpack.c.b16 %v1426, %v1425
        %v1442 = vpack.c.b16 %v1428, %v1427
        %v1443 = vpack.c.b16 %v1430, %v1429
        %v1444 = vpack.c.b16 %v1432, %v1431
        %v1445 = vpack.c.b16 %v1434, %v1433
        %v1446 = vpack.c.b16 %v1436, %v1435
        %v1447 = vpack.c.b16 %v1438, %v1437
        %v1448 = vpack.c.b16 %v1440, %v1439
        %1457 = vmatprep.subr.bf16.mxu0 0
        %1458 = vmatpush1.bf16.msra.mxu0 %v1441
        %1459 = vmatprep.subr.bf16.mxu0 0
        %1460 = vmatpush1.bf16.msra.mxu0 %v1442
        %1461 = vmatprep.subr.bf16.mxu0 0
        %1462 = vmatpush1.bf16.msra.mxu0 %v1443
        %1463 = vmatprep.subr.bf16.mxu0 0
        %1464 = vmatpush1.bf16.msra.mxu0 %v1444
        %1465 = vmatprep.subr.bf16.mxu0 0
        %1466 = vmatpush1.bf16.msra.mxu0 %v1445
        %1467 = vmatprep.subr.bf16.mxu0 0
        %1468 = vmatpush1.bf16.msra.mxu0 %v1446
        %1469 = vmatprep.subr.bf16.mxu0 0
        %1470 = vmatpush1.bf16.msra.mxu0 %v1447
        %1471 = vmatprep.subr.bf16.mxu0 0
        %1472 = vmatpush1.bf16.msra.mxu0 %v1448
        %1473 = vmatprep.subr.bf16.mxu0 0
        %1474 = vmatpush1.bf16.msra.mxu0 0
        %1475 = vmatprep.subr.bf16.mxu0 0
        %1476 = vmatpush1.bf16.msra.mxu0 0
        %1477 = vmatprep.subr.bf16.mxu0 0
        %1478 = vmatpush1.bf16.msra.mxu0 0
        %1479 = vmatprep.subr.bf16.mxu0 0
        %1480 = vmatpush1.bf16.msra.mxu0 0
        %1481 = vmatprep.subr.bf16.mxu0 0
        %1482 = vmatpush1.bf16.msra.mxu0 0
        %1483 = vmatprep.subr.bf16.mxu0 0
        %1484 = vmatpush1.bf16.msra.mxu0 0
        %1485 = vmatprep.subr.bf16.mxu0 0
        %1486 = vmatpush1.bf16.msra.mxu0 0
        %1487 = vmatprep.subr.bf16.mxu0 0
        %1488 = vmatpush1.bf16.msra.mxu0 0
        %1489 = vmatprep.mubr.bf16.mxu0 0
        %1490 = vmatmul.mubr.bf16.gmra.mrb[0].mxu0 %v1376
        %v1491 = vpop.f32.mrb[0].mxu0
        %v1492 = vadd.f32 0.0, %v1491
        %v1493 = vpop.f32.mrb[0].mxu0
        %v1494 = vpop.f32.mrb[0].mxu0
        %v1495 = vadd.f32 0.0, %v1494
        %v1496 = vpop.f32.mrb[0].mxu0
        %1497 = vmatprep.mubr.bf16.mxu0 0
        %1498 = vmatmul.mubr.bf16.gmra.mrb[0].mxu0 %v1377
        %v1499 = vpop.f32.mrb[0].mxu0
        %v1500 = vadd.f32 0.0, %v1499
        %v1501 = vpop.f32.mrb[0].mxu0
        %v1502 = vpop.f32.mrb[0].mxu0
        %v1503 = vadd.f32 0.0, %v1502
        %v1504 = vpop.f32.mrb[0].mxu0
        %1505 = vmatprep.mubr.bf16.mxu0 0
        %1506 = vmatmul.mubr.bf16.gmra.mrb[0].mxu0 %v1378
        %v1507 = vpop.f32.mrb[0].mxu0
        %v1508 = vadd.f32 0.0, %v1507
        %v1509 = vpop.f32.mrb[0].mxu0
        %v1510 = vpop.f32.mrb[0].mxu0
        %v1511 = vadd.f32 0.0, %v1510
        %v1512 = vpop.f32.mrb[0].mxu0
        %1513 = vmatprep.mubr.bf16.mxu0 0
        %1514 = vmatmul.mubr.bf16.gmra.mrb[0].mxu0 %v1379
        %v1515 = vpop.f32.mrb[0].mxu0
        %v1516 = vadd.f32 0.0, %v1515
        %v1517 = vpop.f32.mrb[0].mxu0
        %v1518 = vpop.f32.mrb[0].mxu0
        %v1519 = vadd.f32 0.0, %v1518
        %v1520 = vpop.f32.mrb[0].mxu0
        %1521 = vmatprep.mubr.bf16.mxu0 0
        %1522 = vmatmul.mubr.bf16.gmra.mrb[0].mxu0 %v1380
        %v1523 = vpop.f32.mrb[0].mxu0
        %v1524 = vadd.f32 0.0, %v1523
        %v1525 = vpop.f32.mrb[0].mxu0
        %v1526 = vpop.f32.mrb[0].mxu0
        %v1527 = vadd.f32 0.0, %v1526
        %v1528 = vpop.f32.mrb[0].mxu0
        %1529 = vmatprep.mubr.bf16.mxu0 0
        %1530 = vmatmul.mubr.bf16.gmra.mrb[0].mxu0 %v1381
        %v1531 = vpop.f32.mrb[0].mxu0
        %v1532 = vadd.f32 0.0, %v1531
        %v1533 = vpop.f32.mrb[0].mxu0
        %v1534 = vpop.f32.mrb[0].mxu0
        %v1535 = vadd.f32 0.0, %v1534
        %v1536 = vpop.f32.mrb[0].mxu0
        %1537 = vmatprep.mubr.bf16.mxu0 0
        %1538 = vmatmul.mubr.bf16.gmra.mrb[0].mxu0 %v1382
        %v1539 = vpop.f32.mrb[0].mxu0
        %v1540 = vadd.f32 0.0, %v1539
        %v1541 = vpop.f32.mrb[0].mxu0
        %v1542 = vpop.f32.mrb[0].mxu0
        %v1543 = vadd.f32 0.0, %v1542
        %v1544 = vpop.f32.mrb[0].mxu0
        %1545 = vmatprep.mubr.bf16.mxu0 0
        %1546 = vmatmul.mubr.bf16.gmra.mrb[0].mxu0 %v1383
        %v1547 = vpop.f32.mrb[0].mxu0
        %v1548 = vadd.f32 0.0, %v1547
        %v1549 = vpop.f32.mrb[0].mxu0
        %v1550 = vpop.f32.mrb[0].mxu0
        %v1551 = vadd.f32 0.0, %v1550
        %v1552 = vpop.f32.mrb[0].mxu0
        %1553 = vmatprep.mubr.bf16.mxu0 0
        %1554 = vmatmul.mubr.bf16.gmra.mrb[0].mxu0 %v1384
        %v1555 = vpop.f32.mrb[0].mxu0
        %v1556 = vadd.f32 0.0, %v1555
        %v1557 = vpop.f32.mrb[0].mxu0
        %v1558 = vpop.f32.mrb[0].mxu0
        %v1559 = vadd.f32 0.0, %v1558
        %v1560 = vpop.f32.mrb[0].mxu0
        %1561 = vmatprep.mubr.bf16.mxu0 0
        %1562 = vmatmul.mubr.bf16.gmra.mrb[0].mxu0 %v1385
        %v1563 = vpop.f32.mrb[0].mxu0
        %v1564 = vadd.f32 0.0, %v1563
        %v1565 = vpop.f32.mrb[0].mxu0
        %v1566 = vpop.f32.mrb[0].mxu0
        %v1567 = vadd.f32 0.0, %v1566
        %v1568 = vpop.f32.mrb[0].mxu0
        %1569 = vmatprep.mubr.bf16.mxu0 0
        %1570 = vmatmul.mubr.bf16.gmra.mrb[0].mxu0 %v1386
        %v1571 = vpop.f32.mrb[0].mxu0
        %v1572 = vadd.f32 0.0, %v1571
        %v1573 = vpop.f32.mrb[0].mxu0
        %v1574 = vpop.f32.mrb[0].mxu0
        %v1575 = vadd.f32 0.0, %v1574
        %v1576 = vpop.f32.mrb[0].mxu0
        %1577 = vmatprep.mubr.bf16.mxu0 0
        %1578 = vmatmul.mubr.bf16.gmra.mrb[0].mxu0 %v1387
        %v1579 = vpop.f32.mrb[0].mxu0
        %v1580 = vadd.f32 0.0, %v1579
        %v1581 = vpop.f32.mrb[0].mxu0
        %v1582 = vpop.f32.mrb[0].mxu0
        %v1583 = vadd.f32 0.0, %v1582
        %v1584 = vpop.f32.mrb[0].mxu0
        %1585 = vmatprep.mubr.bf16.mxu0 0
        %1586 = vmatmul.mubr.bf16.gmra.mrb[0].mxu0 %v1388
        %v1587 = vpop.f32.mrb[0].mxu0
        %v1588 = vadd.f32 0.0, %v1587
        %v1589 = vpop.f32.mrb[0].mxu0
        %v1590 = vpop.f32.mrb[0].mxu0
        %v1591 = vadd.f32 0.0, %v1590
        %v1592 = vpop.f32.mrb[0].mxu0
        %1593 = vmatprep.mubr.bf16.mxu0 0
        %1594 = vmatmul.mubr.bf16.gmra.mrb[0].mxu0 %v1389
        %v1595 = vpop.f32.mrb[0].mxu0
        %v1596 = vadd.f32 0.0, %v1595
        %v1597 = vpop.f32.mrb[0].mxu0
        %v1598 = vpop.f32.mrb[0].mxu0
        %v1599 = vadd.f32 0.0, %v1598
        %v1600 = vpop.f32.mrb[0].mxu0
        %1601 = vmatprep.mubr.bf16.mxu0 0
        %1602 = vmatmul.mubr.bf16.gmra.mrb[0].mxu0 %v1390
        %v1603 = vpop.f32.mrb[0].mxu0
        %v1604 = vadd.f32 0.0, %v1603
        %v1605 = vpop.f32.mrb[0].mxu0
        %v1606 = vpop.f32.mrb[0].mxu0
        %v1607 = vadd.f32 0.0, %v1606
        %v1608 = vpop.f32.mrb[0].mxu0
        %1609 = vmatprep.mubr.bf16.mxu0 0
        %1610 = vmatmul.mubr.bf16.gmra.mrb[0].mxu0 %v1391
        %v1611 = vpop.f32.mrb[0].mxu0
        %v1612 = vadd.f32 0.0, %v1611
        %v1613 = vpop.f32.mrb[0].mxu0
        %v1614 = vpop.f32.mrb[0].mxu0
        %v1615 = vadd.f32 0.0, %v1614
        %v1616 = vpop.f32.mrb[0].mxu0
        %1617 = vdwg.mxu0
        %v1618 = vadd.f32 %v1312, %v1492
        %v1619 = vadd.f32 %v1313, %v1495
        %v1620 = vadd.f32 %v1314, %v1500
        %v1621 = vadd.f32 %v1315, %v1503
        %v1622 = vadd.f32 %v1316, %v1508
        %v1623 = vadd.f32 %v1317, %v1511
        %v1624 = vadd.f32 %v1318, %v1516
        %v1625 = vadd.f32 %v1319, %v1519
        %v1626 = vadd.f32 %v1320, %v1524
        %v1627 = vadd.f32 %v1321, %v1527
        %v1628 = vadd.f32 %v1322, %v1532
        %v1629 = vadd.f32 %v1323, %v1535
        %v1630 = vadd.f32 %v1324, %v1540
        %v1631 = vadd.f32 %v1325, %v1543
        %v1632 = vadd.f32 %v1326, %v1548
        %v1633 = vadd.f32 %v1327, %v1551
        %v1634 = vadd.f32 %v1328, %v1556
        %v1635 = vadd.f32 %v1329, %v1559
        %v1636 = vadd.f32 %v1330, %v1564
        %v1637 = vadd.f32 %v1331, %v1567
        %v1638 = vadd.f32 %v1332, %v1572
        %v1639 = vadd.f32 %v1333, %v1575
        %v1640 = vadd.f32 %v1334, %v1580
        %v1641 = vadd.f32 %v1335, %v1583
        %v1642 = vadd.f32 %v1336, %v1588
        %v1643 = vadd.f32 %v1337, %v1591
        %v1644 = vadd.f32 %v1338, %v1596
        %v1645 = vadd.f32 %v1339, %v1599
        %v1646 = vadd.f32 %v1340, %v1604
        %v1647 = vadd.f32 %v1341, %v1607
        %v1648 = vadd.f32 %v1342, %v1612
        %v1649 = vadd.f32 %v1343, %v1615
        %v1650 = vld [vmem:[%s458 + $0x1] sm:$0xff]
        %v1651 = vld [vmem:[%s458 + $0x9] sm:$0xff]
        %v1652 = vld [vmem:[%s458 + $0x19] sm:$0xff]
        %v1653 = vld [vmem:[%s458 + $0x21] sm:$0xff]
        %v1654 = vld [vmem:[%s458 + $0x31] sm:$0xff]
        %v1655 = vld [vmem:[%s458 + $0x39] sm:$0xff]
        %v1656 = vld [vmem:[%s458 + $0x49] sm:$0xff]
        %v1657 = vld [vmem:[%s458 + $0x51] sm:$0xff]
        %v1658 = vld [vmem:[%s458 + $0x61] sm:$0xff]
        %v1659 = vld [vmem:[%s458 + $0x69] sm:$0xff]
        %v1660 = vld [vmem:[%s458 + $0x79] sm:$0xff]
        %v1661 = vld [vmem:[%s458 + $0x81] sm:$0xff]
        %v1662 = vld [vmem:[%s458 + $0x91] sm:$0xff]
        %v1663 = vld [vmem:[%s458 + $0x99] sm:$0xff]
        %v1664 = vld [vmem:[%s458 + $0xa9] sm:$0xff]
        %v1665 = vld [vmem:[%s458 + $0xb1] sm:$0xff]
        %v1666 = vld [vmem:[%s458 + $0xc1] sm:$0xff]
        %v1667 = vld [vmem:[%s458 + $0xc9] sm:$0xff]
        %v1668 = vld [vmem:[%s458 + $0xd9] sm:$0xff]
        %v1669 = vld [vmem:[%s458 + $0xe1] sm:$0xff]
        %v1670 = vld [vmem:[%s458 + $0xf1] sm:$0xff]
        %v1671 = vld [vmem:[%s458 + $0xf9] sm:$0xff]
        %v1672 = vld [vmem:[%s458 + $0x109] sm:$0xff]
        %v1673 = vld [vmem:[%s458 + $0x111] sm:$0xff]
        %v1674 = vld [vmem:[%s458 + $0x121] sm:$0xff]
        %v1675 = vld [vmem:[%s458 + $0x129] sm:$0xff]
        %v1676 = vld [vmem:[%s458 + $0x139] sm:$0xff]
        %v1677 = vld [vmem:[%s458 + $0x141] sm:$0xff]
        %v1678 = vld [vmem:[%s458 + $0x151] sm:$0xff]
        %v1679 = vld [vmem:[%s458 + $0x159] sm:$0xff]
        %v1680 = vld [vmem:[%s458 + $0x169] sm:$0xff]
        %v1681 = vld [vmem:[%s458 + $0x171] sm:$0xff]
        %v1682 = vpack.c.bf16 %v1651, %v1650
        %v1683 = vpack.c.bf16 %v1653, %v1652
        %v1684 = vpack.c.bf16 %v1655, %v1654
        %v1685 = vpack.c.bf16 %v1657, %v1656
        %v1686 = vpack.c.bf16 %v1659, %v1658
        %v1687 = vpack.c.bf16 %v1661, %v1660
        %v1688 = vpack.c.bf16 %v1663, %v1662
        %v1689 = vpack.c.bf16 %v1665, %v1664
        %v1690 = vpack.c.bf16 %v1667, %v1666
        %v1691 = vpack.c.bf16 %v1669, %v1668
        %v1692 = vpack.c.bf16 %v1671, %v1670
        %v1693 = vpack.c.bf16 %v1673, %v1672
        %v1694 = vpack.c.bf16 %v1675, %v1674
        %v1695 = vpack.c.bf16 %v1677, %v1676
        %v1696 = vpack.c.bf16 %v1679, %v1678
        %v1697 = vpack.c.bf16 %v1681, %v1680
        %s1698 = scalar_lea.vmem %s5, 256
        %v1699 = vld [vmem:[%s1698] sm:$0xf]
        %v1700 = vld [vmem:[%s1698 + $0x4] sm:$0xf]
        %v1701 = vld [vmem:[%s1698 + $0x8] sm:$0xf]
        %v1702 = vld [vmem:[%s1698 + $0xc] sm:$0xf]
        %v1703 = vld [vmem:[%s1698 + $0x10] sm:$0xf]
        %v1704 = vld [vmem:[%s1698 + $0x14] sm:$0xf]
        %v1705 = vld [vmem:[%s1698 + $0x18] sm:$0xf]
        %v1706 = vld [vmem:[%s1698 + $0x1c] sm:$0xf]
        %v1707 = vld [vmem:[%s1698 + $0x20] sm:$0xf]
        %v1708 = vld [vmem:[%s1698 + $0x24] sm:$0xf]
        %v1709 = vld [vmem:[%s1698 + $0x28] sm:$0xf]
        %v1710 = vld [vmem:[%s1698 + $0x2c] sm:$0xf]
        %v1711 = vld [vmem:[%s1698 + $0x30] sm:$0xf]
        %v1712 = vld [vmem:[%s1698 + $0x34] sm:$0xf]
        %v1713 = vld [vmem:[%s1698 + $0x38] sm:$0xf]
        %v1714 = vld [vmem:[%s1698 + $0x3c] sm:$0xf]
        %v1731 = vunpack.c.l.b16 %v1699
        %v1732 = vunpack.c.l.b16 %v1700
        %v1733 = vunpack.c.l.b16 %v1701
        %v1734 = vunpack.c.l.b16 %v1702
        %v1735 = vunpack.c.l.b16 %v1703
        %v1736 = vunpack.c.l.b16 %v1704
        %v1737 = vunpack.c.l.b16 %v1705
        %v1738 = vunpack.c.l.b16 %v1706
        %v1739 = vunpack.c.l.b16 %v1707
        %v1740 = vunpack.c.l.b16 %v1708
        %v1741 = vunpack.c.l.b16 %v1709
        %v1742 = vunpack.c.l.b16 %v1710
        %v1743 = vunpack.c.l.b16 %v1711
        %v1744 = vunpack.c.l.b16 %v1712
        %v1745 = vunpack.c.l.b16 %v1713
        %v1746 = vunpack.c.l.b16 %v1714
        %v1747 = vpack.c.b16 %v1732, %v1731
        %v1748 = vpack.c.b16 %v1734, %v1733
        %v1749 = vpack.c.b16 %v1736, %v1735
        %v1750 = vpack.c.b16 %v1738, %v1737
        %v1751 = vpack.c.b16 %v1740, %v1739
        %v1752 = vpack.c.b16 %v1742, %v1741
        %v1753 = vpack.c.b16 %v1744, %v1743
        %v1754 = vpack.c.b16 %v1746, %v1745
        %1763 = vmatprep.subr.bf16.mxu0 0
        %1764 = vmatpush1.bf16.msra.mxu0 %v1747
        %1765 = vmatprep.subr.bf16.mxu0 0
        %1766 = vmatpush1.bf16.msra.mxu0 %v1748
        %1767 = vmatprep.subr.bf16.mxu0 0
        %1768 = vmatpush1.bf16.msra.mxu0 %v1749
        %1769 = vmatprep.subr.bf16.mxu0 0
        %1770 = vmatpush1.bf16.msra.mxu0 %v1750
        %1771 = vmatprep.subr.bf16.mxu0 0
        %1772 = vmatpush1.bf16.msra.mxu0 %v1751
        %1773 = vmatprep.subr.bf16.mxu0 0
        %1774 = vmatpush1.bf16.msra.mxu0 %v1752
        %1775 = vmatprep.subr.bf16.mxu0 0
        %1776 = vmatpush1.bf16.msra.mxu0 %v1753
        %1777 = vmatprep.subr.bf16.mxu0 0
        %1778 = vmatpush1.bf16.msra.mxu0 %v1754
        %1779 = vmatprep.subr.bf16.mxu0 0
        %1780 = vmatpush1.bf16.msra.mxu0 0
        %1781 = vmatprep.subr.bf16.mxu0 0
        %1782 = vmatpush1.bf16.msra.mxu0 0
        %1783 = vmatprep.subr.bf16.mxu0 0
        %1784 = vmatpush1.bf16.msra.mxu0 0
        %1785 = vmatprep.subr.bf16.mxu0 0
        %1786 = vmatpush1.bf16.msra.mxu0 0
        %1787 = vmatprep.subr.bf16.mxu0 0
        %1788 = vmatpush1.bf16.msra.mxu0 0
        %1789 = vmatprep.subr.bf16.mxu0 0
        %1790 = vmatpush1.bf16.msra.mxu0 0
        %1791 = vmatprep.subr.bf16.mxu0 0
        %1792 = vmatpush1.bf16.msra.mxu0 0
        %1793 = vmatprep.subr.bf16.mxu0 0
        %1794 = vmatpush1.bf16.msra.mxu0 0
        %1795 = vmatprep.mubr.bf16.mxu0 0
        %1796 = vmatmul.mubr.bf16.gmra.mrb[0].mxu0 %v1682
        %v1797 = vpop.f32.mrb[0].mxu0
        %v1798 = vadd.f32 0.0, %v1797
        %v1799 = vpop.f32.mrb[0].mxu0
        %v1800 = vpop.f32.mrb[0].mxu0
        %v1801 = vadd.f32 0.0, %v1800
        %v1802 = vpop.f32.mrb[0].mxu0
        %1803 = vmatprep.mubr.bf16.mxu0 0
        %1804 = vmatmul.mubr.bf16.gmra.mrb[0].mxu0 %v1683
        %v1805 = vpop.f32.mrb[0].mxu0
        %v1806 = vadd.f32 0.0, %v1805
        %v1807 = vpop.f32.mrb[0].mxu0
        %v1808 = vpop.f32.mrb[0].mxu0
        %v1809 = vadd.f32 0.0, %v1808
        %v1810 = vpop.f32.mrb[0].mxu0
        %1811 = vmatprep.mubr.bf16.mxu0 0
        %1812 = vmatmul.mubr.bf16.gmra.mrb[0].mxu0 %v1684
        %v1813 = vpop.f32.mrb[0].mxu0
        %v1814 = vadd.f32 0.0, %v1813
        %v1815 = vpop.f32.mrb[0].mxu0
        %v1816 = vpop.f32.mrb[0].mxu0
        %v1817 = vadd.f32 0.0, %v1816
        %v1818 = vpop.f32.mrb[0].mxu0
        %1819 = vmatprep.mubr.bf16.mxu0 0
        %1820 = vmatmul.mubr.bf16.gmra.mrb[0].mxu0 %v1685
        %v1821 = vpop.f32.mrb[0].mxu0
        %v1822 = vadd.f32 0.0, %v1821
        %v1823 = vpop.f32.mrb[0].mxu0
        %v1824 = vpop.f32.mrb[0].mxu0
        %v1825 = vadd.f32 0.0, %v1824
        %v1826 = vpop.f32.mrb[0].mxu0
        %1827 = vmatprep.mubr.bf16.mxu0 0
        %1828 = vmatmul.mubr.bf16.gmra.mrb[0].mxu0 %v1686
        %v1829 = vpop.f32.mrb[0].mxu0
        %v1830 = vadd.f32 0.0, %v1829
        %v1831 = vpop.f32.mrb[0].mxu0
        %v1832 = vpop.f32.mrb[0].mxu0
        %v1833 = vadd.f32 0.0, %v1832
        %v1834 = vpop.f32.mrb[0].mxu0
        %1835 = vmatprep.mubr.bf16.mxu0 0
        %1836 = vmatmul.mubr.bf16.gmra.mrb[0].mxu0 %v1687
        %v1837 = vpop.f32.mrb[0].mxu0
        %v1838 = vadd.f32 0.0, %v1837
        %v1839 = vpop.f32.mrb[0].mxu0
        %v1840 = vpop.f32.mrb[0].mxu0
        %v1841 = vadd.f32 0.0, %v1840
        %v1842 = vpop.f32.mrb[0].mxu0
        %1843 = vmatprep.mubr.bf16.mxu0 0
        %1844 = vmatmul.mubr.bf16.gmra.mrb[0].mxu0 %v1688
        %v1845 = vpop.f32.mrb[0].mxu0
        %v1846 = vadd.f32 0.0, %v1845
        %v1847 = vpop.f32.mrb[0].mxu0
        %v1848 = vpop.f32.mrb[0].mxu0
        %v1849 = vadd.f32 0.0, %v1848
        %v1850 = vpop.f32.mrb[0].mxu0
        %1851 = vmatprep.mubr.bf16.mxu0 0
        %1852 = vmatmul.mubr.bf16.gmra.mrb[0].mxu0 %v1689
        %v1853 = vpop.f32.mrb[0].mxu0
        %v1854 = vadd.f32 0.0, %v1853
        %v1855 = vpop.f32.mrb[0].mxu0
        %v1856 = vpop.f32.mrb[0].mxu0
        %v1857 = vadd.f32 0.0, %v1856
        %v1858 = vpop.f32.mrb[0].mxu0
        %1859 = vmatprep.mubr.bf16.mxu0 0
        %1860 = vmatmul.mubr.bf16.gmra.mrb[0].mxu0 %v1690
        %v1861 = vpop.f32.mrb[0].mxu0
        %v1862 = vadd.f32 0.0, %v1861
        %v1863 = vpop.f32.mrb[0].mxu0
        %v1864 = vpop.f32.mrb[0].mxu0
        %v1865 = vadd.f32 0.0, %v1864
        %v1866 = vpop.f32.mrb[0].mxu0
        %1867 = vmatprep.mubr.bf16.mxu0 0
        %1868 = vmatmul.mubr.bf16.gmra.mrb[0].mxu0 %v1691
        %v1869 = vpop.f32.mrb[0].mxu0
        %v1870 = vadd.f32 0.0, %v1869
        %v1871 = vpop.f32.mrb[0].mxu0
        %v1872 = vpop.f32.mrb[0].mxu0
        %v1873 = vadd.f32 0.0, %v1872
        %v1874 = vpop.f32.mrb[0].mxu0
        %1875 = vmatprep.mubr.bf16.mxu0 0
        %1876 = vmatmul.mubr.bf16.gmra.mrb[0].mxu0 %v1692
        %v1877 = vpop.f32.mrb[0].mxu0
        %v1878 = vadd.f32 0.0, %v1877
        %v1879 = vpop.f32.mrb[0].mxu0
        %v1880 = vpop.f32.mrb[0].mxu0
        %v1881 = vadd.f32 0.0, %v1880
        %v1882 = vpop.f32.mrb[0].mxu0
        %1883 = vmatprep.mubr.bf16.mxu0 0
        %1884 = vmatmul.mubr.bf16.gmra.mrb[0].mxu0 %v1693
        %v1885 = vpop.f32.mrb[0].mxu0
        %v1886 = vadd.f32 0.0, %v1885
        %v1887 = vpop.f32.mrb[0].mxu0
        %v1888 = vpop.f32.mrb[0].mxu0
        %v1889 = vadd.f32 0.0, %v1888
        %v1890 = vpop.f32.mrb[0].mxu0
        %1891 = vmatprep.mubr.bf16.mxu0 0
        %1892 = vmatmul.mubr.bf16.gmra.mrb[0].mxu0 %v1694
        %v1893 = vpop.f32.mrb[0].mxu0
        %v1894 = vadd.f32 0.0, %v1893
        %v1895 = vpop.f32.mrb[0].mxu0
        %v1896 = vpop.f32.mrb[0].mxu0
        %v1897 = vadd.f32 0.0, %v1896
        %v1898 = vpop.f32.mrb[0].mxu0
        %1899 = vmatprep.mubr.bf16.mxu0 0
        %1900 = vmatmul.mubr.bf16.gmra.mrb[0].mxu0 %v1695
        %v1901 = vpop.f32.mrb[0].mxu0
        %v1902 = vadd.f32 0.0, %v1901
        %v1903 = vpop.f32.mrb[0].mxu0
        %v1904 = vpop.f32.mrb[0].mxu0
        %v1905 = vadd.f32 0.0, %v1904
        %v1906 = vpop.f32.mrb[0].mxu0
        %1907 = vmatprep.mubr.bf16.mxu0 0
        %1908 = vmatmul.mubr.bf16.gmra.mrb[0].mxu0 %v1696
        %v1909 = vpop.f32.mrb[0].mxu0
        %v1910 = vadd.f32 0.0, %v1909
        %v1911 = vpop.f32.mrb[0].mxu0
        %v1912 = vpop.f32.mrb[0].mxu0
        %v1913 = vadd.f32 0.0, %v1912
        %v1914 = vpop.f32.mrb[0].mxu0
        %1915 = vmatprep.mubr.bf16.mxu0 0
        %1916 = vmatmul.mubr.bf16.gmra.mrb[0].mxu0 %v1697
        %v1917 = vpop.f32.mrb[0].mxu0
        %v1918 = vadd.f32 0.0, %v1917
        %v1919 = vpop.f32.mrb[0].mxu0
        %v1920 = vpop.f32.mrb[0].mxu0
        %v1921 = vadd.f32 0.0, %v1920
        %v1922 = vpop.f32.mrb[0].mxu0
        %1923 = vdwg.mxu0
        %v1924 = vadd.f32 %v1618, %v1798
        %v1925 = vadd.f32 %v1619, %v1801
        %v1926 = vadd.f32 %v1620, %v1806
        %v1927 = vadd.f32 %v1621, %v1809
        %v1928 = vadd.f32 %v1622, %v1814
        %v1929 = vadd.f32 %v1623, %v1817
        %v1930 = vadd.f32 %v1624, %v1822
        %v1931 = vadd.f32 %v1625, %v1825
        %v1932 = vadd.f32 %v1626, %v1830
        %v1933 = vadd.f32 %v1627, %v1833
        %v1934 = vadd.f32 %v1628, %v1838
        %v1935 = vadd.f32 %v1629, %v1841
        %v1936 = vadd.f32 %v1630, %v1846
        %v1937 = vadd.f32 %v1631, %v1849
        %v1938 = vadd.f32 %v1632, %v1854
        %v1939 = vadd.f32 %v1633, %v1857
        %v1940 = vadd.f32 %v1634, %v1862
        %v1941 = vadd.f32 %v1635, %v1865
        %v1942 = vadd.f32 %v1636, %v1870
        %v1943 = vadd.f32 %v1637, %v1873
        %v1944 = vadd.f32 %v1638, %v1878
        %v1945 = vadd.f32 %v1639, %v1881
        %v1946 = vadd.f32 %v1640, %v1886
        %v1947 = vadd.f32 %v1641, %v1889
        %v1948 = vadd.f32 %v1642, %v1894
        %v1949 = vadd.f32 %v1643, %v1897
        %v1950 = vadd.f32 %v1644, %v1902
        %v1951 = vadd.f32 %v1645, %v1905
        %v1952 = vadd.f32 %v1646, %v1910
        %v1953 = vadd.f32 %v1647, %v1913
        %v1954 = vadd.f32 %v1648, %v1918
        %v1955 = vadd.f32 %v1649, %v1921
        %v1956 = vld [vmem:[%s458 + $0x2] sm:$0xff]
        %v1957 = vld [vmem:[%s458 + $0xa] sm:$0xff]
        %v1958 = vld [vmem:[%s458 + $0x1a] sm:$0xff]
        %v1959 = vld [vmem:[%s458 + $0x22] sm:$0xff]
        %v1960 = vld [vmem:[%s458 + $0x32] sm:$0xff]
        %v1961 = vld [vmem:[%s458 + $0x3a] sm:$0xff]
        %v1962 = vld [vmem:[%s458 + $0x4a] sm:$0xff]
        %v1963 = vld [vmem:[%s458 + $0x52] sm:$0xff]
        %v1964 = vld [vmem:[%s458 + $0x62] sm:$0xff]
        %v1965 = vld [vmem:[%s458 + $0x6a] sm:$0xff]
        %v1966 = vld [vmem:[%s458 + $0x7a] sm:$0xff]
        %v1967 = vld [vmem:[%s458 + $0x82] sm:$0xff]
        %v1968 = vld [vmem:[%s458 + $0x92] sm:$0xff]
        %v1969 = vld [vmem:[%s458 + $0x9a] sm:$0xff]
        %v1970 = vld [vmem:[%s458 + $0xaa] sm:$0xff]
        %v1971 = vld [vmem:[%s458 + $0xb2] sm:$0xff]
        %v1972 = vld [vmem:[%s458 + $0xc2] sm:$0xff]
        %v1973 = vld [vmem:[%s458 + $0xca] sm:$0xff]
        %v1974 = vld [vmem:[%s458 + $0xda] sm:$0xff]
        %v1975 = vld [vmem:[%s458 + $0xe2] sm:$0xff]
        %v1976 = vld [vmem:[%s458 + $0xf2] sm:$0xff]
        %v1977 = vld [vmem:[%s458 + $0xfa] sm:$0xff]
        %v1978 = vld [vmem:[%s458 + $0x10a] sm:$0xff]
        %v1979 = vld [vmem:[%s458 + $0x112] sm:$0xff]
        %v1980 = vld [vmem:[%s458 + $0x122] sm:$0xff]
        %v1981 = vld [vmem:[%s458 + $0x12a] sm:$0xff]
        %v1982 = vld [vmem:[%s458 + $0x13a] sm:$0xff]
        %v1983 = vld [vmem:[%s458 + $0x142] sm:$0xff]
        %v1984 = vld [vmem:[%s458 + $0x152] sm:$0xff]
        %v1985 = vld [vmem:[%s458 + $0x15a] sm:$0xff]
        %v1986 = vld [vmem:[%s458 + $0x16a] sm:$0xff]
        %v1987 = vld [vmem:[%s458 + $0x172] sm:$0xff]
        %v1988 = vpack.c.bf16 %v1957, %v1956
        %v1989 = vpack.c.bf16 %v1959, %v1958
        %v1990 = vpack.c.bf16 %v1961, %v1960
        %v1991 = vpack.c.bf16 %v1963, %v1962
        %v1992 = vpack.c.bf16 %v1965, %v1964
        %v1993 = vpack.c.bf16 %v1967, %v1966
        %v1994 = vpack.c.bf16 %v1969, %v1968
        %v1995 = vpack.c.bf16 %v1971, %v1970
        %v1996 = vpack.c.bf16 %v1973, %v1972
        %v1997 = vpack.c.bf16 %v1975, %v1974
        %v1998 = vpack.c.bf16 %v1977, %v1976
        %v1999 = vpack.c.bf16 %v1979, %v1978
        %v2000 = vpack.c.bf16 %v1981, %v1980
        %v2001 = vpack.c.bf16 %v1983, %v1982
        %v2002 = vpack.c.bf16 %v1985, %v1984
        %v2003 = vpack.c.bf16 %v1987, %v1986
        %s2004 = scalar_lea.vmem %s5, 320
        %v2005 = vld [vmem:[%s2004] sm:$0xf]
        %v2006 = vld [vmem:[%s2004 + $0x4] sm:$0xf]
        %v2007 = vld [vmem:[%s2004 + $0x8] sm:$0xf]
        %v2008 = vld [vmem:[%s2004 + $0xc] sm:$0xf]
        %v2009 = vld [vmem:[%s2004 + $0x10] sm:$0xf]
        %v2010 = vld [vmem:[%s2004 + $0x14] sm:$0xf]
        %v2011 = vld [vmem:[%s2004 + $0x18] sm:$0xf]
        %v2012 = vld [vmem:[%s2004 + $0x1c] sm:$0xf]
        %v2013 = vld [vmem:[%s2004 + $0x20] sm:$0xf]
        %v2014 = vld [vmem:[%s2004 + $0x24] sm:$0xf]
        %v2015 = vld [vmem:[%s2004 + $0x28] sm:$0xf]
        %v2016 = vld [vmem:[%s2004 + $0x2c] sm:$0xf]
        %v2017 = vld [vmem:[%s2004 + $0x30] sm:$0xf]
        %v2018 = vld [vmem:[%s2004 + $0x34] sm:$0xf]
        %v2019 = vld [vmem:[%s2004 + $0x38] sm:$0xf]
        %v2020 = vld [vmem:[%s2004 + $0x3c] sm:$0xf]
        %v2037 = vunpack.c.l.b16 %v2005
        %v2038 = vunpack.c.l.b16 %v2006
        %v2039 = vunpack.c.l.b16 %v2007
        %v2040 = vunpack.c.l.b16 %v2008
        %v2041 = vunpack.c.l.b16 %v2009
        %v2042 = vunpack.c.l.b16 %v2010
        %v2043 = vunpack.c.l.b16 %v2011
        %v2044 = vunpack.c.l.b16 %v2012
        %v2045 = vunpack.c.l.b16 %v2013
        %v2046 = vunpack.c.l.b16 %v2014
        %v2047 = vunpack.c.l.b16 %v2015
        %v2048 = vunpack.c.l.b16 %v2016
        %v2049 = vunpack.c.l.b16 %v2017
        %v2050 = vunpack.c.l.b16 %v2018
        %v2051 = vunpack.c.l.b16 %v2019
        %v2052 = vunpack.c.l.b16 %v2020
        %v2053 = vpack.c.b16 %v2038, %v2037
        %v2054 = vpack.c.b16 %v2040, %v2039
        %v2055 = vpack.c.b16 %v2042, %v2041
        %v2056 = vpack.c.b16 %v2044, %v2043
        %v2057 = vpack.c.b16 %v2046, %v2045
        %v2058 = vpack.c.b16 %v2048, %v2047
        %v2059 = vpack.c.b16 %v2050, %v2049
        %v2060 = vpack.c.b16 %v2052, %v2051
        %2069 = vmatprep.subr.bf16.mxu0 0
        %2070 = vmatpush1.bf16.msra.mxu0 %v2053
        %2071 = vmatprep.subr.bf16.mxu0 0
        %2072 = vmatpush1.bf16.msra.mxu0 %v2054
        %2073 = vmatprep.subr.bf16.mxu0 0
        %2074 = vmatpush1.bf16.msra.mxu0 %v2055
        %2075 = vmatprep.subr.bf16.mxu0 0
        %2076 = vmatpush1.bf16.msra.mxu0 %v2056
        %2077 = vmatprep.subr.bf16.mxu0 0
        %2078 = vmatpush1.bf16.msra.mxu0 %v2057
        %2079 = vmatprep.subr.bf16.mxu0 0
        %2080 = vmatpush1.bf16.msra.mxu0 %v2058
        %2081 = vmatprep.subr.bf16.mxu0 0
        %2082 = vmatpush1.bf16.msra.mxu0 %v2059
        %2083 = vmatprep.subr.bf16.mxu0 0
        %2084 = vmatpush1.bf16.msra.mxu0 %v2060
        %2085 = vmatprep.subr.bf16.mxu0 0
        %2086 = vmatpush1.bf16.msra.mxu0 0
        %2087 = vmatprep.subr.bf16.mxu0 0
        %2088 = vmatpush1.bf16.msra.mxu0 0
        %2089 = vmatprep.subr.bf16.mxu0 0
        %2090 = vmatpush1.bf16.msra.mxu0 0
        %2091 = vmatprep.subr.bf16.mxu0 0
        %2092 = vmatpush1.bf16.msra.mxu0 0
        %2093 = vmatprep.subr.bf16.mxu0 0
        %2094 = vmatpush1.bf16.msra.mxu0 0
        %2095 = vmatprep.subr.bf16.mxu0 0
        %2096 = vmatpush1.bf16.msra.mxu0 0
        %2097 = vmatprep.subr.bf16.mxu0 0
        %2098 = vmatpush1.bf16.msra.mxu0 0
        %2099 = vmatprep.subr.bf16.mxu0 0
        %2100 = vmatpush1.bf16.msra.mxu0 0
        %2101 = vmatprep.mubr.bf16.mxu0 0
        %2102 = vmatmul.mubr.bf16.gmra.mrb[0].mxu0 %v1988
        %v2103 = vpop.f32.mrb[0].mxu0
        %v2104 = vadd.f32 0.0, %v2103
        %v2105 = vpop.f32.mrb[0].mxu0
        %v2106 = vpop.f32.mrb[0].mxu0
        %v2107 = vadd.f32 0.0, %v2106
        %v2108 = vpop.f32.mrb[0].mxu0
        %2109 = vmatprep.mubr.bf16.mxu0 0
        %2110 = vmatmul.mubr.bf16.gmra.mrb[0].mxu0 %v1989
        %v2111 = vpop.f32.mrb[0].mxu0
        %v2112 = vadd.f32 0.0, %v2111
        %v2113 = vpop.f32.mrb[0].mxu0
        %v2114 = vpop.f32.mrb[0].mxu0
        %v2115 = vadd.f32 0.0, %v2114
        %v2116 = vpop.f32.mrb[0].mxu0
        %2117 = vmatprep.mubr.bf16.mxu0 0
        %2118 = vmatmul.mubr.bf16.gmra.mrb[0].mxu0 %v1990
        %v2119 = vpop.f32.mrb[0].mxu0
        %v2120 = vadd.f32 0.0, %v2119
        %v2121 = vpop.f32.mrb[0].mxu0
        %v2122 = vpop.f32.mrb[0].mxu0
        %v2123 = vadd.f32 0.0, %v2122
        %v2124 = vpop.f32.mrb[0].mxu0
        %2125 = vmatprep.mubr.bf16.mxu0 0
        %2126 = vmatmul.mubr.bf16.gmra.mrb[0].mxu0 %v1991
        %v2127 = vpop.f32.mrb[0].mxu0
        %v2128 = vadd.f32 0.0, %v2127
        %v2129 = vpop.f32.mrb[0].mxu0
        %v2130 = vpop.f32.mrb[0].mxu0
        %v2131 = vadd.f32 0.0, %v2130
        %v2132 = vpop.f32.mrb[0].mxu0
        %2133 = vmatprep.mubr.bf16.mxu0 0
        %2134 = vmatmul.mubr.bf16.gmra.mrb[0].mxu0 %v1992
        %v2135 = vpop.f32.mrb[0].mxu0
        %v2136 = vadd.f32 0.0, %v2135
        %v2137 = vpop.f32.mrb[0].mxu0
        %v2138 = vpop.f32.mrb[0].mxu0
        %v2139 = vadd.f32 0.0, %v2138
        %v2140 = vpop.f32.mrb[0].mxu0
        %2141 = vmatprep.mubr.bf16.mxu0 0
        %2142 = vmatmul.mubr.bf16.gmra.mrb[0].mxu0 %v1993
        %v2143 = vpop.f32.mrb[0].mxu0
        %v2144 = vadd.f32 0.0, %v2143
        %v2145 = vpop.f32.mrb[0].mxu0
        %v2146 = vpop.f32.mrb[0].mxu0
        %v2147 = vadd.f32 0.0, %v2146
        %v2148 = vpop.f32.mrb[0].mxu0
        %2149 = vmatprep.mubr.bf16.mxu0 0
        %2150 = vmatmul.mubr.bf16.gmra.mrb[0].mxu0 %v1994
        %v2151 = vpop.f32.mrb[0].mxu0
        %v2152 = vadd.f32 0.0, %v2151
        %v2153 = vpop.f32.mrb[0].mxu0
        %v2154 = vpop.f32.mrb[0].mxu0
        %v2155 = vadd.f32 0.0, %v2154
        %v2156 = vpop.f32.mrb[0].mxu0
        %2157 = vmatprep.mubr.bf16.mxu0 0
        %2158 = vmatmul.mubr.bf16.gmra.mrb[0].mxu0 %v1995
        %v2159 = vpop.f32.mrb[0].mxu0
        %v2160 = vadd.f32 0.0, %v2159
        %v2161 = vpop.f32.mrb[0].mxu0
        %v2162 = vpop.f32.mrb[0].mxu0
        %v2163 = vadd.f32 0.0, %v2162
        %v2164 = vpop.f32.mrb[0].mxu0
        %2165 = vmatprep.mubr.bf16.mxu0 0
        %2166 = vmatmul.mubr.bf16.gmra.mrb[0].mxu0 %v1996
        %v2167 = vpop.f32.mrb[0].mxu0
        %v2168 = vadd.f32 0.0, %v2167
        %v2169 = vpop.f32.mrb[0].mxu0
        %v2170 = vpop.f32.mrb[0].mxu0
        %v2171 = vadd.f32 0.0, %v2170
        %v2172 = vpop.f32.mrb[0].mxu0
        %2173 = vmatprep.mubr.bf16.mxu0 0
        %2174 = vmatmul.mubr.bf16.gmra.mrb[0].mxu0 %v1997
        %v2175 = vpop.f32.mrb[0].mxu0
        %v2176 = vadd.f32 0.0, %v2175
        %v2177 = vpop.f32.mrb[0].mxu0
        %v2178 = vpop.f32.mrb[0].mxu0
        %v2179 = vadd.f32 0.0, %v2178
        %v2180 = vpop.f32.mrb[0].mxu0
        %2181 = vmatprep.mubr.bf16.mxu0 0
        %2182 = vmatmul.mubr.bf16.gmra.mrb[0].mxu0 %v1998
        %v2183 = vpop.f32.mrb[0].mxu0
        %v2184 = vadd.f32 0.0, %v2183
        %v2185 = vpop.f32.mrb[0].mxu0
        %v2186 = vpop.f32.mrb[0].mxu0
        %v2187 = vadd.f32 0.0, %v2186
        %v2188 = vpop.f32.mrb[0].mxu0
        %2189 = vmatprep.mubr.bf16.mxu0 0
        %2190 = vmatmul.mubr.bf16.gmra.mrb[0].mxu0 %v1999
        %v2191 = vpop.f32.mrb[0].mxu0
        %v2192 = vadd.f32 0.0, %v2191
        %v2193 = vpop.f32.mrb[0].mxu0
        %v2194 = vpop.f32.mrb[0].mxu0
        %v2195 = vadd.f32 0.0, %v2194
        %v2196 = vpop.f32.mrb[0].mxu0
        %2197 = vmatprep.mubr.bf16.mxu0 0
        %2198 = vmatmul.mubr.bf16.gmra.mrb[0].mxu0 %v2000
        %v2199 = vpop.f32.mrb[0].mxu0
        %v2200 = vadd.f32 0.0, %v2199
        %v2201 = vpop.f32.mrb[0].mxu0
        %v2202 = vpop.f32.mrb[0].mxu0
        %v2203 = vadd.f32 0.0, %v2202
        %v2204 = vpop.f32.mrb[0].mxu0
        %2205 = vmatprep.mubr.bf16.mxu0 0
        %2206 = vmatmul.mubr.bf16.gmra.mrb[0].mxu0 %v2001
        %v2207 = vpop.f32.mrb[0].mxu0
        %v2208 = vadd.f32 0.0, %v2207
        %v2209 = vpop.f32.mrb[0].mxu0
        %v2210 = vpop.f32.mrb[0].mxu0
        %v2211 = vadd.f32 0.0, %v2210
        %v2212 = vpop.f32.mrb[0].mxu0
        %2213 = vmatprep.mubr.bf16.mxu0 0
        %2214 = vmatmul.mubr.bf16.gmra.mrb[0].mxu0 %v2002
        %v2215 = vpop.f32.mrb[0].mxu0
        %v2216 = vadd.f32 0.0, %v2215
        %v2217 = vpop.f32.mrb[0].mxu0
        %v2218 = vpop.f32.mrb[0].mxu0
        %v2219 = vadd.f32 0.0, %v2218
        %v2220 = vpop.f32.mrb[0].mxu0
        %2221 = vmatprep.mubr.bf16.mxu0 0
        %2222 = vmatmul.mubr.bf16.gmra.mrb[0].mxu0 %v2003
        %v2223 = vpop.f32.mrb[0].mxu0
        %v2224 = vadd.f32 0.0, %v2223
        %v2225 = vpop.f32.mrb[0].mxu0
        %v2226 = vpop.f32.mrb[0].mxu0
        %v2227 = vadd.f32 0.0, %v2226
        %v2228 = vpop.f32.mrb[0].mxu0
        %2229 = vdwg.mxu0
        %v2230 = vadd.f32 %v1924, %v2104
        %v2231 = vadd.f32 %v1925, %v2107
        %v2232 = vadd.f32 %v1926, %v2112
        %v2233 = vadd.f32 %v1927, %v2115
        %v2234 = vadd.f32 %v1928, %v2120
        %v2235 = vadd.f32 %v1929, %v2123
        %v2236 = vadd.f32 %v1930, %v2128
        %v2237 = vadd.f32 %v1931, %v2131
        %v2238 = vadd.f32 %v1932, %v2136
        %v2239 = vadd.f32 %v1933, %v2139
        %v2240 = vadd.f32 %v1934, %v2144
        %v2241 = vadd.f32 %v1935, %v2147
        %v2242 = vadd.f32 %v1936, %v2152
        %v2243 = vadd.f32 %v1937, %v2155
        %v2244 = vadd.f32 %v1938, %v2160
        %v2245 = vadd.f32 %v1939, %v2163
        %v2246 = vadd.f32 %v1940, %v2168
        %v2247 = vadd.f32 %v1941, %v2171
        %v2248 = vadd.f32 %v1942, %v2176
        %v2249 = vadd.f32 %v1943, %v2179
        %v2250 = vadd.f32 %v1944, %v2184
        %v2251 = vadd.f32 %v1945, %v2187
        %v2252 = vadd.f32 %v1946, %v2192
        %v2253 = vadd.f32 %v1947, %v2195
        %v2254 = vadd.f32 %v1948, %v2200
        %v2255 = vadd.f32 %v1949, %v2203
        %v2256 = vadd.f32 %v1950, %v2208
        %v2257 = vadd.f32 %v1951, %v2211
        %v2258 = vadd.f32 %v1952, %v2216
        %v2259 = vadd.f32 %v1953, %v2219
        %v2260 = vadd.f32 %v1954, %v2224
        %v2261 = vadd.f32 %v1955, %v2227
        %s2262 = scalar_lea.vmem [#allocation2], 48
        %v2263 = vld [vmem:[%s2262] sm:$0xff]
        %v2264 = vld [vmem:[%s2262 + $0x8] sm:$0xff]
        %v2265 = vld [vmem:[%s2262 + $0x18] sm:$0xff]
        %v2266 = vld [vmem:[%s2262 + $0x20] sm:$0xff]
        %v2267 = vld [vmem:[%s2262 + $0x30] sm:$0xff]
        %v2268 = vld [vmem:[%s2262 + $0x38] sm:$0xff]
        %v2269 = vld [vmem:[%s2262 + $0x48] sm:$0xff]
        %v2270 = vld [vmem:[%s2262 + $0x50] sm:$0xff]
        %v2271 = vld [vmem:[%s2262 + $0x60] sm:$0xff]
        %v2272 = vld [vmem:[%s2262 + $0x68] sm:$0xff]
        %v2273 = vld [vmem:[%s2262 + $0x78] sm:$0xff]
        %v2274 = vld [vmem:[%s2262 + $0x80] sm:$0xff]
        %v2275 = vld [vmem:[%s2262 + $0x90] sm:$0xff]
        %v2276 = vld [vmem:[%s2262 + $0x98] sm:$0xff]
        %v2277 = vld [vmem:[%s2262 + $0xa8] sm:$0xff]
        %v2278 = vld [vmem:[%s2262 + $0xb0] sm:$0xff]
        %v2279 = vld [vmem:[%s2262 + $0xc0] sm:$0xff]
        %v2280 = vld [vmem:[%s2262 + $0xc8] sm:$0xff]
        %v2281 = vld [vmem:[%s2262 + $0xd8] sm:$0xff]
        %v2282 = vld [vmem:[%s2262 + $0xe0] sm:$0xff]
        %v2283 = vld [vmem:[%s2262 + $0xf0] sm:$0xff]
        %v2284 = vld [vmem:[%s2262 + $0xf8] sm:$0xff]
        %v2285 = vld [vmem:[%s2262 + $0x108] sm:$0xff]
        %v2286 = vld [vmem:[%s2262 + $0x110] sm:$0xff]
        %v2287 = vld [vmem:[%s2262 + $0x120] sm:$0xff]
        %v2288 = vld [vmem:[%s2262 + $0x128] sm:$0xff]
        %v2289 = vld [vmem:[%s2262 + $0x138] sm:$0xff]
        %v2290 = vld [vmem:[%s2262 + $0x140] sm:$0xff]
        %v2291 = vld [vmem:[%s2262 + $0x150] sm:$0xff]
        %v2292 = vld [vmem:[%s2262 + $0x158] sm:$0xff]
        %v2293 = vld [vmem:[%s2262 + $0x168] sm:$0xff]
        %v2294 = vld [vmem:[%s2262 + $0x170] sm:$0xff]
        %v2295 = vpack.c.bf16 %v2264, %v2263
        %v2296 = vpack.c.bf16 %v2266, %v2265
        %v2297 = vpack.c.bf16 %v2268, %v2267
        %v2298 = vpack.c.bf16 %v2270, %v2269
        %v2299 = vpack.c.bf16 %v2272, %v2271
        %v2300 = vpack.c.bf16 %v2274, %v2273
        %v2301 = vpack.c.bf16 %v2276, %v2275
        %v2302 = vpack.c.bf16 %v2278, %v2277
        %v2303 = vpack.c.bf16 %v2280, %v2279
        %v2304 = vpack.c.bf16 %v2282, %v2281
        %v2305 = vpack.c.bf16 %v2284, %v2283
        %v2306 = vpack.c.bf16 %v2286, %v2285
        %v2307 = vpack.c.bf16 %v2288, %v2287
        %v2308 = vpack.c.bf16 %v2290, %v2289
        %v2309 = vpack.c.bf16 %v2292, %v2291
        %v2310 = vpack.c.bf16 %v2294, %v2293
        %s2311 = scalar_lea.vmem %s5, 384
        %v2312 = vld [vmem:[%s2311] sm:$0xf]
        %v2313 = vld [vmem:[%s2311 + $0x4] sm:$0xf]
        %v2314 = vld [vmem:[%s2311 + $0x8] sm:$0xf]
        %v2315 = vld [vmem:[%s2311 + $0xc] sm:$0xf]
        %v2316 = vld [vmem:[%s2311 + $0x10] sm:$0xf]
        %v2317 = vld [vmem:[%s2311 + $0x14] sm:$0xf]
        %v2318 = vld [vmem:[%s2311 + $0x18] sm:$0xf]
        %v2319 = vld [vmem:[%s2311 + $0x1c] sm:$0xf]
        %v2320 = vld [vmem:[%s2311 + $0x20] sm:$0xf]
        %v2321 = vld [vmem:[%s2311 + $0x24] sm:$0xf]
        %v2322 = vld [vmem:[%s2311 + $0x28] sm:$0xf]
        %v2323 = vld [vmem:[%s2311 + $0x2c] sm:$0xf]
        %v2324 = vld [vmem:[%s2311 + $0x30] sm:$0xf]
        %v2325 = vld [vmem:[%s2311 + $0x34] sm:$0xf]
        %v2326 = vld [vmem:[%s2311 + $0x38] sm:$0xf]
        %v2327 = vld [vmem:[%s2311 + $0x3c] sm:$0xf]
        %v2344 = vunpack.c.l.b16 %v2312
        %v2345 = vunpack.c.l.b16 %v2313
        %v2346 = vunpack.c.l.b16 %v2314
        %v2347 = vunpack.c.l.b16 %v2315
        %v2348 = vunpack.c.l.b16 %v2316
        %v2349 = vunpack.c.l.b16 %v2317
        %v2350 = vunpack.c.l.b16 %v2318
        %v2351 = vunpack.c.l.b16 %v2319
        %v2352 = vunpack.c.l.b16 %v2320
        %v2353 = vunpack.c.l.b16 %v2321
        %v2354 = vunpack.c.l.b16 %v2322
        %v2355 = vunpack.c.l.b16 %v2323
        %v2356 = vunpack.c.l.b16 %v2324
        %v2357 = vunpack.c.l.b16 %v2325
        %v2358 = vunpack.c.l.b16 %v2326
        %v2359 = vunpack.c.l.b16 %v2327
        %v2360 = vpack.c.b16 %v2345, %v2344
        %v2361 = vpack.c.b16 %v2347, %v2346
        %v2362 = vpack.c.b16 %v2349, %v2348
        %v2363 = vpack.c.b16 %v2351, %v2350
        %v2364 = vpack.c.b16 %v2353, %v2352
        %v2365 = vpack.c.b16 %v2355, %v2354
        %v2366 = vpack.c.b16 %v2357, %v2356
        %v2367 = vpack.c.b16 %v2359, %v2358
        %2376 = vmatprep.subr.bf16.mxu0 0
        %2377 = vmatpush1.bf16.msra.mxu0 %v2360
        %2378 = vmatprep.subr.bf16.mxu0 0
        %2379 = vmatpush1.bf16.msra.mxu0 %v2361
        %2380 = vmatprep.subr.bf16.mxu0 0
        %2381 = vmatpush1.bf16.msra.mxu0 %v2362
        %2382 = vmatprep.subr.bf16.mxu0 0
        %2383 = vmatpush1.bf16.msra.mxu0 %v2363
        %2384 = vmatprep.subr.bf16.mxu0 0
        %2385 = vmatpush1.bf16.msra.mxu0 %v2364
        %2386 = vmatprep.subr.bf16.mxu0 0
        %2387 = vmatpush1.bf16.msra.mxu0 %v2365
        %2388 = vmatprep.subr.bf16.mxu0 0
        %2389 = vmatpush1.bf16.msra.mxu0 %v2366
        %2390 = vmatprep.subr.bf16.mxu0 0
        %2391 = vmatpush1.bf16.msra.mxu0 %v2367
        %2392 = vmatprep.subr.bf16.mxu0 0
        %2393 = vmatpush1.bf16.msra.mxu0 0
        %2394 = vmatprep.subr.bf16.mxu0 0
        %2395 = vmatpush1.bf16.msra.mxu0 0
        %2396 = vmatprep.subr.bf16.mxu0 0
        %2397 = vmatpush1.bf16.msra.mxu0 0
        %2398 = vmatprep.subr.bf16.mxu0 0
        %2399 = vmatpush1.bf16.msra.mxu0 0
        %2400 = vmatprep.subr.bf16.mxu0 0
        %2401 = vmatpush1.bf16.msra.mxu0 0
        %2402 = vmatprep.subr.bf16.mxu0 0
        %2403 = vmatpush1.bf16.msra.mxu0 0
        %2404 = vmatprep.subr.bf16.mxu0 0
        %2405 = vmatpush1.bf16.msra.mxu0 0
        %2406 = vmatprep.subr.bf16.mxu0 0
        %2407 = vmatpush1.bf16.msra.mxu0 0
        %2408 = vmatprep.mubr.bf16.mxu0 0
        %2409 = vmatmul.mubr.bf16.gmra.mrb[0].mxu0 %v2295
        %v2410 = vpop.f32.mrb[0].mxu0
        %v2411 = vadd.f32 0.0, %v2410
        %v2412 = vpop.f32.mrb[0].mxu0
        %v2413 = vpop.f32.mrb[0].mxu0
        %v2414 = vadd.f32 0.0, %v2413
        %v2415 = vpop.f32.mrb[0].mxu0
        %2416 = vmatprep.mubr.bf16.mxu0 0
        %2417 = vmatmul.mubr.bf16.gmra.mrb[0].mxu0 %v2296
        %v2418 = vpop.f32.mrb[0].mxu0
        %v2419 = vadd.f32 0.0, %v2418
        %v2420 = vpop.f32.mrb[0].mxu0
        %v2421 = vpop.f32.mrb[0].mxu0
        %v2422 = vadd.f32 0.0, %v2421
        %v2423 = vpop.f32.mrb[0].mxu0
        %2424 = vmatprep.mubr.bf16.mxu0 0
        %2425 = vmatmul.mubr.bf16.gmra.mrb[0].mxu0 %v2297
        %v2426 = vpop.f32.mrb[0].mxu0
        %v2427 = vadd.f32 0.0, %v2426
        %v2428 = vpop.f32.mrb[0].mxu0
        %v2429 = vpop.f32.mrb[0].mxu0
        %v2430 = vadd.f32 0.0, %v2429
        %v2431 = vpop.f32.mrb[0].mxu0
        %2432 = vmatprep.mubr.bf16.mxu0 0
        %2433 = vmatmul.mubr.bf16.gmra.mrb[0].mxu0 %v2298
        %v2434 = vpop.f32.mrb[0].mxu0
        %v2435 = vadd.f32 0.0, %v2434
        %v2436 = vpop.f32.mrb[0].mxu0
        %v2437 = vpop.f32.mrb[0].mxu0
        %v2438 = vadd.f32 0.0, %v2437
        %v2439 = vpop.f32.mrb[0].mxu0
        %2440 = vmatprep.mubr.bf16.mxu0 0
        %2441 = vmatmul.mubr.bf16.gmra.mrb[0].mxu0 %v2299
        %v2442 = vpop.f32.mrb[0].mxu0
        %v2443 = vadd.f32 0.0, %v2442
        %v2444 = vpop.f32.mrb[0].mxu0
        %v2445 = vpop.f32.mrb[0].mxu0
        %v2446 = vadd.f32 0.0, %v2445
        %v2447 = vpop.f32.mrb[0].mxu0
        %2448 = vmatprep.mubr.bf16.mxu0 0
        %2449 = vmatmul.mubr.bf16.gmra.mrb[0].mxu0 %v2300
        %v2450 = vpop.f32.mrb[0].mxu0
        %v2451 = vadd.f32 0.0, %v2450
        %v2452 = vpop.f32.mrb[0].mxu0
        %v2453 = vpop.f32.mrb[0].mxu0
        %v2454 = vadd.f32 0.0, %v2453
        %v2455 = vpop.f32.mrb[0].mxu0
        %2456 = vmatprep.mubr.bf16.mxu0 0
        %2457 = vmatmul.mubr.bf16.gmra.mrb[0].mxu0 %v2301
        %v2458 = vpop.f32.mrb[0].mxu0
        %v2459 = vadd.f32 0.0, %v2458
        %v2460 = vpop.f32.mrb[0].mxu0
        %v2461 = vpop.f32.mrb[0].mxu0
        %v2462 = vadd.f32 0.0, %v2461
        %v2463 = vpop.f32.mrb[0].mxu0
        %2464 = vmatprep.mubr.bf16.mxu0 0
        %2465 = vmatmul.mubr.bf16.gmra.mrb[0].mxu0 %v2302
        %v2466 = vpop.f32.mrb[0].mxu0
        %v2467 = vadd.f32 0.0, %v2466
        %v2468 = vpop.f32.mrb[0].mxu0
        %v2469 = vpop.f32.mrb[0].mxu0
        %v2470 = vadd.f32 0.0, %v2469
        %v2471 = vpop.f32.mrb[0].mxu0
        %2472 = vmatprep.mubr.bf16.mxu0 0
        %2473 = vmatmul.mubr.bf16.gmra.mrb[0].mxu0 %v2303
        %v2474 = vpop.f32.mrb[0].mxu0
        %v2475 = vadd.f32 0.0, %v2474
        %v2476 = vpop.f32.mrb[0].mxu0
        %v2477 = vpop.f32.mrb[0].mxu0
        %v2478 = vadd.f32 0.0, %v2477
        %v2479 = vpop.f32.mrb[0].mxu0
        %2480 = vmatprep.mubr.bf16.mxu0 0
        %2481 = vmatmul.mubr.bf16.gmra.mrb[0].mxu0 %v2304
        %v2482 = vpop.f32.mrb[0].mxu0
        %v2483 = vadd.f32 0.0, %v2482
        %v2484 = vpop.f32.mrb[0].mxu0
        %v2485 = vpop.f32.mrb[0].mxu0
        %v2486 = vadd.f32 0.0, %v2485
        %v2487 = vpop.f32.mrb[0].mxu0
        %2488 = vmatprep.mubr.bf16.mxu0 0
        %2489 = vmatmul.mubr.bf16.gmra.mrb[0].mxu0 %v2305
        %v2490 = vpop.f32.mrb[0].mxu0
        %v2491 = vadd.f32 0.0, %v2490
        %v2492 = vpop.f32.mrb[0].mxu0
        %v2493 = vpop.f32.mrb[0].mxu0
        %v2494 = vadd.f32 0.0, %v2493
        %v2495 = vpop.f32.mrb[0].mxu0
        %2496 = vmatprep.mubr.bf16.mxu0 0
        %2497 = vmatmul.mubr.bf16.gmra.mrb[0].mxu0 %v2306
        %v2498 = vpop.f32.mrb[0].mxu0
        %v2499 = vadd.f32 0.0, %v2498
        %v2500 = vpop.f32.mrb[0].mxu0
        %v2501 = vpop.f32.mrb[0].mxu0
        %v2502 = vadd.f32 0.0, %v2501
        %v2503 = vpop.f32.mrb[0].mxu0
        %2504 = vmatprep.mubr.bf16.mxu0 0
        %2505 = vmatmul.mubr.bf16.gmra.mrb[0].mxu0 %v2307
        %v2506 = vpop.f32.mrb[0].mxu0
        %v2507 = vadd.f32 0.0, %v2506
        %v2508 = vpop.f32.mrb[0].mxu0
        %v2509 = vpop.f32.mrb[0].mxu0
        %v2510 = vadd.f32 0.0, %v2509
        %v2511 = vpop.f32.mrb[0].mxu0
        %2512 = vmatprep.mubr.bf16.mxu0 0
        %2513 = vmatmul.mubr.bf16.gmra.mrb[0].mxu0 %v2308
        %v2514 = vpop.f32.mrb[0].mxu0
        %v2515 = vadd.f32 0.0, %v2514
        %v2516 = vpop.f32.mrb[0].mxu0
        %v2517 = vpop.f32.mrb[0].mxu0
        %v2518 = vadd.f32 0.0, %v2517
        %v2519 = vpop.f32.mrb[0].mxu0
        %2520 = vmatprep.mubr.bf16.mxu0 0
        %2521 = vmatmul.mubr.bf16.gmra.mrb[0].mxu0 %v2309
        %v2522 = vpop.f32.mrb[0].mxu0
        %v2523 = vadd.f32 0.0, %v2522
        %v2524 = vpop.f32.mrb[0].mxu0
        %v2525 = vpop.f32.mrb[0].mxu0
        %v2526 = vadd.f32 0.0, %v2525
        %v2527 = vpop.f32.mrb[0].mxu0
        %2528 = vmatprep.mubr.bf16.mxu0 0
        %2529 = vmatmul.mubr.bf16.gmra.mrb[0].mxu0 %v2310
        %v2530 = vpop.f32.mrb[0].mxu0
        %v2531 = vadd.f32 0.0, %v2530
        %v2532 = vpop.f32.mrb[0].mxu0
        %v2533 = vpop.f32.mrb[0].mxu0
        %v2534 = vadd.f32 0.0, %v2533
        %v2535 = vpop.f32.mrb[0].mxu0
        %2536 = vdwg.mxu0
        %v2537 = vadd.f32 %v2230, %v2411
        %v2538 = vadd.f32 %v2231, %v2414
        %v2539 = vadd.f32 %v2232, %v2419
        %v2540 = vadd.f32 %v2233, %v2422
        %v2541 = vadd.f32 %v2234, %v2427
        %v2542 = vadd.f32 %v2235, %v2430
        %v2543 = vadd.f32 %v2236, %v2435
        %v2544 = vadd.f32 %v2237, %v2438
        %v2545 = vadd.f32 %v2238, %v2443
        %v2546 = vadd.f32 %v2239, %v2446
        %v2547 = vadd.f32 %v2240, %v2451
        %v2548 = vadd.f32 %v2241, %v2454
        %v2549 = vadd.f32 %v2242, %v2459
        %v2550 = vadd.f32 %v2243, %v2462
        %v2551 = vadd.f32 %v2244, %v2467
        %v2552 = vadd.f32 %v2245, %v2470
        %v2553 = vadd.f32 %v2246, %v2475
        %v2554 = vadd.f32 %v2247, %v2478
        %v2555 = vadd.f32 %v2248, %v2483
        %v2556 = vadd.f32 %v2249, %v2486
        %v2557 = vadd.f32 %v2250, %v2491
        %v2558 = vadd.f32 %v2251, %v2494
        %v2559 = vadd.f32 %v2252, %v2499
        %v2560 = vadd.f32 %v2253, %v2502
        %v2561 = vadd.f32 %v2254, %v2507
        %v2562 = vadd.f32 %v2255, %v2510
        %v2563 = vadd.f32 %v2256, %v2515
        %v2564 = vadd.f32 %v2257, %v2518
        %v2565 = vadd.f32 %v2258, %v2523
        %v2566 = vadd.f32 %v2259, %v2526
        %v2567 = vadd.f32 %v2260, %v2531
        %v2568 = vadd.f32 %v2261, %v2534
        %v2569 = vld [vmem:[%s2262 + $0x1] sm:$0xff]
        %v2570 = vld [vmem:[%s2262 + $0x9] sm:$0xff]
        %v2571 = vld [vmem:[%s2262 + $0x19] sm:$0xff]
        %v2572 = vld [vmem:[%s2262 + $0x21] sm:$0xff]
        %v2573 = vld [vmem:[%s2262 + $0x31] sm:$0xff]
        %v2574 = vld [vmem:[%s2262 + $0x39] sm:$0xff]
        %v2575 = vld [vmem:[%s2262 + $0x49] sm:$0xff]
        %v2576 = vld [vmem:[%s2262 + $0x51] sm:$0xff]
        %v2577 = vld [vmem:[%s2262 + $0x61] sm:$0xff]
        %v2578 = vld [vmem:[%s2262 + $0x69] sm:$0xff]
        %v2579 = vld [vmem:[%s2262 + $0x79] sm:$0xff]
        %v2580 = vld [vmem:[%s2262 + $0x81] sm:$0xff]
        %v2581 = vld [vmem:[%s2262 + $0x91] sm:$0xff]
        %v2582 = vld [vmem:[%s2262 + $0x99] sm:$0xff]
        %v2583 = vld [vmem:[%s2262 + $0xa9] sm:$0xff]
        %v2584 = vld [vmem:[%s2262 + $0xb1] sm:$0xff]
        %v2585 = vld [vmem:[%s2262 + $0xc1] sm:$0xff]
        %v2586 = vld [vmem:[%s2262 + $0xc9] sm:$0xff]
        %v2587 = vld [vmem:[%s2262 + $0xd9] sm:$0xff]
        %v2588 = vld [vmem:[%s2262 + $0xe1] sm:$0xff]
        %v2589 = vld [vmem:[%s2262 + $0xf1] sm:$0xff]
        %v2590 = vld [vmem:[%s2262 + $0xf9] sm:$0xff]
        %v2591 = vld [vmem:[%s2262 + $0x109] sm:$0xff]
        %v2592 = vld [vmem:[%s2262 + $0x111] sm:$0xff]
        %v2593 = vld [vmem:[%s2262 + $0x121] sm:$0xff]
        %v2594 = vld [vmem:[%s2262 + $0x129] sm:$0xff]
        %v2595 = vld [vmem:[%s2262 + $0x139] sm:$0xff]
        %v2596 = vld [vmem:[%s2262 + $0x141] sm:$0xff]
        %v2597 = vld [vmem:[%s2262 + $0x151] sm:$0xff]
        %v2598 = vld [vmem:[%s2262 + $0x159] sm:$0xff]
        %v2599 = vld [vmem:[%s2262 + $0x169] sm:$0xff]
        %v2600 = vld [vmem:[%s2262 + $0x171] sm:$0xff]
        %v2601 = vpack.c.bf16 %v2570, %v2569
        %v2602 = vpack.c.bf16 %v2572, %v2571
        %v2603 = vpack.c.bf16 %v2574, %v2573
        %v2604 = vpack.c.bf16 %v2576, %v2575
        %v2605 = vpack.c.bf16 %v2578, %v2577
        %v2606 = vpack.c.bf16 %v2580, %v2579
        %v2607 = vpack.c.bf16 %v2582, %v2581
        %v2608 = vpack.c.bf16 %v2584, %v2583
        %v2609 = vpack.c.bf16 %v2586, %v2585
        %v2610 = vpack.c.bf16 %v2588, %v2587
        %v2611 = vpack.c.bf16 %v2590, %v2589
        %v2612 = vpack.c.bf16 %v2592, %v2591
        %v2613 = vpack.c.bf16 %v2594, %v2593
        %v2614 = vpack.c.bf16 %v2596, %v2595
        %v2615 = vpack.c.bf16 %v2598, %v2597
        %v2616 = vpack.c.bf16 %v2600, %v2599
        %s2617 = scalar_lea.vmem %s5, 448
        %v2618 = vld [vmem:[%s2617] sm:$0xf]
        %v2619 = vld [vmem:[%s2617 + $0x4] sm:$0xf]
        %v2620 = vld [vmem:[%s2617 + $0x8] sm:$0xf]
        %v2621 = vld [vmem:[%s2617 + $0xc] sm:$0xf]
        %v2622 = vld [vmem:[%s2617 + $0x10] sm:$0xf]
        %v2623 = vld [vmem:[%s2617 + $0x14] sm:$0xf]
        %v2624 = vld [vmem:[%s2617 + $0x18] sm:$0xf]
        %v2625 = vld [vmem:[%s2617 + $0x1c] sm:$0xf]
        %v2626 = vld [vmem:[%s2617 + $0x20] sm:$0xf]
        %v2627 = vld [vmem:[%s2617 + $0x24] sm:$0xf]
        %v2628 = vld [vmem:[%s2617 + $0x28] sm:$0xf]
        %v2629 = vld [vmem:[%s2617 + $0x2c] sm:$0xf]
        %v2630 = vld [vmem:[%s2617 + $0x30] sm:$0xf]
        %v2631 = vld [vmem:[%s2617 + $0x34] sm:$0xf]
        %v2632 = vld [vmem:[%s2617 + $0x38] sm:$0xf]
        %v2633 = vld [vmem:[%s2617 + $0x3c] sm:$0xf]
        %v2650 = vunpack.c.l.b16 %v2618
        %v2651 = vunpack.c.l.b16 %v2619
        %v2652 = vunpack.c.l.b16 %v2620
        %v2653 = vunpack.c.l.b16 %v2621
        %v2654 = vunpack.c.l.b16 %v2622
        %v2655 = vunpack.c.l.b16 %v2623
        %v2656 = vunpack.c.l.b16 %v2624
        %v2657 = vunpack.c.l.b16 %v2625
        %v2658 = vunpack.c.l.b16 %v2626
        %v2659 = vunpack.c.l.b16 %v2627
        %v2660 = vunpack.c.l.b16 %v2628
        %v2661 = vunpack.c.l.b16 %v2629
        %v2662 = vunpack.c.l.b16 %v2630
        %v2663 = vunpack.c.l.b16 %v2631
        %v2664 = vunpack.c.l.b16 %v2632
        %v2665 = vunpack.c.l.b16 %v2633
        %v2666 = vpack.c.b16 %v2651, %v2650
        %v2667 = vpack.c.b16 %v2653, %v2652
        %v2668 = vpack.c.b16 %v2655, %v2654
        %v2669 = vpack.c.b16 %v2657, %v2656
        %v2670 = vpack.c.b16 %v2659, %v2658
        %v2671 = vpack.c.b16 %v2661, %v2660
        %v2672 = vpack.c.b16 %v2663, %v2662
        %v2673 = vpack.c.b16 %v2665, %v2664
        %2682 = vmatprep.subr.bf16.mxu0 0
        %2683 = vmatpush1.bf16.msra.mxu0 %v2666
        %2684 = vmatprep.subr.bf16.mxu0 0
        %2685 = vmatpush1.bf16.msra.mxu0 %v2667
        %2686 = vmatprep.subr.bf16.mxu0 0
        %2687 = vmatpush1.bf16.msra.mxu0 %v2668
        %2688 = vmatprep.subr.bf16.mxu0 0
        %2689 = vmatpush1.bf16.msra.mxu0 %v2669
        %2690 = vmatprep.subr.bf16.mxu0 0
        %2691 = vmatpush1.bf16.msra.mxu0 %v2670
        %2692 = vmatprep.subr.bf16.mxu0 0
        %2693 = vmatpush1.bf16.msra.mxu0 %v2671
        %2694 = vmatprep.subr.bf16.mxu0 0
        %2695 = vmatpush1.bf16.msra.mxu0 %v2672
        %2696 = vmatprep.subr.bf16.mxu0 0
        %2697 = vmatpush1.bf16.msra.mxu0 %v2673
        %2698 = vmatprep.subr.bf16.mxu0 0
        %2699 = vmatpush1.bf16.msra.mxu0 0
        %2700 = vmatprep.subr.bf16.mxu0 0
        %2701 = vmatpush1.bf16.msra.mxu0 0
        %2702 = vmatprep.subr.bf16.mxu0 0
        %2703 = vmatpush1.bf16.msra.mxu0 0
        %2704 = vmatprep.subr.bf16.mxu0 0
        %2705 = vmatpush1.bf16.msra.mxu0 0
        %2706 = vmatprep.subr.bf16.mxu0 0
        %2707 = vmatpush1.bf16.msra.mxu0 0
        %2708 = vmatprep.subr.bf16.mxu0 0
        %2709 = vmatpush1.bf16.msra.mxu0 0
        %2710 = vmatprep.subr.bf16.mxu0 0
        %2711 = vmatpush1.bf16.msra.mxu0 0
        %2712 = vmatprep.subr.bf16.mxu0 0
        %2713 = vmatpush1.bf16.msra.mxu0 0
        %2714 = vmatprep.mubr.bf16.mxu0 0
        %2715 = vmatmul.mubr.bf16.gmra.mrb[0].mxu0 %v2601
        %v2716 = vpop.f32.mrb[0].mxu0
        %v2717 = vadd.f32 0.0, %v2716
        %v2718 = vpop.f32.mrb[0].mxu0
        %v2719 = vpop.f32.mrb[0].mxu0
        %v2720 = vadd.f32 0.0, %v2719
        %v2721 = vpop.f32.mrb[0].mxu0
        %2722 = vmatprep.mubr.bf16.mxu0 0
        %2723 = vmatmul.mubr.bf16.gmra.mrb[0].mxu0 %v2602
        %v2724 = vpop.f32.mrb[0].mxu0
        %v2725 = vadd.f32 0.0, %v2724
        %v2726 = vpop.f32.mrb[0].mxu0
        %v2727 = vpop.f32.mrb[0].mxu0
        %v2728 = vadd.f32 0.0, %v2727
        %v2729 = vpop.f32.mrb[0].mxu0
        %2730 = vmatprep.mubr.bf16.mxu0 0
        %2731 = vmatmul.mubr.bf16.gmra.mrb[0].mxu0 %v2603
        %v2732 = vpop.f32.mrb[0].mxu0
        %v2733 = vadd.f32 0.0, %v2732
        %v2734 = vpop.f32.mrb[0].mxu0
        %v2735 = vpop.f32.mrb[0].mxu0
        %v2736 = vadd.f32 0.0, %v2735
        %v2737 = vpop.f32.mrb[0].mxu0
        %2738 = vmatprep.mubr.bf16.mxu0 0
        %2739 = vmatmul.mubr.bf16.gmra.mrb[0].mxu0 %v2604
        %v2740 = vpop.f32.mrb[0].mxu0
        %v2741 = vadd.f32 0.0, %v2740
        %v2742 = vpop.f32.mrb[0].mxu0
        %v2743 = vpop.f32.mrb[0].mxu0
        %v2744 = vadd.f32 0.0, %v2743
        %v2745 = vpop.f32.mrb[0].mxu0
        %2746 = vmatprep.mubr.bf16.mxu0 0
        %2747 = vmatmul.mubr.bf16.gmra.mrb[0].mxu0 %v2605
        %v2748 = vpop.f32.mrb[0].mxu0
        %v2749 = vadd.f32 0.0, %v2748
        %v2750 = vpop.f32.mrb[0].mxu0
        %v2751 = vpop.f32.mrb[0].mxu0
        %v2752 = vadd.f32 0.0, %v2751
        %v2753 = vpop.f32.mrb[0].mxu0
        %2754 = vmatprep.mubr.bf16.mxu0 0
        %2755 = vmatmul.mubr.bf16.gmra.mrb[0].mxu0 %v2606
        %v2756 = vpop.f32.mrb[0].mxu0
        %v2757 = vadd.f32 0.0, %v2756
        %v2758 = vpop.f32.mrb[0].mxu0
        %v2759 = vpop.f32.mrb[0].mxu0
        %v2760 = vadd.f32 0.0, %v2759
        %v2761 = vpop.f32.mrb[0].mxu0
        %2762 = vmatprep.mubr.bf16.mxu0 0
        %2763 = vmatmul.mubr.bf16.gmra.mrb[0].mxu0 %v2607
        %v2764 = vpop.f32.mrb[0].mxu0
        %v2765 = vadd.f32 0.0, %v2764
        %v2766 = vpop.f32.mrb[0].mxu0
        %v2767 = vpop.f32.mrb[0].mxu0
        %v2768 = vadd.f32 0.0, %v2767
        %v2769 = vpop.f32.mrb[0].mxu0
        %2770 = vmatprep.mubr.bf16.mxu0 0
        %2771 = vmatmul.mubr.bf16.gmra.mrb[0].mxu0 %v2608
        %v2772 = vpop.f32.mrb[0].mxu0
        %v2773 = vadd.f32 0.0, %v2772
        %v2774 = vpop.f32.mrb[0].mxu0
        %v2775 = vpop.f32.mrb[0].mxu0
        %v2776 = vadd.f32 0.0, %v2775
        %v2777 = vpop.f32.mrb[0].mxu0
        %2778 = vmatprep.mubr.bf16.mxu0 0
        %2779 = vmatmul.mubr.bf16.gmra.mrb[0].mxu0 %v2609
        %v2780 = vpop.f32.mrb[0].mxu0
        %v2781 = vadd.f32 0.0, %v2780
        %v2782 = vpop.f32.mrb[0].mxu0
        %v2783 = vpop.f32.mrb[0].mxu0
        %v2784 = vadd.f32 0.0, %v2783
        %v2785 = vpop.f32.mrb[0].mxu0
        %2786 = vmatprep.mubr.bf16.mxu0 0
        %2787 = vmatmul.mubr.bf16.gmra.mrb[0].mxu0 %v2610
        %v2788 = vpop.f32.mrb[0].mxu0
        %v2789 = vadd.f32 0.0, %v2788
        %v2790 = vpop.f32.mrb[0].mxu0
        %v2791 = vpop.f32.mrb[0].mxu0
        %v2792 = vadd.f32 0.0, %v2791
        %v2793 = vpop.f32.mrb[0].mxu0
        %2794 = vmatprep.mubr.bf16.mxu0 0
        %2795 = vmatmul.mubr.bf16.gmra.mrb[0].mxu0 %v2611
        %v2796 = vpop.f32.mrb[0].mxu0
        %v2797 = vadd.f32 0.0, %v2796
        %v2798 = vpop.f32.mrb[0].mxu0
        %v2799 = vpop.f32.mrb[0].mxu0
        %v2800 = vadd.f32 0.0, %v2799
        %v2801 = vpop.f32.mrb[0].mxu0
        %2802 = vmatprep.mubr.bf16.mxu0 0
        %2803 = vmatmul.mubr.bf16.gmra.mrb[0].mxu0 %v2612
        %v2804 = vpop.f32.mrb[0].mxu0
        %v2805 = vadd.f32 0.0, %v2804
        %v2806 = vpop.f32.mrb[0].mxu0
        %v2807 = vpop.f32.mrb[0].mxu0
        %v2808 = vadd.f32 0.0, %v2807
        %v2809 = vpop.f32.mrb[0].mxu0
        %2810 = vmatprep.mubr.bf16.mxu0 0
        %2811 = vmatmul.mubr.bf16.gmra.mrb[0].mxu0 %v2613
        %v2812 = vpop.f32.mrb[0].mxu0
        %v2813 = vadd.f32 0.0, %v2812
        %v2814 = vpop.f32.mrb[0].mxu0
        %v2815 = vpop.f32.mrb[0].mxu0
        %v2816 = vadd.f32 0.0, %v2815
        %v2817 = vpop.f32.mrb[0].mxu0
        %2818 = vmatprep.mubr.bf16.mxu0 0
        %2819 = vmatmul.mubr.bf16.gmra.mrb[0].mxu0 %v2614
        %v2820 = vpop.f32.mrb[0].mxu0
        %v2821 = vadd.f32 0.0, %v2820
        %v2822 = vpop.f32.mrb[0].mxu0
        %v2823 = vpop.f32.mrb[0].mxu0
        %v2824 = vadd.f32 0.0, %v2823
        %v2825 = vpop.f32.mrb[0].mxu0
        %2826 = vmatprep.mubr.bf16.mxu0 0
        %2827 = vmatmul.mubr.bf16.gmra.mrb[0].mxu0 %v2615
        %v2828 = vpop.f32.mrb[0].mxu0
        %v2829 = vadd.f32 0.0, %v2828
        %v2830 = vpop.f32.mrb[0].mxu0
        %v2831 = vpop.f32.mrb[0].mxu0
        %v2832 = vadd.f32 0.0, %v2831
        %v2833 = vpop.f32.mrb[0].mxu0
        %2834 = vmatprep.mubr.bf16.mxu0 0
        %2835 = vmatmul.mubr.bf16.gmra.mrb[0].mxu0 %v2616
        %v2836 = vpop.f32.mrb[0].mxu0
        %v2837 = vadd.f32 0.0, %v2836
        %v2838 = vpop.f32.mrb[0].mxu0
        %v2839 = vpop.f32.mrb[0].mxu0
        %v2840 = vadd.f32 0.0, %v2839
        %v2841 = vpop.f32.mrb[0].mxu0
        %2842 = vdwg.mxu0
        %v2843 = vadd.f32 %v2537, %v2717
        %v2844 = vadd.f32 %v2538, %v2720
        %v2845 = vadd.f32 %v2539, %v2725
        %v2846 = vadd.f32 %v2540, %v2728
        %v2847 = vadd.f32 %v2541, %v2733
        %v2848 = vadd.f32 %v2542, %v2736
        %v2849 = vadd.f32 %v2543, %v2741
        %v2850 = vadd.f32 %v2544, %v2744
        %v2851 = vadd.f32 %v2545, %v2749
        %v2852 = vadd.f32 %v2546, %v2752
        %v2853 = vadd.f32 %v2547, %v2757
        %v2854 = vadd.f32 %v2548, %v2760
        %v2855 = vadd.f32 %v2549, %v2765
        %v2856 = vadd.f32 %v2550, %v2768
        %v2857 = vadd.f32 %v2551, %v2773
        %v2858 = vadd.f32 %v2552, %v2776
        %v2859 = vadd.f32 %v2553, %v2781
        %v2860 = vadd.f32 %v2554, %v2784
        %v2861 = vadd.f32 %v2555, %v2789
        %v2862 = vadd.f32 %v2556, %v2792
        %v2863 = vadd.f32 %v2557, %v2797
        %v2864 = vadd.f32 %v2558, %v2800
        %v2865 = vadd.f32 %v2559, %v2805
        %v2866 = vadd.f32 %v2560, %v2808
        %v2867 = vadd.f32 %v2561, %v2813
        %v2868 = vadd.f32 %v2562, %v2816
        %v2869 = vadd.f32 %v2563, %v2821
        %v2870 = vadd.f32 %v2564, %v2824
        %v2871 = vadd.f32 %v2565, %v2829
        %v2872 = vadd.f32 %v2566, %v2832
        %v2873 = vadd.f32 %v2567, %v2837
        %v2874 = vadd.f32 %v2568, %v2840
        %v2875 = vld [vmem:[%s2262 + $0x2] sm:$0xff]
        %v2876 = vld [vmem:[%s2262 + $0xa] sm:$0xff]
        %v2877 = vld [vmem:[%s2262 + $0x1a] sm:$0xff]
        %v2878 = vld [vmem:[%s2262 + $0x22] sm:$0xff]
        %v2879 = vld [vmem:[%s2262 + $0x32] sm:$0xff]
        %v2880 = vld [vmem:[%s2262 + $0x3a] sm:$0xff]
        %v2881 = vld [vmem:[%s2262 + $0x4a] sm:$0xff]
        %v2882 = vld [vmem:[%s2262 + $0x52] sm:$0xff]
        %v2883 = vld [vmem:[%s2262 + $0x62] sm:$0xff]
        %v2884 = vld [vmem:[%s2262 + $0x6a] sm:$0xff]
        %v2885 = vld [vmem:[%s2262 + $0x7a] sm:$0xff]
        %v2886 = vld [vmem:[%s2262 + $0x82] sm:$0xff]
        %v2887 = vld [vmem:[%s2262 + $0x92] sm:$0xff]
        %v2888 = vld [vmem:[%s2262 + $0x9a] sm:$0xff]
        %v2889 = vld [vmem:[%s2262 + $0xaa] sm:$0xff]
        %v2890 = vld [vmem:[%s2262 + $0xb2] sm:$0xff]
        %v2891 = vld [vmem:[%s2262 + $0xc2] sm:$0xff]
        %v2892 = vld [vmem:[%s2262 + $0xca] sm:$0xff]
        %v2893 = vld [vmem:[%s2262 + $0xda] sm:$0xff]
        %v2894 = vld [vmem:[%s2262 + $0xe2] sm:$0xff]
        %v2895 = vld [vmem:[%s2262 + $0xf2] sm:$0xff]
        %v2896 = vld [vmem:[%s2262 + $0xfa] sm:$0xff]
        %v2897 = vld [vmem:[%s2262 + $0x10a] sm:$0xff]
        %v2898 = vld [vmem:[%s2262 + $0x112] sm:$0xff]
        %v2899 = vld [vmem:[%s2262 + $0x122] sm:$0xff]
        %v2900 = vld [vmem:[%s2262 + $0x12a] sm:$0xff]
        %v2901 = vld [vmem:[%s2262 + $0x13a] sm:$0xff]
        %v2902 = vld [vmem:[%s2262 + $0x142] sm:$0xff]
        %v2903 = vld [vmem:[%s2262 + $0x152] sm:$0xff]
        %v2904 = vld [vmem:[%s2262 + $0x15a] sm:$0xff]
        %v2905 = vld [vmem:[%s2262 + $0x16a] sm:$0xff]
        %v2906 = vld [vmem:[%s2262 + $0x172] sm:$0xff]
        %v2907 = vpack.c.bf16 %v2876, %v2875
        %v2908 = vpack.c.bf16 %v2878, %v2877
        %v2909 = vpack.c.bf16 %v2880, %v2879
        %v2910 = vpack.c.bf16 %v2882, %v2881
        %v2911 = vpack.c.bf16 %v2884, %v2883
        %v2912 = vpack.c.bf16 %v2886, %v2885
        %v2913 = vpack.c.bf16 %v2888, %v2887
        %v2914 = vpack.c.bf16 %v2890, %v2889
        %v2915 = vpack.c.bf16 %v2892, %v2891
        %v2916 = vpack.c.bf16 %v2894, %v2893
        %v2917 = vpack.c.bf16 %v2896, %v2895
        %v2918 = vpack.c.bf16 %v2898, %v2897
        %v2919 = vpack.c.bf16 %v2900, %v2899
        %v2920 = vpack.c.bf16 %v2902, %v2901
        %v2921 = vpack.c.bf16 %v2904, %v2903
        %v2922 = vpack.c.bf16 %v2906, %v2905
        %s2923 = scalar_lea.vmem %s5, 512
        %v2924 = vld [vmem:[%s2923] sm:$0xf]
        %v2925 = vld [vmem:[%s2923 + $0x4] sm:$0xf]
        %v2926 = vld [vmem:[%s2923 + $0x8] sm:$0xf]
        %v2927 = vld [vmem:[%s2923 + $0xc] sm:$0xf]
        %v2928 = vld [vmem:[%s2923 + $0x10] sm:$0xf]
        %v2929 = vld [vmem:[%s2923 + $0x14] sm:$0xf]
        %v2930 = vld [vmem:[%s2923 + $0x18] sm:$0xf]
        %v2931 = vld [vmem:[%s2923 + $0x1c] sm:$0xf]
        %v2932 = vld [vmem:[%s2923 + $0x20] sm:$0xf]
        %v2933 = vld [vmem:[%s2923 + $0x24] sm:$0xf]
        %v2934 = vld [vmem:[%s2923 + $0x28] sm:$0xf]
        %v2935 = vld [vmem:[%s2923 + $0x2c] sm:$0xf]
        %v2936 = vld [vmem:[%s2923 + $0x30] sm:$0xf]
        %v2937 = vld [vmem:[%s2923 + $0x34] sm:$0xf]
        %v2938 = vld [vmem:[%s2923 + $0x38] sm:$0xf]
        %v2939 = vld [vmem:[%s2923 + $0x3c] sm:$0xf]
        %v2956 = vunpack.c.l.b16 %v2924
        %v2957 = vunpack.c.l.b16 %v2925
        %v2958 = vunpack.c.l.b16 %v2926
        %v2959 = vunpack.c.l.b16 %v2927
        %v2960 = vunpack.c.l.b16 %v2928
        %v2961 = vunpack.c.l.b16 %v2929
        %v2962 = vunpack.c.l.b16 %v2930
        %v2963 = vunpack.c.l.b16 %v2931
        %v2964 = vunpack.c.l.b16 %v2932
        %v2965 = vunpack.c.l.b16 %v2933
        %v2966 = vunpack.c.l.b16 %v2934
        %v2967 = vunpack.c.l.b16 %v2935
        %v2968 = vunpack.c.l.b16 %v2936
        %v2969 = vunpack.c.l.b16 %v2937
        %v2970 = vunpack.c.l.b16 %v2938
        %v2971 = vunpack.c.l.b16 %v2939
        %v2972 = vpack.c.b16 %v2957, %v2956
        %v2973 = vpack.c.b16 %v2959, %v2958
        %v2974 = vpack.c.b16 %v2961, %v2960
        %v2975 = vpack.c.b16 %v2963, %v2962
        %v2976 = vpack.c.b16 %v2965, %v2964
        %v2977 = vpack.c.b16 %v2967, %v2966
        %v2978 = vpack.c.b16 %v2969, %v2968
        %v2979 = vpack.c.b16 %v2971, %v2970
        %2988 = vmatprep.subr.bf16.mxu0 0
        %2989 = vmatpush1.bf16.msra.mxu0 %v2972
        %2990 = vmatprep.subr.bf16.mxu0 0
        %2991 = vmatpush1.bf16.msra.mxu0 %v2973
        %2992 = vmatprep.subr.bf16.mxu0 0
        %2993 = vmatpush1.bf16.msra.mxu0 %v2974
        %2994 = vmatprep.subr.bf16.mxu0 0
        %2995 = vmatpush1.bf16.msra.mxu0 %v2975
        %2996 = vmatprep.subr.bf16.mxu0 0
        %2997 = vmatpush1.bf16.msra.mxu0 %v2976
        %2998 = vmatprep.subr.bf16.mxu0 0
        %2999 = vmatpush1.bf16.msra.mxu0 %v2977
        %3000 = vmatprep.subr.bf16.mxu0 0
        %3001 = vmatpush1.bf16.msra.mxu0 %v2978
        %3002 = vmatprep.subr.bf16.mxu0 0
        %3003 = vmatpush1.bf16.msra.mxu0 %v2979
        %3004 = vmatprep.subr.bf16.mxu0 0
        %3005 = vmatpush1.bf16.msra.mxu0 0
        %3006 = vmatprep.subr.bf16.mxu0 0
        %3007 = vmatpush1.bf16.msra.mxu0 0
        %3008 = vmatprep.subr.bf16.mxu0 0
        %3009 = vmatpush1.bf16.msra.mxu0 0
        %3010 = vmatprep.subr.bf16.mxu0 0
        %3011 = vmatpush1.bf16.msra.mxu0 0
        %3012 = vmatprep.subr.bf16.mxu0 0
        %3013 = vmatpush1.bf16.msra.mxu0 0
        %3014 = vmatprep.subr.bf16.mxu0 0
        %3015 = vmatpush1.bf16.msra.mxu0 0
        %3016 = vmatprep.subr.bf16.mxu0 0
        %3017 = vmatpush1.bf16.msra.mxu0 0
        %3018 = vmatprep.subr.bf16.mxu0 0
        %3019 = vmatpush1.bf16.msra.mxu0 0
        %3020 = vmatprep.mubr.bf16.mxu0 0
        %3021 = vmatmul.mubr.bf16.gmra.mrb[0].mxu0 %v2907
        %v3022 = vpop.f32.mrb[0].mxu0
        %v3023 = vadd.f32 0.0, %v3022
        %v3024 = vpop.f32.mrb[0].mxu0
        %v3025 = vpop.f32.mrb[0].mxu0
        %v3026 = vadd.f32 0.0, %v3025
        %v3027 = vpop.f32.mrb[0].mxu0
        %3028 = vmatprep.mubr.bf16.mxu0 0
        %3029 = vmatmul.mubr.bf16.gmra.mrb[0].mxu0 %v2908
        %v3030 = vpop.f32.mrb[0].mxu0
        %v3031 = vadd.f32 0.0, %v3030
        %v3032 = vpop.f32.mrb[0].mxu0
        %v3033 = vpop.f32.mrb[0].mxu0
        %v3034 = vadd.f32 0.0, %v3033
        %v3035 = vpop.f32.mrb[0].mxu0
        %3036 = vmatprep.mubr.bf16.mxu0 0
        %3037 = vmatmul.mubr.bf16.gmra.mrb[0].mxu0 %v2909
        %v3038 = vpop.f32.mrb[0].mxu0
        %v3039 = vadd.f32 0.0, %v3038
        %v3040 = vpop.f32.mrb[0].mxu0
        %v3041 = vpop.f32.mrb[0].mxu0
        %v3042 = vadd.f32 0.0, %v3041
        %v3043 = vpop.f32.mrb[0].mxu0
        %3044 = vmatprep.mubr.bf16.mxu0 0
        %3045 = vmatmul.mubr.bf16.gmra.mrb[0].mxu0 %v2910
        %v3046 = vpop.f32.mrb[0].mxu0
        %v3047 = vadd.f32 0.0, %v3046
        %v3048 = vpop.f32.mrb[0].mxu0
        %v3049 = vpop.f32.mrb[0].mxu0
        %v3050 = vadd.f32 0.0, %v3049
        %v3051 = vpop.f32.mrb[0].mxu0
        %3052 = vmatprep.mubr.bf16.mxu0 0
        %3053 = vmatmul.mubr.bf16.gmra.mrb[0].mxu0 %v2911
        %v3054 = vpop.f32.mrb[0].mxu0
        %v3055 = vadd.f32 0.0, %v3054
        %v3056 = vpop.f32.mrb[0].mxu0
        %v3057 = vpop.f32.mrb[0].mxu0
        %v3058 = vadd.f32 0.0, %v3057
        %v3059 = vpop.f32.mrb[0].mxu0
        %3060 = vmatprep.mubr.bf16.mxu0 0
        %3061 = vmatmul.mubr.bf16.gmra.mrb[0].mxu0 %v2912
        %v3062 = vpop.f32.mrb[0].mxu0
        %v3063 = vadd.f32 0.0, %v3062
        %v3064 = vpop.f32.mrb[0].mxu0
        %v3065 = vpop.f32.mrb[0].mxu0
        %v3066 = vadd.f32 0.0, %v3065
        %v3067 = vpop.f32.mrb[0].mxu0
        %3068 = vmatprep.mubr.bf16.mxu0 0
        %3069 = vmatmul.mubr.bf16.gmra.mrb[0].mxu0 %v2913
        %v3070 = vpop.f32.mrb[0].mxu0
        %v3071 = vadd.f32 0.0, %v3070
        %v3072 = vpop.f32.mrb[0].mxu0
        %v3073 = vpop.f32.mrb[0].mxu0
        %v3074 = vadd.f32 0.0, %v3073
        %v3075 = vpop.f32.mrb[0].mxu0
        %3076 = vmatprep.mubr.bf16.mxu0 0
        %3077 = vmatmul.mubr.bf16.gmra.mrb[0].mxu0 %v2914
        %v3078 = vpop.f32.mrb[0].mxu0
        %v3079 = vadd.f32 0.0, %v3078
        %v3080 = vpop.f32.mrb[0].mxu0
        %v3081 = vpop.f32.mrb[0].mxu0
        %v3082 = vadd.f32 0.0, %v3081
        %v3083 = vpop.f32.mrb[0].mxu0
        %3084 = vmatprep.mubr.bf16.mxu0 0
        %3085 = vmatmul.mubr.bf16.gmra.mrb[0].mxu0 %v2915
        %v3086 = vpop.f32.mrb[0].mxu0
        %v3087 = vadd.f32 0.0, %v3086
        %v3088 = vpop.f32.mrb[0].mxu0
        %v3089 = vpop.f32.mrb[0].mxu0
        %v3090 = vadd.f32 0.0, %v3089
        %v3091 = vpop.f32.mrb[0].mxu0
        %3092 = vmatprep.mubr.bf16.mxu0 0
        %3093 = vmatmul.mubr.bf16.gmra.mrb[0].mxu0 %v2916
        %v3094 = vpop.f32.mrb[0].mxu0
        %v3095 = vadd.f32 0.0, %v3094
        %v3096 = vpop.f32.mrb[0].mxu0
        %v3097 = vpop.f32.mrb[0].mxu0
        %v3098 = vadd.f32 0.0, %v3097
        %v3099 = vpop.f32.mrb[0].mxu0
        %3100 = vmatprep.mubr.bf16.mxu0 0
        %3101 = vmatmul.mubr.bf16.gmra.mrb[0].mxu0 %v2917
        %v3102 = vpop.f32.mrb[0].mxu0
        %v3103 = vadd.f32 0.0, %v3102
        %v3104 = vpop.f32.mrb[0].mxu0
        %v3105 = vpop.f32.mrb[0].mxu0
        %v3106 = vadd.f32 0.0, %v3105
        %v3107 = vpop.f32.mrb[0].mxu0
        %3108 = vmatprep.mubr.bf16.mxu0 0
        %3109 = vmatmul.mubr.bf16.gmra.mrb[0].mxu0 %v2918
        %v3110 = vpop.f32.mrb[0].mxu0
        %v3111 = vadd.f32 0.0, %v3110
        %v3112 = vpop.f32.mrb[0].mxu0
        %v3113 = vpop.f32.mrb[0].mxu0
        %v3114 = vadd.f32 0.0, %v3113
        %v3115 = vpop.f32.mrb[0].mxu0
        %3116 = vmatprep.mubr.bf16.mxu0 0
        %3117 = vmatmul.mubr.bf16.gmra.mrb[0].mxu0 %v2919
        %v3118 = vpop.f32.mrb[0].mxu0
        %v3119 = vadd.f32 0.0, %v3118
        %v3120 = vpop.f32.mrb[0].mxu0
        %v3121 = vpop.f32.mrb[0].mxu0
        %v3122 = vadd.f32 0.0, %v3121
        %v3123 = vpop.f32.mrb[0].mxu0
        %3124 = vmatprep.mubr.bf16.mxu0 0
        %3125 = vmatmul.mubr.bf16.gmra.mrb[0].mxu0 %v2920
        %v3126 = vpop.f32.mrb[0].mxu0
        %v3127 = vadd.f32 0.0, %v3126
        %v3128 = vpop.f32.mrb[0].mxu0
        %v3129 = vpop.f32.mrb[0].mxu0
        %v3130 = vadd.f32 0.0, %v3129
        %v3131 = vpop.f32.mrb[0].mxu0
        %3132 = vmatprep.mubr.bf16.mxu0 0
        %3133 = vmatmul.mubr.bf16.gmra.mrb[0].mxu0 %v2921
        %v3134 = vpop.f32.mrb[0].mxu0
        %v3135 = vadd.f32 0.0, %v3134
        %v3136 = vpop.f32.mrb[0].mxu0
        %v3137 = vpop.f32.mrb[0].mxu0
        %v3138 = vadd.f32 0.0, %v3137
        %v3139 = vpop.f32.mrb[0].mxu0
        %3140 = vmatprep.mubr.bf16.mxu0 0
        %3141 = vmatmul.mubr.bf16.gmra.mrb[0].mxu0 %v2922
        %v3142 = vpop.f32.mrb[0].mxu0
        %v3143 = vadd.f32 0.0, %v3142
        %v3144 = vpop.f32.mrb[0].mxu0
        %v3145 = vpop.f32.mrb[0].mxu0
        %v3146 = vadd.f32 0.0, %v3145
        %v3147 = vpop.f32.mrb[0].mxu0
        %3148 = vdwg.mxu0
        %v3149 = vadd.f32 %v2843, %v3023
        %v3150 = vadd.f32 %v2844, %v3026
        %v3151 = vadd.f32 %v2845, %v3031
        %v3152 = vadd.f32 %v2846, %v3034
        %v3153 = vadd.f32 %v2847, %v3039
        %v3154 = vadd.f32 %v2848, %v3042
        %v3155 = vadd.f32 %v2849, %v3047
        %v3156 = vadd.f32 %v2850, %v3050
        %v3157 = vadd.f32 %v2851, %v3055
        %v3158 = vadd.f32 %v2852, %v3058
        %v3159 = vadd.f32 %v2853, %v3063
        %v3160 = vadd.f32 %v2854, %v3066
        %v3161 = vadd.f32 %v2855, %v3071
        %v3162 = vadd.f32 %v2856, %v3074
        %v3163 = vadd.f32 %v2857, %v3079
        %v3164 = vadd.f32 %v2858, %v3082
        %v3165 = vadd.f32 %v2859, %v3087
        %v3166 = vadd.f32 %v2860, %v3090
        %v3167 = vadd.f32 %v2861, %v3095
        %v3168 = vadd.f32 %v2862, %v3098
        %v3169 = vadd.f32 %v2863, %v3103
        %v3170 = vadd.f32 %v2864, %v3106
        %v3171 = vadd.f32 %v2865, %v3111
        %v3172 = vadd.f32 %v2866, %v3114
        %v3173 = vadd.f32 %v2867, %v3119
        %v3174 = vadd.f32 %v2868, %v3122
        %v3175 = vadd.f32 %v2869, %v3127
        %v3176 = vadd.f32 %v2870, %v3130
        %v3177 = vadd.f32 %v2871, %v3135
        %v3178 = vadd.f32 %v2872, %v3138
        %v3179 = vadd.f32 %v2873, %v3143
        %v3180 = vadd.f32 %v2874, %v3146
        %vm3181 = vcmask 261120
        %3182 = vst.msk [vmem:[%s244] sm:$0xff] %vm3181, %v3149
        %3183 = vst.msk [vmem:[%s244 + $0x8] sm:$0xff] %vm3181, %v3150
        %3184 = vst.msk [vmem:[%s244 + $0x10] sm:$0xff] %vm3181, %v3151
        %3185 = vst.msk [vmem:[%s244 + $0x18] sm:$0xff] %vm3181, %v3152
        %3186 = vst.msk [vmem:[%s244 + $0x20] sm:$0xff] %vm3181, %v3153
        %3187 = vst.msk [vmem:[%s244 + $0x28] sm:$0xff] %vm3181, %v3154
        %3188 = vst.msk [vmem:[%s244 + $0x30] sm:$0xff] %vm3181, %v3155
        %3189 = vst.msk [vmem:[%s244 + $0x38] sm:$0xff] %vm3181, %v3156
        %3190 = vst.msk [vmem:[%s244 + $0x40] sm:$0xff] %vm3181, %v3157
        %3191 = vst.msk [vmem:[%s244 + $0x48] sm:$0xff] %vm3181, %v3158
        %3192 = vst.msk [vmem:[%s244 + $0x50] sm:$0xff] %vm3181, %v3159
        %3193 = vst.msk [vmem:[%s244 + $0x58] sm:$0xff] %vm3181, %v3160
        %3194 = vst.msk [vmem:[%s244 + $0x60] sm:$0xff] %vm3181, %v3161
        %3195 = vst.msk [vmem:[%s244 + $0x68] sm:$0xff] %vm3181, %v3162
        %3196 = vst.msk [vmem:[%s244 + $0x70] sm:$0xff] %vm3181, %v3163
        %3197 = vst.msk [vmem:[%s244 + $0x78] sm:$0xff] %vm3181, %v3164
        %3198 = vst.msk [vmem:[%s244 + $0x80] sm:$0xff] %vm3181, %v3165
        %3199 = vst.msk [vmem:[%s244 + $0x88] sm:$0xff] %vm3181, %v3166
        %3200 = vst.msk [vmem:[%s244 + $0x90] sm:$0xff] %vm3181, %v3167
        %3201 = vst.msk [vmem:[%s244 + $0x98] sm:$0xff] %vm3181, %v3168
        %3202 = vst.msk [vmem:[%s244 + $0xa0] sm:$0xff] %vm3181, %v3169
        %3203 = vst.msk [vmem:[%s244 + $0xa8] sm:$0xff] %vm3181, %v3170
        %3204 = vst.msk [vmem:[%s244 + $0xb0] sm:$0xff] %vm3181, %v3171
        %3205 = vst.msk [vmem:[%s244 + $0xb8] sm:$0xff] %vm3181, %v3172
        %3206 = vst.msk [vmem:[%s244 + $0xc0] sm:$0xff] %vm3181, %v3173
        %3207 = vst.msk [vmem:[%s244 + $0xc8] sm:$0xff] %vm3181, %v3174
        %3208 = vst.msk [vmem:[%s244 + $0xd0] sm:$0xff] %vm3181, %v3175
        %3209 = vst.msk [vmem:[%s244 + $0xd8] sm:$0xff] %vm3181, %v3176
        %3210 = vst.msk [vmem:[%s244 + $0xe0] sm:$0xff] %vm3181, %v3177
        %3211 = vst.msk [vmem:[%s244 + $0xe8] sm:$0xff] %vm3181, %v3178
        %3212 = vst.msk [vmem:[%s244 + $0xf0] sm:$0xff] %vm3181, %v3179
        %3213 = vst.msk [vmem:[%s244 + $0xf8] sm:$0xff] %vm3181, %v3180
        %s3214 = sand.u32 %s159, 1
        %s3215 = scalar_lea.sflag [#allocation4], %s3214
        %s3216 = sand.u32 %s159, 1
        %s3217 = smul.addr %s3216, 256
        %s3218 = scalar_lea.vmem [#allocation3], %s3217
        // Predicated region
        $region45: #{dense_layer_forward.7} parent=43 // pred_check
          %p3219 = pneg %p169
        $region46: #{dense_layer_forward.7} parent=43 // pred_check_branch
          %3221 = sbr.rel (%p3219) target = $region48
        $region47: #{dense_layer_forward.7} parent=43 // pred_region
          %s3223 = ssub.s32 4096, 4096
          %3224 = vsyncadd %s3215, %s3223
          %s3225 = smul.addr %s20, 32
          %s3226 = smul.addr %s3225, 128
          %s3227 = scalar_lea.hbm %s6, %s3226
          %s3228 = sshll.u32 %s3218, 4
          %s3229 = int_to_ptr.vmem [resolvable:$true] %s3228
          %3234 = dma.vmem_to_hbm [thread:$0]  %s3229, 4096, %s3227, %s3215, 128, 128, 8
        $region48: #{dense_layer_forward.7} parent=43 // pred_fallthru
          _
      $region44: #{dense_layer_forward.7} parent=5 // pred_fallthru
        _
      %p3235 = scmp.le.s32.totalorder 2, %s15
      // Predicated region
      $region49: #{dense_layer_forward.7} parent=5 // pred_check
        %p3236 = pneg %p3235
      $region50: #{dense_layer_forward.7} parent=5 // pred_check_branch
        %3238 = sbr.rel (%p3236) target = $region52
      $region51: #{dense_layer_forward.7} parent=5 // pred_region
        %s3239 = ssub.s32 %s15, 2
        // Predicated region
        $region53: #{dense_layer_forward.7} parent=51 // pred_check
          %p3240 = pneg %p175
        $region54: #{dense_layer_forward.7} parent=51 // pred_check_branch
          %3242 = sbr.rel (%p3240) target = $region56
        $region55: #{dense_layer_forward.7} parent=51 // pred_region
          %s3243 = sand.u32 %s160, 1
          %s3244 = scalar_lea.sflag [#allocation4], %s3243
          %s3245 = sand.u32 %s160, 1
          %s3246 = smul.addr %s3245, 256
          %s3247 = scalar_lea.vmem [#allocation3], %s3246
          %3248 = dma.done %s3244, 4096
        $region56: #{dense_layer_forward.7} parent=51 // pred_fallthru
          _
      $region52: #{dense_layer_forward.7} parent=5 // pred_fallthru
        _
    $region6: #{dense_layer_forward.7} parent=1 // loop_footer
      %s19 = sadd.s32 1, %s15
    $region7: #{dense_layer_forward.7} parent=1 // loop_footer_branch
      %14 = sbr.rel target = $region3
    $region8: #{dense_layer_forward.7} parent=1 // loop_exit
      _
    %3249 = vsyncpa [#allocation4], 1
    %s3250 = scalar_lea.sflag [#allocation4], 1
    %3251 = vsyncpa %s3250, 1

</llo_original>
